<compile_context>
chip_gen: v7x
topology: tpu7x:2x2x1
jax: 0.10.0
libtpu: 0.0.40
codegen_flags: <defaults>
</compile_context>

<pallas_src>
import jax
import jax.numpy as jnp
from jax.experimental import pallas as pl
from jax.experimental.pallas import tpu as pltpu


def _g2f3_kernel(res_ref, nfr_t_ref, nn2_ref, nw_t_ref, out_ref):
    """One (batch, P-tile) grid step.

    res_ref  : (1, C, TP)         P-tile of the flattened residual map (P on lanes)
    nfr_t_ref: (nodes, C)         node_fea_for_res^T            (grid-invariant)
    nn2_ref  : (1, nodes, 1)      input @ node_fea_for_hidden   (P-invariant, hoisted)
    nw_t_ref : (1, out_ch, nodes) (input @ weight)^T            (P-invariant, hoisted)
    out_ref  : (1, out_ch, TP)
    """
    res = res_ref[0]                                              # (C, TP)

    # logits^T = nfr^T @ res + nn2  ->  (nodes, TP)   (MXU + VPU add)
    logits = jnp.dot(nfr_t_ref[...], res,
                     preferred_element_type=jnp.float32) + nn2_ref[0]

    # Softmax over the `nodes` (sublane) axis.  Cross-sublane max/sum lower to the XLU
    # (otherwise idle here); the divide is exact VPU work -- both free in a mem-bound
    # kernel.
    m = jnp.max(logits, axis=0, keepdims=True)                    # (1, TP)
    e = jnp.exp(logits - m)                                       # (nodes, TP)  EUP
    attn = e / jnp.sum(e, axis=0, keepdims=True)                  # (nodes, TP)

    # feature_out^T = new_weight^T @ attn  ->  (out_ch, TP), then ReLU.
    out = jnp.dot(nw_t_ref[0], attn, preferred_element_type=jnp.float32)
    out_ref[0] = jnp.maximum(out, 0.0).astype(out_ref.dtype)


def _tpu_vmem_capacity_bytes():
    """Physical VMEM of the current chip (fallback: 128 MiB, the v5e/v6e value)."""
    try:
        info = pltpu.get_tpu_info()
        return int(getattr(info, "vmem_capacity_bytes", 128 << 20))
    except Exception:  # not on TPU / API surface mismatch -> conservative default
        return 128 << 20


def _choose_tile_p(P, per_col_bytes, batch, vmem_phys, max_tile_p=None):
    """Pick the P (lane) tile width.

    Size purely from a generation-aware VMEM budget (~24 MiB of tile footprint on v7x's
    64 MiB VMEM, ~48 MiB on v5e/v6e's 128 MiB), cap at 32768 lanes, prefer TP | P so all
    output stores are unmasked, and keep >= 2 P-tiles when batch == 1 (v7x has 2 TCs).
    """
    tile_budget = (24 << 20) if vmem_phys <= (64 << 20) else (48 << 20)
    tp_cap = (tile_budget // per_col_bytes) // 128 * 128
    tp_cap = max(128, min(32768, tp_cap))
    if max_tile_p is not None:
        tp_cap = min(tp_cap, max(128, (max_tile_p // 128) * 128))

    need_split = (batch == 1 and P >= 256)
    if need_split:
        tp_cap = min(tp_cap, max(128, (P // 2) // 128 * 128))

    if P <= tp_cap and not need_split:
        return P                     # full-extent last dim is always a legal block
    # Prefer the largest multiple of 128 that divides P (lane-dense, unmasked stores).
    for tp in range(tp_cap, 127, -128):
        if P % tp == 0:
            return tp
    return tp_cap                    # fallback: one ragged tail tile (masked store there)


def _vmem_limit_bytes(tile_bytes, vmem_phys):
    """Compiler VMEM limit tied to the chosen tile footprint, ~30% headroom."""
    want = int(tile_bytes * 1.43) + (2 << 20)     # headroom + tiny params + scratch
    cap = vmem_phys * 3 // 4                      # <=48 MiB on v7x, <=96 MiB on v5e/v6e
    floor = min(32 << 20, cap)
    return int(max(floor, min(want, cap)))


def graph_to_featuremaps3(inp, res_feature, node_fea_for_res, node_fea_for_hidden,
                          weight, max_tile_p=None):
    """inp: (1, B, nodes, hidden) or (B, nodes, hidden); res_feature: (B, C, D, H, W)."""
    if inp.ndim == 3:
        inp = inp[None]
    _, batch, nodes, hidden = inp.shape
    batchi, channels, di, hi, wi = res_feature.shape
    assert batch == batchi
    P = di * hi * wi
    out_ch = weight.shape[1]
    # The PyTorch `.view(res_feature.size())` only works when out_ch == channels.
    assert out_ch == channels, "output_channels must equal input channels"

    # Tiny P-invariant hoists (negligible bytes, computed once in XLA, not per grid step).
    inp_b = inp[0]                                                   # (B, nodes, hidden)
    nn2 = jnp.einsum("bnh,hk->bnk", inp_b, node_fea_for_hidden)      # (B, nodes, 1)
    nw_t = jnp.einsum("bnh,ho->bon", inp_b, weight)                  # (B, out_ch, nodes)
    nfr_t = node_fea_for_res.T                                       # (nodes, C)

    # The large res_feature tensor is only reshaped -- no transpose, no extra HBM pass.
    res_flat = res_feature.reshape(batch, channels, P)               # (B, C, P)

    in_bytes = jnp.dtype(res_feature.dtype).itemsize
    out_bytes = in_bytes
    c_pad = ((channels + 7) // 8) * 8     # sublane padding of the (C, TP) VMEM tile
    o_pad = ((out_ch + 7) // 8) * 8
    per_col = 2 * (c_pad * in_bytes + o_pad * out_bytes)   # double-buffered in+out / lane

    vmem_phys = _tpu_vmem_capacity_bytes()
    tp = _choose_tile_p(P, per_col, batch, vmem_phys, max_tile_p=max_tile_p)
    tile_bytes = per_col * tp
    vmem_limit = _vmem_limit_bytes(tile_bytes, vmem_phys)

    grid = (batch, pl.cdiv(P, tp))

    out_flat = pl.pallas_call(
        _g2f3_kernel,
        out_shape=jax.ShapeDtypeStruct((batch, out_ch, P), res_feature.dtype),
        grid_spec=pltpu.PrefetchScalarGridSpec(
            num_scalar_prefetch=0,
            grid=grid,
            in_specs=[
                pl.BlockSpec((1, channels, tp), lambda b, p: (b, 0, p)),
                pl.BlockSpec((nodes, channels), lambda b, p: (0, 0)),
                pl.BlockSpec((1, nodes, 1), lambda b, p: (b, 0, 0)),
                pl.BlockSpec((1, out_ch, nodes), lambda b, p: (b, 0, 0)),
            ],
            out_specs=pl.BlockSpec((1, out_ch, tp), lambda b, p: (b, 0, p)),
        ),
        compiler_params=pltpu.CompilerParams(
            dimension_semantics=("parallel", "parallel"),
            vmem_limit_bytes=vmem_limit,
        ),
    )(res_flat, nfr_t, nn2, nw_t)

    # (B, out_ch, P) -> NCDHW.  Pure reshape; no transpose needed.
    return out_flat.reshape(batch, out_ch, di, hi, wi)


def _xavier_uniform(key, shape, dtype=jnp.float32):
    # torch.nn.init.xavier_uniform_ for a 2-D tensor: fan_out = shape[0], fan_in = shape[1]
    fan_out, fan_in = shape
    bound = (6.0 / (fan_in + fan_out)) ** 0.5
    return jax.random.uniform(key, shape, dtype=dtype, minval=-bound, maxval=bound)


def _reference(inp, res_feature, nfr, nfh, w):
    # pure-JAX reference mirroring the PyTorch forward
    _, batch, nodes, hidden = inp.shape
    b, c, d, h, wd = res_feature.shape
    P = d * h * wd
    res_v = jnp.transpose(res_feature.reshape(b, c, P), (0, 2, 1))     # (B, P, C)
    nn1 = jnp.einsum("bpc,cn->bpn", res_v, nfr)
    nn2 = jnp.einsum("bnh,ho->bno", inp[0], nfh)[:, :, 0]              # (B, nodes)
    logits = nn1 + nn2[:, None, :]
    attn = jax.nn.softmax(logits, axis=-1)
    nw = jnp.einsum("bnh,ho->bno", inp[0], w)                          # (B, nodes, out)
    out = jnp.einsum("bpn,bno->bpo", attn, nw)
    out = jnp.transpose(out, (0, 2, 1)).reshape(res_feature.shape)
    return jax.nn.relu(out)


if __name__ == "__main__":
    # Small but non-trivial: P = 16*16*16 = 4096 exercises full-P, tiled and batch=1 paths.
    batch, channels, d, h, w = 2, 4, 16, 16, 16
    nodes, hidden = 7, 32
    input_channels = channels
    output_channels = channels   # required by .view(res_feature.size()) in the module

    key = jax.random.PRNGKey(0)
    k1, k2, k3, k4, k5 = jax.random.split(key, 5)

    node_fea_for_res = _xavier_uniform(k1, (input_channels, nodes))
    node_fea_for_hidden = _xavier_uniform(k2, (hidden, 1))
    weight = _xavier_uniform(k3, (hidden, output_channels))

    inp = jax.random.normal(k4, (1, batch, nodes, hidden), dtype=jnp.float32)
    res_feature = jax.random.normal(k5, (batch, channels, d, h, w), dtype=jnp.float32)

    ref = _reference(inp, res_feature, node_fea_for_res, node_fea_for_hidden, weight)

    # 1) Default path: TP sized from the VMEM budget -> full P per step, grid (B, 1).
    out = graph_to_featuremaps3(inp, res_feature, node_fea_for_res,
                                node_fea_for_hidden, weight)
    out = jax.block_until_ready(out)
    assert out.shape == res_feature.shape
    assert jnp.allclose(out, ref, atol=1e-2, rtol=1e-2), "mismatch vs reference (default)"

    # 2) Forced multi-tile path: TP=1024 divides P -> lane-dense stores on every tile.
    out_tiled = jax.block_until_ready(
        graph_to_featuremaps3(inp, res_feature, node_fea_for_res,
                              node_fea_for_hidden, weight, max_tile_p=1024))
    assert jnp.allclose(out_tiled, ref, atol=1e-2, rtol=1e-2), "mismatch vs reference (tiled)"

    # 3) batch=1 path: TP capped near P/2 so the 'parallel' P axis keeps >= 2 steps (v7x).
    out_b1 = jax.block_until_ready(
        graph_to_featuremaps3(inp[:, :1], res_feature[:1], node_fea_for_res,
                              node_fea_for_hidden, weight))
    assert jnp.allclose(out_b1, ref[:1], atol=1e-2, rtol=1e-2), "mismatch vs reference (b=1)"

    print("KERNEL_OK")
</pallas_src>

<mosaic_0001>
module attributes {stable_mosaic.version = 11 : i64} {
  func.func @_g2f3_kernel(%arg0: i32, %arg1: i32, %arg2: memref<1x4x4096xf32, #tpu.memory_space<vmem>>, %arg3: memref<7x4xf32, #tpu.memory_space<vmem>>, %arg4: memref<1x7x1xf32, #tpu.memory_space<vmem>>, %arg5: memref<1x4x7xf32, #tpu.memory_space<vmem>>, %arg6: memref<1x4x4096xf32, #tpu.memory_space<vmem>>) attributes {dimension_semantics = [#tpu.dimension_semantics<parallel>, #tpu.dimension_semantics<parallel>], iteration_bounds = array<i64: 2, 1>, scalar_prefetch = 0 : i64, scratch_operands = 0 : i64, tpu.core_type = #tpu.core_type<tc>, window_params = [{transform_indices = @transform_0, window_bounds = array<i64: 1, 4, 4096>}, {pipeline_mode = #tpu.pipeline_mode<synchronous>, transform_indices = @transform_1, window_bounds = array<i64: 7, 4>}, {transform_indices = @transform_2, window_bounds = array<i64: 1, 7, 1>}, {transform_indices = @transform_3, window_bounds = array<i64: 1, 4, 7>}, {transform_indices = @transform_4, window_bounds = array<i64: 1, 4, 4096>}]} {
    %c0 = arith.constant 0 : index
    %c0_0 = arith.constant 0 : index
    %c0_1 = arith.constant 0 : index
    %0 = vector.load %arg2[%c0, %c0_0, %c0_1] : memref<1x4x4096xf32, #tpu.memory_space<vmem>>, vector<1x4x4096xf32>
    %1 = vector.shape_cast %0 : vector<1x4x4096xf32> to vector<4x4096xf32>
    %c0_2 = arith.constant 0 : index
    %c0_3 = arith.constant 0 : index
    %2 = vector.load %arg3[%c0_2, %c0_3] : memref<7x4xf32, #tpu.memory_space<vmem>>, vector<7x4xf32>
    %cst = arith.constant dense<0.000000e+00> : vector<7x4096xf32>
    %3 = tpu.matmul %2, %1, %cst {dimension_numbers = #tpu.dot_dimension_numbers<[1], [0], [0], [1], [0, 0, 1, 1], [], []>} : vector<7x4xf32>, vector<4x4096xf32>, vector<7x4096xf32> -> vector<7x4096xf32>
    %c0_4 = arith.constant 0 : index
    %c0_5 = arith.constant 0 : index
    %c0_6 = arith.constant 0 : index
    %4 = vector.load %arg4[%c0_4, %c0_5, %c0_6] : memref<1x7x1xf32, #tpu.memory_space<vmem>>, vector<1x7x1xf32>
    %5 = vector.shape_cast %4 : vector<1x7x1xf32> to vector<7x1xf32>
    %6 = vector.broadcast %5 : vector<7x1xf32> to vector<7x4096xf32>
    %7 = arith.addf %3, %6 : vector<7x4096xf32>
    %cst_7 = arith.constant dense<0xFF800000> : vector<4096xf32>
    %8 = vector.multi_reduction <maximumf>, %7, %cst_7 [0] : vector<7x4096xf32> to vector<4096xf32>
    %9 = vector.shape_cast %8 : vector<4096xf32> to vector<1x4096xf32>
    %10 = vector.broadcast %9 : vector<1x4096xf32> to vector<7x4096xf32>
    %11 = arith.subf %7, %10 : vector<7x4096xf32>
    %12 = math.exp %11 : vector<7x4096xf32>
    %cst_8 = arith.constant dense<0.000000e+00> : vector<4096xf32>
    %13 = vector.multi_reduction <add>, %12, %cst_8 [0] : vector<7x4096xf32> to vector<4096xf32>
    %14 = vector.shape_cast %13 : vector<4096xf32> to vector<1x4096xf32>
    %15 = vector.broadcast %14 : vector<1x4096xf32> to vector<7x4096xf32>
    %16 = arith.divf %12, %15 : vector<7x4096xf32>
    %c0_9 = arith.constant 0 : index
    %c0_10 = arith.constant 0 : index
    %c0_11 = arith.constant 0 : index
    %17 = vector.load %arg5[%c0_9, %c0_10, %c0_11] : memref<1x4x7xf32, #tpu.memory_space<vmem>>, vector<1x4x7xf32>
    %18 = vector.shape_cast %17 : vector<1x4x7xf32> to vector<4x7xf32>
    %cst_12 = arith.constant dense<0.000000e+00> : vector<4x4096xf32>
    %19 = tpu.matmul %18, %16, %cst_12 {dimension_numbers = #tpu.dot_dimension_numbers<[1], [0], [0], [1], [0, 0, 1, 1], [], []>} : vector<4x7xf32>, vector<7x4096xf32>, vector<4x4096xf32> -> vector<4x4096xf32>
    %cst_13 = arith.constant 0.000000e+00 : f32
    %20 = vector.broadcast %cst_13 : f32 to vector<4x4096xf32>
    %21 = arith.maximumf %19, %20 : vector<4x4096xf32>
    %c0_14 = arith.constant 0 : index
    %c0_15 = arith.constant 0 : index
    %c0_16 = arith.constant 0 : index
    %22 = vector.load %arg6[%c0_14, %c0_15, %c0_16] : memref<1x4x4096xf32, #tpu.memory_space<vmem>>, vector<1x4x4096xf32>
    %23 = vector.shape_cast %22 : vector<1x4x4096xf32> to vector<4x4096xf32>
    %24 = vector.shape_cast %21 : vector<4x4096xf32> to vector<1x4x4096xf32>
    tpu.vector_store %arg6[%c0_14, %c0_15, %c0_16], %24 {strides = array<i32>} : memref<1x4x4096xf32, #tpu.memory_space<vmem>>, vector<1x4x4096xf32>,
    return
  }
  func.func @transform_0(%arg0: i32, %arg1: i32) -> (i32, i32, i32) {
    %c0_i32 = arith.constant 0 : i32
    %c0_i32_0 = arith.constant 0 : i32
    return %arg0, %c0_i32, %arg1 : i32, i32, i32
  }
  func.func @transform_1(%arg0: i32, %arg1: i32) -> (i32, i32) {
    %c0_i32 = arith.constant 0 : i32
    %c0_i32_0 = arith.constant 0 : i32
    %c0_i32_1 = arith.constant 0 : i32
    return %c0_i32, %c0_i32_0 : i32, i32
  }
  func.func @transform_2(%arg0: i32, %arg1: i32) -> (i32, i32, i32) {
    %c0_i32 = arith.constant 0 : i32
    %c0_i32_0 = arith.constant 0 : i32
    %c0_i32_1 = arith.constant 0 : i32
    return %arg0, %c0_i32, %c0_i32_0 : i32, i32, i32
  }
  func.func @transform_3(%arg0: i32, %arg1: i32) -> (i32, i32, i32) {
    %c0_i32 = arith.constant 0 : i32
    %c0_i32_0 = arith.constant 0 : i32
    %c0_i32_1 = arith.constant 0 : i32
    return %arg0, %c0_i32, %c0_i32_0 : i32, i32, i32
  }
  func.func @transform_4(%arg0: i32, %arg1: i32) -> (i32, i32, i32) {
    %c0_i32 = arith.constant 0 : i32
    %c0_i32_0 = arith.constant 0 : i32
    return %arg0, %c0_i32, %arg1 : i32, i32, i32
  }
}

</mosaic_0001>

<llo_original>
// kernel: tpu_custom_call.1
$region0: #{tpu_custom_call.1}
  #allocation0 [shape = 'u32[]', space=smem, size = 0x4, offset = 0x4, fixed_abs, tag = 'smem constant byte address 0x4 - core index']
  #allocation1 [shape = 'u32[144,128]{1,0:T(1,128)}', space=vmem, size = 0x12000, scoped, tag = 'internal scratch']
  %s0 = inlined_call_operand.hbm [shape: f32[2,4,4096], index: 0, kind: input, shape index: {}]
  %s1 = inlined_call_operand.vmem [shape: f32[7,4], index: 1, kind: input, shape index: {}]
  %s2 = inlined_call_operand.vmem [shape: f32[2,7,1], index: 2, kind: input, shape index: {}]
  %s3 = inlined_call_operand.vmem [shape: f32[2,4,7], index: 3, kind: input, shape index: {}]
  %s4 = inlined_call_operand.hbm [shape: f32[2,4,4096], index: 4, kind: output, shape index: {}]
  %s5 = sld [smem:[#allocation0]]
  $region53: #{tpu_custom_call.1} parent=0
    _
  %s7 = ssub.s32 1, %s5
  %s8 = scalar_select 0, %s7, %s5
  $region1: #{tpu_custom_call.1} parent=0
    #allocation2 [shape = 'u8[131072]{0}', space=vmem, size = 0x20000, scoped, tag = 'input window, operand 0']
    #allocation3 [shape = 's32[2]{0}', space=sflag, size = 0x8, scoped, tag = 'scoped memory for tpu_custom_call.1']
    #allocation4 [shape = 's32[2]{0}', space=sflag, size = 0x8, scoped, tag = 'scoped memory for tpu_custom_call.1']
    #allocation5 [shape = 'u8[131072]{0}', space=vmem, size = 0x20000, scoped, tag = 'output window, operand 0']
    %9 = vsyncpa [#allocation3], 0
    %s10 = scalar_lea.sflag [#allocation3], 1
    %11 = vsyncpa %s10, 0
    %12 = vsyncpa [#allocation4], 0
    %s13 = scalar_lea.sflag [#allocation4], 1
    %14 = vsyncpa %s13, 0
    loop: start=0, step=1, limit=4
    $region2: #{tpu_custom_call.1} parent=1 // loop_pre_header
      _
    $region3: #{tpu_custom_call.1} parent=1 // loop_header
      %s16 = sphi 0, %s20
      %p17 = scmp.ge.s32.totalorder %s16, 4
      %s23 = sphi 0, %s35
      %s24 = sphi 0, %s31
      %s25 = sphi 0, %s23
      %s26 = sphi 0, %s24
      %s27 = sphi 0, %s25
      %s28 = sphi 0, %s26
      %s40 = sphi 0, %s42
      %s43 = sphi 0, %s40
      %s44 = sphi 0, %s43
      %s60 = sphi 0, %s44
      %s64 = sphi 0, %s64
      %s66 = sphi 0, %s64
      %s67 = sphi 0, %s66
      %s81 = sphi 0, %s67
      %s87 = sphi 0, %s89
      %s90 = sphi 0, %s87
      %s91 = sphi 0, %s90
      %s107 = sphi 0, %s91
      %s113 = sphi 0, %s115
      %s116 = sphi 0, %s113
      %s117 = sphi 0, %s116
      %s133 = sphi 0, %s117
      %s141 = sphi 0, %s143
      %s144 = sphi 0, %s141
      %s145 = sphi 0, %s144
      %s161 = sphi 0, %s145
    $region4: #{tpu_custom_call.1} parent=1 // loop_header_branch
      %19 = sbr.rel (%p17) target = $region8
    $region5: #{tpu_custom_call.1} parent=1 // loop_body
      %s21 = ssub.s32 %s16, 1
      %s22 = ssub.s32 %s16, 2
      %s29 = sadd.s32 1, %s24
      %p30 = scmp.ge.s32.totalorder %s29, 1
      %s31 = scalar_select %p30, 0, %s29
      %s32 = sadd.s32 1, %s23
      %s33 = scalar_select %p30, %s32, %s23
      %p34 = scmp.ge.s32.totalorder %s33, 2
      %s35 = scalar_select %p34, 0, %s33
      %s36 = ssub.s32 %s23, %s35
      %s37 = ssub.s32 %s24, %s31
      %s38 = sor.u32 %s36, %s37
      %p39 = scmp.eq.s32.totalorder %s38, 0
      %s41 = sadd.s32 %s40, 1
      %s42 = scalar_select %p39, %s40, %s41
      %p45 = pneg %p39
      %p46 = scmp.eq.s32.totalorder %s16, 1
      %p47 = por %p45, %p46
      %p48 = scmp.ne.s32.totalorder %s40, %s43
      %p49 = scmp.eq.s32.totalorder %s16, 0
      %p50 = por %p48, %p49
      %p51 = scmp.ne.s32.totalorder %s40, %s43
      %p52 = scmp.eq.s32.totalorder %s21, 1
      %p53 = por %p51, %p52
      %p54 = scmp.ne.s32.totalorder %s43, %s44
      %p55 = scmp.eq.s32.totalorder %s21, 0
      %p56 = por %p54, %p55
      %p57 = scmp.ne.s32.totalorder %s43, %s44
      %p58 = scmp.eq.s32.totalorder %s22, 1
      %p59 = por %p57, %p58
      %p61 = scmp.ne.s32.totalorder %s44, %s60
      %p62 = scmp.eq.s32.totalorder %s22, 0
      %p63 = por %p61, %p62
      %s65 = sadd.s32 %s64, 1
      %p68 = scmp.eq.s32.totalorder %s16, 1
      %p69 = scmp.ne.s32.totalorder %s64, %s66
      %p70 = scmp.eq.s32.totalorder %s16, 0
      %p71 = por %p69, %p70
      %p72 = scmp.ne.s32.totalorder %s64, %s66
      %p73 = scmp.eq.s32.totalorder %s21, 1
      %p74 = por %p72, %p73
      %p75 = scmp.ne.s32.totalorder %s66, %s67
      %p76 = scmp.eq.s32.totalorder %s21, 0
      %p77 = por %p75, %p76
      %p78 = scmp.ne.s32.totalorder %s66, %s67
      %p79 = scmp.eq.s32.totalorder %s22, 1
      %p80 = por %p78, %p79
      %p82 = scmp.ne.s32.totalorder %s67, %s81
      %p83 = scmp.eq.s32.totalorder %s22, 0
      %p84 = por %p82, %p83
      %s85 = ssub.s32 %s23, %s35
      %p86 = scmp.eq.s32.totalorder %s85, 0
      %s88 = sadd.s32 %s87, 1
      %s89 = scalar_select %p86, %s87, %s88
      %p92 = pneg %p86
      %p93 = scmp.eq.s32.totalorder %s16, 1
      %p94 = por %p92, %p93
      %p95 = scmp.ne.s32.totalorder %s87, %s90
      %p96 = scmp.eq.s32.totalorder %s16, 0
      %p97 = por %p95, %p96
      %p98 = scmp.ne.s32.totalorder %s87, %s90
      %p99 = scmp.eq.s32.totalorder %s21, 1
      %p100 = por %p98, %p99
      %p101 = scmp.ne.s32.totalorder %s90, %s91
      %p102 = scmp.eq.s32.totalorder %s21, 0
      %p103 = por %p101, %p102
      %p104 = scmp.ne.s32.totalorder %s90, %s91
      %p105 = scmp.eq.s32.totalorder %s22, 1
      %p106 = por %p104, %p105
      %p108 = scmp.ne.s32.totalorder %s91, %s107
      %p109 = scmp.eq.s32.totalorder %s22, 0
      %p110 = por %p108, %p109
      %s111 = ssub.s32 %s23, %s35
      %p112 = scmp.eq.s32.totalorder %s111, 0
      %s114 = sadd.s32 %s113, 1
      %s115 = scalar_select %p112, %s113, %s114
      %p118 = pneg %p112
      %p119 = scmp.eq.s32.totalorder %s16, 1
      %p120 = por %p118, %p119
      %p121 = scmp.ne.s32.totalorder %s113, %s116
      %p122 = scmp.eq.s32.totalorder %s16, 0
      %p123 = por %p121, %p122
      %p124 = scmp.ne.s32.totalorder %s113, %s116
      %p125 = scmp.eq.s32.totalorder %s21, 1
      %p126 = por %p124, %p125
      %p127 = scmp.ne.s32.totalorder %s116, %s117
      %p128 = scmp.eq.s32.totalorder %s21, 0
      %p129 = por %p127, %p128
      %p130 = scmp.ne.s32.totalorder %s116, %s117
      %p131 = scmp.eq.s32.totalorder %s22, 1
      %p132 = por %p130, %p131
      %p134 = scmp.ne.s32.totalorder %s117, %s133
      %p135 = scmp.eq.s32.totalorder %s22, 0
      %p136 = por %p134, %p135
      %s137 = ssub.s32 %s23, %s35
      %s138 = ssub.s32 %s24, %s31
      %s139 = sor.u32 %s137, %s138
      %p140 = scmp.eq.s32.totalorder %s139, 0
      %s142 = sadd.s32 %s141, 1
      %s143 = scalar_select %p140, %s141, %s142
      %p146 = pneg %p140
      %p147 = scmp.eq.s32.totalorder %s16, 1
      %p148 = por %p146, %p147
      %p149 = scmp.ne.s32.totalorder %s141, %s144
      %p150 = scmp.eq.s32.totalorder %s16, 0
      %p151 = por %p149, %p150
      %p152 = scmp.ne.s32.totalorder %s141, %s144
      %p153 = scmp.eq.s32.totalorder %s21, 1
      %p154 = por %p152, %p153
      %p155 = scmp.ne.s32.totalorder %s144, %s145
      %p156 = scmp.eq.s32.totalorder %s21, 0
      %p157 = por %p155, %p156
      %p158 = scmp.ne.s32.totalorder %s144, %s145
      %p159 = scmp.eq.s32.totalorder %s22, 1
      %p160 = por %p158, %p159
      %p162 = scmp.ne.s32.totalorder %s145, %s161
      %p163 = scmp.eq.s32.totalorder %s22, 0
      %p164 = por %p162, %p163
      %p165 = scmp.le.s32.totalorder 1, %s16
      %p166 = scmp.lt.s32.totalorder %s16, 3
      %p167 = pnand %p165, %p166
      %p168 = pneg %p167
      // Predicated region
      $region9: #{tpu_custom_call.1} parent=5 // pred_check
        _
      $region10: #{tpu_custom_call.1} parent=5 // pred_check_branch
        %170 = sbr.rel (%p167) target = $region12
      $region11: #{tpu_custom_call.1} parent=5 // pred_region
        %s171 = ssub.s32 %s16, 1
        // Predicated region
        $region13: #{tpu_custom_call.1} parent=11 // pred_check
          %p172 = pneg %p77
        $region14: #{tpu_custom_call.1} parent=11 // pred_check_branch
          %174 = sbr.rel (%p172) target = $region16
        $region15: #{tpu_custom_call.1} parent=11 // pred_region
          _
        $region16: #{tpu_custom_call.1} parent=11 // pred_fallthru
          _
      $region12: #{tpu_custom_call.1} parent=5 // pred_fallthru
        _
      %p175 = scmp.lt.s32.totalorder %s16, 2
      // Predicated region
      $region17: #{tpu_custom_call.1} parent=5 // pred_check
        %p176 = pneg %p175
      $region18: #{tpu_custom_call.1} parent=5 // pred_check_branch
        %178 = sbr.rel (%p176) target = $region20
      $region19: #{tpu_custom_call.1} parent=5 // pred_region
        // Predicated region
        $region21: #{tpu_custom_call.1} parent=19 // pred_check
          %p179 = pneg %p50
        $region22: #{tpu_custom_call.1} parent=19 // pred_check_branch
          %181 = sbr.rel (%p179) target = $region24
        $region23: #{tpu_custom_call.1} parent=19 // pred_region
          %s182 = sand.u32 %s40, 1
          %s183 = scalar_lea.sflag [#allocation3], %s182
          %s184 = sand.u32 %s40, 1
          %s185 = smul.addr %s184, 128
          %s186 = scalar_lea.vmem [#allocation2], %s185
          %s187 = smul.u32 32, %s24
          %s189 = ssub.s32 2048, 2048
          %190 = vsyncadd %s183, %s189
          %s191 = smul.addr %s23, 32
          %s192 = sadd.s32 %s187, %s191
          %s193 = smul.addr %s192, 64
          %s194 = scalar_lea.hbm %s0, %s193
          %s196 = sshll.u32 %s186, 4
          %s197 = int_to_ptr.vmem [resolvable:$true] %s196
          %199 = dma.hbm_to_vmem [thread:$0]  %s194, 2048, %s197, %s183
        $region24: #{tpu_custom_call.1} parent=19 // pred_fallthru
          _
        // Predicated region
        $region25: #{tpu_custom_call.1} parent=19 // pred_check
          %p200 = pneg %p97
        $region26: #{tpu_custom_call.1} parent=19 // pred_check_branch
          %202 = sbr.rel (%p200) target = $region28
        $region27: #{tpu_custom_call.1} parent=19 // pred_region
          %p203 = scmp.lt.s32.totalorder %s23, 1
          %s204 = scalar_select %p203, %s23, 1
          %s205 = smul.addr %s204, 8
          %s206 = scalar_lea.vmem %s2, %s205
        $region28: #{tpu_custom_call.1} parent=19 // pred_fallthru
          _
        // Predicated region
        $region29: #{tpu_custom_call.1} parent=19 // pred_check
          %p207 = pneg %p123
        $region30: #{tpu_custom_call.1} parent=19 // pred_check_branch
          %209 = sbr.rel (%p207) target = $region32
        $region31: #{tpu_custom_call.1} parent=19 // pred_region
          %p210 = scmp.lt.s32.totalorder %s23, 1
          %s211 = scalar_select %p210, %s23, 1
          %s212 = smul.addr %s211, 4
          %s213 = scalar_lea.vmem %s3, %s212
        $region32: #{tpu_custom_call.1} parent=19 // pred_fallthru
          _
      $region20: #{tpu_custom_call.1} parent=5 // pred_fallthru
        _
      %p214 = scmp.le.s32.totalorder 1, %s16
      %p215 = scmp.lt.s32.totalorder %s16, 3
      %p216 = pnand %p214, %p215
      %p217 = pneg %p216
      // Predicated region
      $region33: #{tpu_custom_call.1} parent=5 // pred_check
        _
      $region34: #{tpu_custom_call.1} parent=5 // pred_check_branch
        %219 = sbr.rel (%p216) target = $region36
      $region35: #{tpu_custom_call.1} parent=5 // pred_region
        %s220 = ssub.s32 %s16, 1
        %s221 = sand.u32 %s43, 1
        %s222 = scalar_lea.sflag [#allocation3], %s221
        %s223 = sand.u32 %s43, 1
        %s224 = smul.addr %s223, 128
        %s225 = scalar_lea.vmem [#allocation2], %s224
        // Predicated region
        $region37: #{tpu_custom_call.1} parent=35 // pred_check
          %p226 = pneg %p56
        $region38: #{tpu_custom_call.1} parent=35 // pred_check_branch
          %228 = sbr.rel (%p226) target = $region40
        $region39: #{tpu_custom_call.1} parent=35 // pred_region
          %229 = dma.done %s222, 2048
        $region40: #{tpu_custom_call.1} parent=35 // pred_fallthru
          _
        %s230 = sand.u32 %s43, 1
        %s231 = scalar_lea.sflag [#allocation3], %s230
        %s232 = sand.u32 %s43, 1
        %s233 = smul.addr %s232, 128
        %s234 = scalar_lea.vmem [#allocation2], %s233
        %p235 = pneg %p56
        %p236 = pneg %p53
        %p237 = pneg %p77
        %p238 = pneg %p74
        %p239 = scmp.lt.s32.totalorder %s25, 1
        %s240 = scalar_select %p239, %s25, 1
        %s241 = smul.addr %s240, 8
        %s242 = scalar_lea.vmem %s2, %s241
        %p243 = pneg %p103
        %p244 = pneg %p100
        %p245 = scmp.lt.s32.totalorder %s25, 1
        %s246 = scalar_select %p245, %s25, 1
        %s247 = smul.addr %s246, 4
        %s248 = scalar_lea.vmem %s3, %s247
        %p249 = pneg %p129
        %p250 = pneg %p126
        %p251 = pneg %p157
        %p252 = pneg %p154
        %s253 = sand.u32 %s144, 1
        %s254 = scalar_lea.sflag [#allocation4], %s253
        %s255 = sand.u32 %s144, 1
        %s256 = smul.addr %s255, 128
        %s257 = scalar_lea.vmem [#allocation5], %s256
        %s258 = smul.u32 32, %s26
        %p259 = scmp.lt.s32.totalorder %s25, 1
        %s260 = scalar_select %p259, %s25, 1
        %s261 = smul.addr %s260, 8
        %s262 = scalar_lea.vmem %s2, %s261
        %p263 = scmp.lt.s32.totalorder %s25, 1
        %s264 = scalar_select %p263, %s25, 1
        %s265 = smul.addr %s264, 4
        %s266 = scalar_lea.vmem %s3, %s265
        %s267 = smul.u32 32, %s26
        %v268 = vld [vmem:[%s225] sm:$0xff]
        %v269 = vld [vmem:[%s225 + $0x8] sm:$0xff]
        %v270 = vld [vmem:[%s225 + $0x10] sm:$0xff]
        %v271 = vld [vmem:[%s225 + $0x18] sm:$0xff]
        %v272 = vld [vmem:[%s225 + $0x20] sm:$0xff]
        %v273 = vld [vmem:[%s225 + $0x28] sm:$0xff]
        %v274 = vld [vmem:[%s225 + $0x30] sm:$0xff]
        %v275 = vld [vmem:[%s225 + $0x38] sm:$0xff]
        %v276 = vld [vmem:[%s225 + $0x40] sm:$0xff]
        %v277 = vld [vmem:[%s225 + $0x48] sm:$0xff]
        %v278 = vld [vmem:[%s225 + $0x50] sm:$0xff]
        %v279 = vld [vmem:[%s225 + $0x58] sm:$0xff]
        %v280 = vld [vmem:[%s225 + $0x60] sm:$0xff]
        %v281 = vld [vmem:[%s225 + $0x68] sm:$0xff]
        %v282 = vld [vmem:[%s225 + $0x70] sm:$0xff]
        %v283 = vld [vmem:[%s225 + $0x78] sm:$0xff]
        %v284 = vld [vmem:[%s1] sm:$0x7f]
        %v285 = vld [vmem:[%s262] sm:$0x7f]
        %287 = vset.pattern.permute.xlu0 0
        %288 = vperm.xlu0 %287, %v285
        %v289 = vpop.permute.xlu0 %288
        %v307 = vcombine.high %v268, %v268
        %v308 = vcombine.high %v269, %v269
        %v309 = vcombine.high %v270, %v270
        %v310 = vcombine.high %v271, %v271
        %v311 = vcombine.high %v272, %v272
        %v312 = vcombine.high %v273, %v273
        %v313 = vcombine.high %v274, %v274
        %v314 = vcombine.high %v275, %v275
        %v315 = vcombine.high %v276, %v276
        %v316 = vcombine.high %v277, %v277
        %v317 = vcombine.high %v278, %v278
        %v318 = vcombine.high %v279, %v279
        %v319 = vcombine.high %v280, %v280
        %v320 = vcombine.high %v281, %v281
        %v321 = vcombine.high %v282, %v282
        %v322 = vcombine.high %v283, %v283
        %vm323 = vcmask 31744
        %v325 = vsel %vm323, %v284, 0
        %vm327 = vcmask 1043456
        %v328 = vsel %vm327, %v268, 0
        %v330 = vsel %vm327, %v307, 0
        %v332 = vsel %vm327, %v269, 0
        %v334 = vsel %vm327, %v308, 0
        %v336 = vsel %vm327, %v270, 0
        %v338 = vsel %vm327, %v309, 0
        %v340 = vsel %vm327, %v271, 0
        %v342 = vsel %vm327, %v310, 0
        %v344 = vsel %vm327, %v272, 0
        %v346 = vsel %vm327, %v311, 0
        %v348 = vsel %vm327, %v273, 0
        %v350 = vsel %vm327, %v312, 0
        %v352 = vsel %vm327, %v274, 0
        %v354 = vsel %vm327, %v313, 0
        %v356 = vsel %vm327, %v275, 0
        %v358 = vsel %vm327, %v314, 0
        %v360 = vsel %vm327, %v276, 0
        %v362 = vsel %vm327, %v315, 0
        %v364 = vsel %vm327, %v277, 0
        %v366 = vsel %vm327, %v316, 0
        %v368 = vsel %vm327, %v278, 0
        %v370 = vsel %vm327, %v317, 0
        %v372 = vsel %vm327, %v279, 0
        %v374 = vsel %vm327, %v318, 0
        %v376 = vsel %vm327, %v280, 0
        %v378 = vsel %vm327, %v319, 0
        %v380 = vsel %vm327, %v281, 0
        %v382 = vsel %vm327, %v320, 0
        %v384 = vsel %vm327, %v282, 0
        %v386 = vsel %vm327, %v321, 0
        %v388 = vsel %vm327, %v283, 0
        %v390 = vsel %vm327, %v322, 0
        %392 = vmatprep.subr.mxu0 %v330
        %393 = vmatpush1.msra.mxu0 %v328
        %394 = vmatprep.subr.mxu0 0.0
        %395 = vmatpush1.msra.mxu0 0.0
        %396 = vmatprep.subr.mxu0 0.0
        %397 = vmatpush1.msra.mxu0 0.0
        %398 = vmatprep.subr.mxu0 0.0
        %399 = vmatpush1.msra.mxu0 0.0
        %400 = vmatprep.subr.mxu0 0.0
        %401 = vmatpush1.msra.mxu0 0.0
        %402 = vmatprep.subr.mxu0 0.0
        %403 = vmatpush1.msra.mxu0 0.0
        %404 = vmatprep.subr.mxu0 0.0
        %405 = vmatpush1.msra.mxu0 0.0
        %406 = vmatprep.subr.mxu0 0.0
        %407 = vmatpush1.msra.mxu0 0.0
        %408 = vmatprep.subr.mxu0 0.0
        %409 = vmatpush1.msra.mxu0 0.0
        %410 = vmatprep.subr.mxu0 0.0
        %411 = vmatpush1.msra.mxu0 0.0
        %412 = vmatprep.subr.mxu0 0.0
        %413 = vmatpush1.msra.mxu0 0.0
        %414 = vmatprep.subr.mxu0 0.0
        %415 = vmatpush1.msra.mxu0 0.0
        %416 = vmatprep.subr.mxu0 0.0
        %417 = vmatpush1.msra.mxu0 0.0
        %418 = vmatprep.subr.mxu0 0.0
        %419 = vmatpush1.msra.mxu0 0.0
        %420 = vmatprep.subr.mxu0 0.0
        %421 = vmatpush1.msra.mxu0 0.0
        %422 = vmatprep.subr.mxu0 0.0
        %423 = vmatpush1.msra.mxu0 0.0
        %424 = vmatprep.subr.mxu0 0.0
        %425 = vmatpush1.msra.mxu0 0.0
        %426 = vmatprep.subr.mxu0 0.0
        %427 = vmatpush1.msra.mxu0 0.0
        %428 = vmatprep.subr.mxu0 0.0
        %429 = vmatpush1.msra.mxu0 0.0
        %430 = vmatprep.subr.mxu0 0.0
        %431 = vmatpush1.msra.mxu0 0.0
        %432 = vmatprep.subr.mxu0 0.0
        %433 = vmatpush1.msra.mxu0 0.0
        %434 = vmatprep.subr.mxu0 0.0
        %435 = vmatpush1.msra.mxu0 0.0
        %436 = vmatprep.subr.mxu0 0.0
        %437 = vmatpush1.msra.mxu0 0.0
        %438 = vmatprep.subr.mxu0 0.0
        %439 = vmatpush1.msra.mxu0 0.0
        %440 = vmatprep.subr.mxu0 0.0
        %441 = vmatpush1.msra.mxu0 0.0
        %442 = vmatprep.subr.mxu0 0.0
        %443 = vmatpush1.msra.mxu0 0.0
        %444 = vmatprep.subr.mxu0 0.0
        %445 = vmatpush1.msra.mxu0 0.0
        %446 = vmatprep.subr.mxu0 0.0
        %447 = vmatpush1.msra.mxu0 0.0
        %448 = vmatprep.subr.mxu0 0.0
        %449 = vmatpush1.msra.mxu0 0.0
        %450 = vmatprep.subr.mxu0 0.0
        %451 = vmatpush1.msra.mxu0 0.0
        %452 = vmatprep.subr.mxu0 0.0
        %453 = vmatpush1.msra.mxu0 0.0
        %454 = vmatprep.subr.mxu0 0.0
        %455 = vmatpush1.msra.mxu0 0.0
        %456 = vmatprep.mubr.f32.mxu0 0.0
        %457 = vmatmul.mubr.f32.gmra.mrb[0].mxu0 %v325
        %v458 = vpop.f32.mrb[0].mxu0
        %v459 = vadd.f32 %v289, %v458
        %v460 = vpop.f32.mrb[0].mxu0
        %v461 = vadd.f32 %v289, %v460
        %462 = vdwg.mxu0
        %463 = vmatprep.subr.mxu0 %v334
        %464 = vmatpush1.msra.mxu0 %v332
        %465 = vmatprep.subr.mxu0 0.0
        %466 = vmatpush1.msra.mxu0 0.0
        %467 = vmatprep.subr.mxu0 0.0
        %468 = vmatpush1.msra.mxu0 0.0
        %469 = vmatprep.subr.mxu0 0.0
        %470 = vmatpush1.msra.mxu0 0.0
        %471 = vmatprep.subr.mxu0 0.0
        %472 = vmatpush1.msra.mxu0 0.0
        %473 = vmatprep.subr.mxu0 0.0
        %474 = vmatpush1.msra.mxu0 0.0
        %475 = vmatprep.subr.mxu0 0.0
        %476 = vmatpush1.msra.mxu0 0.0
        %477 = vmatprep.subr.mxu0 0.0
        %478 = vmatpush1.msra.mxu0 0.0
        %479 = vmatprep.subr.mxu0 0.0
        %480 = vmatpush1.msra.mxu0 0.0
        %481 = vmatprep.subr.mxu0 0.0
        %482 = vmatpush1.msra.mxu0 0.0
        %483 = vmatprep.subr.mxu0 0.0
        %484 = vmatpush1.msra.mxu0 0.0
        %485 = vmatprep.subr.mxu0 0.0
        %486 = vmatpush1.msra.mxu0 0.0
        %487 = vmatprep.subr.mxu0 0.0
        %488 = vmatpush1.msra.mxu0 0.0
        %489 = vmatprep.subr.mxu0 0.0
        %490 = vmatpush1.msra.mxu0 0.0
        %491 = vmatprep.subr.mxu0 0.0
        %492 = vmatpush1.msra.mxu0 0.0
        %493 = vmatprep.subr.mxu0 0.0
        %494 = vmatpush1.msra.mxu0 0.0
        %495 = vmatprep.subr.mxu0 0.0
        %496 = vmatpush1.msra.mxu0 0.0
        %497 = vmatprep.subr.mxu0 0.0
        %498 = vmatpush1.msra.mxu0 0.0
        %499 = vmatprep.subr.mxu0 0.0
        %500 = vmatpush1.msra.mxu0 0.0
        %501 = vmatprep.subr.mxu0 0.0
        %502 = vmatpush1.msra.mxu0 0.0
        %503 = vmatprep.subr.mxu0 0.0
        %504 = vmatpush1.msra.mxu0 0.0
        %505 = vmatprep.subr.mxu0 0.0
        %506 = vmatpush1.msra.mxu0 0.0
        %507 = vmatprep.subr.mxu0 0.0
        %508 = vmatpush1.msra.mxu0 0.0
        %509 = vmatprep.subr.mxu0 0.0
        %510 = vmatpush1.msra.mxu0 0.0
        %511 = vmatprep.subr.mxu0 0.0
        %512 = vmatpush1.msra.mxu0 0.0
        %513 = vmatprep.subr.mxu0 0.0
        %514 = vmatpush1.msra.mxu0 0.0
        %515 = vmatprep.subr.mxu0 0.0
        %516 = vmatpush1.msra.mxu0 0.0
        %517 = vmatprep.subr.mxu0 0.0
        %518 = vmatpush1.msra.mxu0 0.0
        %519 = vmatprep.subr.mxu0 0.0
        %520 = vmatpush1.msra.mxu0 0.0
        %521 = vmatprep.subr.mxu0 0.0
        %522 = vmatpush1.msra.mxu0 0.0
        %523 = vmatprep.subr.mxu0 0.0
        %524 = vmatpush1.msra.mxu0 0.0
        %525 = vmatprep.subr.mxu0 0.0
        %526 = vmatpush1.msra.mxu0 0.0
        %527 = vmatprep.mubr.f32.mxu0 0.0
        %528 = vmatmul.mubr.f32.gmra.mrb[0].mxu0 %v325
        %v529 = vpop.f32.mrb[0].mxu0
        %v530 = vadd.f32 %v289, %v529
        %v531 = vpop.f32.mrb[0].mxu0
        %v532 = vadd.f32 %v289, %v531
        %533 = vdwg.mxu0
        %534 = vmatprep.subr.mxu0 %v338
        %535 = vmatpush1.msra.mxu0 %v336
        %536 = vmatprep.subr.mxu0 0.0
        %537 = vmatpush1.msra.mxu0 0.0
        %538 = vmatprep.subr.mxu0 0.0
        %539 = vmatpush1.msra.mxu0 0.0
        %540 = vmatprep.subr.mxu0 0.0
        %541 = vmatpush1.msra.mxu0 0.0
        %542 = vmatprep.subr.mxu0 0.0
        %543 = vmatpush1.msra.mxu0 0.0
        %544 = vmatprep.subr.mxu0 0.0
        %545 = vmatpush1.msra.mxu0 0.0
        %546 = vmatprep.subr.mxu0 0.0
        %547 = vmatpush1.msra.mxu0 0.0
        %548 = vmatprep.subr.mxu0 0.0
        %549 = vmatpush1.msra.mxu0 0.0
        %550 = vmatprep.subr.mxu0 0.0
        %551 = vmatpush1.msra.mxu0 0.0
        %552 = vmatprep.subr.mxu0 0.0
        %553 = vmatpush1.msra.mxu0 0.0
        %554 = vmatprep.subr.mxu0 0.0
        %555 = vmatpush1.msra.mxu0 0.0
        %556 = vmatprep.subr.mxu0 0.0
        %557 = vmatpush1.msra.mxu0 0.0
        %558 = vmatprep.subr.mxu0 0.0
        %559 = vmatpush1.msra.mxu0 0.0
        %560 = vmatprep.subr.mxu0 0.0
        %561 = vmatpush1.msra.mxu0 0.0
        %562 = vmatprep.subr.mxu0 0.0
        %563 = vmatpush1.msra.mxu0 0.0
        %564 = vmatprep.subr.mxu0 0.0
        %565 = vmatpush1.msra.mxu0 0.0
        %566 = vmatprep.subr.mxu0 0.0
        %567 = vmatpush1.msra.mxu0 0.0
        %568 = vmatprep.subr.mxu0 0.0
        %569 = vmatpush1.msra.mxu0 0.0
        %570 = vmatprep.subr.mxu0 0.0
        %571 = vmatpush1.msra.mxu0 0.0
        %572 = vmatprep.subr.mxu0 0.0
        %573 = vmatpush1.msra.mxu0 0.0
        %574 = vmatprep.subr.mxu0 0.0
        %575 = vmatpush1.msra.mxu0 0.0
        %576 = vmatprep.subr.mxu0 0.0
        %577 = vmatpush1.msra.mxu0 0.0
        %578 = vmatprep.subr.mxu0 0.0
        %579 = vmatpush1.msra.mxu0 0.0
        %580 = vmatprep.subr.mxu0 0.0
        %581 = vmatpush1.msra.mxu0 0.0
        %582 = vmatprep.subr.mxu0 0.0
        %583 = vmatpush1.msra.mxu0 0.0
        %584 = vmatprep.subr.mxu0 0.0
        %585 = vmatpush1.msra.mxu0 0.0
        %586 = vmatprep.subr.mxu0 0.0
        %587 = vmatpush1.msra.mxu0 0.0
        %588 = vmatprep.subr.mxu0 0.0
        %589 = vmatpush1.msra.mxu0 0.0
        %590 = vmatprep.subr.mxu0 0.0
        %591 = vmatpush1.msra.mxu0 0.0
        %592 = vmatprep.subr.mxu0 0.0
        %593 = vmatpush1.msra.mxu0 0.0
        %594 = vmatprep.subr.mxu0 0.0
        %595 = vmatpush1.msra.mxu0 0.0
        %596 = vmatprep.subr.mxu0 0.0
        %597 = vmatpush1.msra.mxu0 0.0
        %598 = vmatprep.mubr.f32.mxu0 0.0
        %599 = vmatmul.mubr.f32.gmra.mrb[0].mxu0 %v325
        %v600 = vpop.f32.mrb[0].mxu0
        %v601 = vadd.f32 %v289, %v600
        %v602 = vpop.f32.mrb[0].mxu0
        %v603 = vadd.f32 %v289, %v602
        %604 = vdwg.mxu0
        %605 = vmatprep.subr.mxu0 %v342
        %606 = vmatpush1.msra.mxu0 %v340
        %607 = vmatprep.subr.mxu0 0.0
        %608 = vmatpush1.msra.mxu0 0.0
        %609 = vmatprep.subr.mxu0 0.0
        %610 = vmatpush1.msra.mxu0 0.0
        %611 = vmatprep.subr.mxu0 0.0
        %612 = vmatpush1.msra.mxu0 0.0
        %613 = vmatprep.subr.mxu0 0.0
        %614 = vmatpush1.msra.mxu0 0.0
        %615 = vmatprep.subr.mxu0 0.0
        %616 = vmatpush1.msra.mxu0 0.0
        %617 = vmatprep.subr.mxu0 0.0
        %618 = vmatpush1.msra.mxu0 0.0
        %619 = vmatprep.subr.mxu0 0.0
        %620 = vmatpush1.msra.mxu0 0.0
        %621 = vmatprep.subr.mxu0 0.0
        %622 = vmatpush1.msra.mxu0 0.0
        %623 = vmatprep.subr.mxu0 0.0
        %624 = vmatpush1.msra.mxu0 0.0
        %625 = vmatprep.subr.mxu0 0.0
        %626 = vmatpush1.msra.mxu0 0.0
        %627 = vmatprep.subr.mxu0 0.0
        %628 = vmatpush1.msra.mxu0 0.0
        %629 = vmatprep.subr.mxu0 0.0
        %630 = vmatpush1.msra.mxu0 0.0
        %631 = vmatprep.subr.mxu0 0.0
        %632 = vmatpush1.msra.mxu0 0.0
        %633 = vmatprep.subr.mxu0 0.0
        %634 = vmatpush1.msra.mxu0 0.0
        %635 = vmatprep.subr.mxu0 0.0
        %636 = vmatpush1.msra.mxu0 0.0
        %637 = vmatprep.subr.mxu0 0.0
        %638 = vmatpush1.msra.mxu0 0.0
        %639 = vmatprep.subr.mxu0 0.0
        %640 = vmatpush1.msra.mxu0 0.0
        %641 = vmatprep.subr.mxu0 0.0
        %642 = vmatpush1.msra.mxu0 0.0
        %643 = vmatprep.subr.mxu0 0.0
        %644 = vmatpush1.msra.mxu0 0.0
        %645 = vmatprep.subr.mxu0 0.0
        %646 = vmatpush1.msra.mxu0 0.0
        %647 = vmatprep.subr.mxu0 0.0
        %648 = vmatpush1.msra.mxu0 0.0
        %649 = vmatprep.subr.mxu0 0.0
        %650 = vmatpush1.msra.mxu0 0.0
        %651 = vmatprep.subr.mxu0 0.0
        %652 = vmatpush1.msra.mxu0 0.0
        %653 = vmatprep.subr.mxu0 0.0
        %654 = vmatpush1.msra.mxu0 0.0
        %655 = vmatprep.subr.mxu0 0.0
        %656 = vmatpush1.msra.mxu0 0.0
        %657 = vmatprep.subr.mxu0 0.0
        %658 = vmatpush1.msra.mxu0 0.0
        %659 = vmatprep.subr.mxu0 0.0
        %660 = vmatpush1.msra.mxu0 0.0
        %661 = vmatprep.subr.mxu0 0.0
        %662 = vmatpush1.msra.mxu0 0.0
        %663 = vmatprep.subr.mxu0 0.0
        %664 = vmatpush1.msra.mxu0 0.0
        %665 = vmatprep.subr.mxu0 0.0
        %666 = vmatpush1.msra.mxu0 0.0
        %667 = vmatprep.subr.mxu0 0.0
        %668 = vmatpush1.msra.mxu0 0.0
        %669 = vmatprep.mubr.f32.mxu0 0.0
        %670 = vmatmul.mubr.f32.gmra.mrb[0].mxu0 %v325
        %v671 = vpop.f32.mrb[0].mxu0
        %v672 = vadd.f32 %v289, %v671
        %v673 = vpop.f32.mrb[0].mxu0
        %v674 = vadd.f32 %v289, %v673
        %675 = vdwg.mxu0
        %676 = vmatprep.subr.mxu0 %v346
        %677 = vmatpush1.msra.mxu0 %v344
        %678 = vmatprep.subr.mxu0 0.0
        %679 = vmatpush1.msra.mxu0 0.0
        %680 = vmatprep.subr.mxu0 0.0
        %681 = vmatpush1.msra.mxu0 0.0
        %682 = vmatprep.subr.mxu0 0.0
        %683 = vmatpush1.msra.mxu0 0.0
        %684 = vmatprep.subr.mxu0 0.0
        %685 = vmatpush1.msra.mxu0 0.0
        %686 = vmatprep.subr.mxu0 0.0
        %687 = vmatpush1.msra.mxu0 0.0
        %688 = vmatprep.subr.mxu0 0.0
        %689 = vmatpush1.msra.mxu0 0.0
        %690 = vmatprep.subr.mxu0 0.0
        %691 = vmatpush1.msra.mxu0 0.0
        %692 = vmatprep.subr.mxu0 0.0
        %693 = vmatpush1.msra.mxu0 0.0
        %694 = vmatprep.subr.mxu0 0.0
        %695 = vmatpush1.msra.mxu0 0.0
        %696 = vmatprep.subr.mxu0 0.0
        %697 = vmatpush1.msra.mxu0 0.0
        %698 = vmatprep.subr.mxu0 0.0
        %699 = vmatpush1.msra.mxu0 0.0
        %700 = vmatprep.subr.mxu0 0.0
        %701 = vmatpush1.msra.mxu0 0.0
        %702 = vmatprep.subr.mxu0 0.0
        %703 = vmatpush1.msra.mxu0 0.0
        %704 = vmatprep.subr.mxu0 0.0
        %705 = vmatpush1.msra.mxu0 0.0
        %706 = vmatprep.subr.mxu0 0.0
        %707 = vmatpush1.msra.mxu0 0.0
        %708 = vmatprep.subr.mxu0 0.0
        %709 = vmatpush1.msra.mxu0 0.0
        %710 = vmatprep.subr.mxu0 0.0
        %711 = vmatpush1.msra.mxu0 0.0
        %712 = vmatprep.subr.mxu0 0.0
        %713 = vmatpush1.msra.mxu0 0.0
        %714 = vmatprep.subr.mxu0 0.0
        %715 = vmatpush1.msra.mxu0 0.0
        %716 = vmatprep.subr.mxu0 0.0
        %717 = vmatpush1.msra.mxu0 0.0
        %718 = vmatprep.subr.mxu0 0.0
        %719 = vmatpush1.msra.mxu0 0.0
        %720 = vmatprep.subr.mxu0 0.0
        %721 = vmatpush1.msra.mxu0 0.0
        %722 = vmatprep.subr.mxu0 0.0
        %723 = vmatpush1.msra.mxu0 0.0
        %724 = vmatprep.subr.mxu0 0.0
        %725 = vmatpush1.msra.mxu0 0.0
        %726 = vmatprep.subr.mxu0 0.0
        %727 = vmatpush1.msra.mxu0 0.0
        %728 = vmatprep.subr.mxu0 0.0
        %729 = vmatpush1.msra.mxu0 0.0
        %730 = vmatprep.subr.mxu0 0.0
        %731 = vmatpush1.msra.mxu0 0.0
        %732 = vmatprep.subr.mxu0 0.0
        %733 = vmatpush1.msra.mxu0 0.0
        %734 = vmatprep.subr.mxu0 0.0
        %735 = vmatpush1.msra.mxu0 0.0
        %736 = vmatprep.subr.mxu0 0.0
        %737 = vmatpush1.msra.mxu0 0.0
        %738 = vmatprep.subr.mxu0 0.0
        %739 = vmatpush1.msra.mxu0 0.0
        %740 = vmatprep.mubr.f32.mxu0 0.0
        %741 = vmatmul.mubr.f32.gmra.mrb[0].mxu0 %v325
        %v742 = vpop.f32.mrb[0].mxu0
        %v743 = vadd.f32 %v289, %v742
        %v744 = vpop.f32.mrb[0].mxu0
        %v745 = vadd.f32 %v289, %v744
        %746 = vdwg.mxu0
        %747 = vmatprep.subr.mxu0 %v350
        %748 = vmatpush1.msra.mxu0 %v348
        %749 = vmatprep.subr.mxu0 0.0
        %750 = vmatpush1.msra.mxu0 0.0
        %751 = vmatprep.subr.mxu0 0.0
        %752 = vmatpush1.msra.mxu0 0.0
        %753 = vmatprep.subr.mxu0 0.0
        %754 = vmatpush1.msra.mxu0 0.0
        %755 = vmatprep.subr.mxu0 0.0
        %756 = vmatpush1.msra.mxu0 0.0
        %757 = vmatprep.subr.mxu0 0.0
        %758 = vmatpush1.msra.mxu0 0.0
        %759 = vmatprep.subr.mxu0 0.0
        %760 = vmatpush1.msra.mxu0 0.0
        %761 = vmatprep.subr.mxu0 0.0
        %762 = vmatpush1.msra.mxu0 0.0
        %763 = vmatprep.subr.mxu0 0.0
        %764 = vmatpush1.msra.mxu0 0.0
        %765 = vmatprep.subr.mxu0 0.0
        %766 = vmatpush1.msra.mxu0 0.0
        %767 = vmatprep.subr.mxu0 0.0
        %768 = vmatpush1.msra.mxu0 0.0
        %769 = vmatprep.subr.mxu0 0.0
        %770 = vmatpush1.msra.mxu0 0.0
        %771 = vmatprep.subr.mxu0 0.0
        %772 = vmatpush1.msra.mxu0 0.0
        %773 = vmatprep.subr.mxu0 0.0
        %774 = vmatpush1.msra.mxu0 0.0
        %775 = vmatprep.subr.mxu0 0.0
        %776 = vmatpush1.msra.mxu0 0.0
        %777 = vmatprep.subr.mxu0 0.0
        %778 = vmatpush1.msra.mxu0 0.0
        %779 = vmatprep.subr.mxu0 0.0
        %780 = vmatpush1.msra.mxu0 0.0
        %781 = vmatprep.subr.mxu0 0.0
        %782 = vmatpush1.msra.mxu0 0.0
        %783 = vmatprep.subr.mxu0 0.0
        %784 = vmatpush1.msra.mxu0 0.0
        %785 = vmatprep.subr.mxu0 0.0
        %786 = vmatpush1.msra.mxu0 0.0
        %787 = vmatprep.subr.mxu0 0.0
        %788 = vmatpush1.msra.mxu0 0.0
        %789 = vmatprep.subr.mxu0 0.0
        %790 = vmatpush1.msra.mxu0 0.0
        %791 = vmatprep.subr.mxu0 0.0
        %792 = vmatpush1.msra.mxu0 0.0
        %793 = vmatprep.subr.mxu0 0.0
        %794 = vmatpush1.msra.mxu0 0.0
        %795 = vmatprep.subr.mxu0 0.0
        %796 = vmatpush1.msra.mxu0 0.0
        %797 = vmatprep.subr.mxu0 0.0
        %798 = vmatpush1.msra.mxu0 0.0
        %799 = vmatprep.subr.mxu0 0.0
        %800 = vmatpush1.msra.mxu0 0.0
        %801 = vmatprep.subr.mxu0 0.0
        %802 = vmatpush1.msra.mxu0 0.0
        %803 = vmatprep.subr.mxu0 0.0
        %804 = vmatpush1.msra.mxu0 0.0
        %805 = vmatprep.subr.mxu0 0.0
        %806 = vmatpush1.msra.mxu0 0.0
        %807 = vmatprep.subr.mxu0 0.0
        %808 = vmatpush1.msra.mxu0 0.0
        %809 = vmatprep.subr.mxu0 0.0
        %810 = vmatpush1.msra.mxu0 0.0
        %811 = vmatprep.mubr.f32.mxu0 0.0
        %812 = vmatmul.mubr.f32.gmra.mrb[0].mxu0 %v325
        %v813 = vpop.f32.mrb[0].mxu0
        %v814 = vadd.f32 %v289, %v813
        %v815 = vpop.f32.mrb[0].mxu0
        %v816 = vadd.f32 %v289, %v815
        %817 = vdwg.mxu0
        %818 = vmatprep.subr.mxu0 %v354
        %819 = vmatpush1.msra.mxu0 %v352
        %820 = vmatprep.subr.mxu0 0.0
        %821 = vmatpush1.msra.mxu0 0.0
        %822 = vmatprep.subr.mxu0 0.0
        %823 = vmatpush1.msra.mxu0 0.0
        %824 = vmatprep.subr.mxu0 0.0
        %825 = vmatpush1.msra.mxu0 0.0
        %826 = vmatprep.subr.mxu0 0.0
        %827 = vmatpush1.msra.mxu0 0.0
        %828 = vmatprep.subr.mxu0 0.0
        %829 = vmatpush1.msra.mxu0 0.0
        %830 = vmatprep.subr.mxu0 0.0
        %831 = vmatpush1.msra.mxu0 0.0
        %832 = vmatprep.subr.mxu0 0.0
        %833 = vmatpush1.msra.mxu0 0.0
        %834 = vmatprep.subr.mxu0 0.0
        %835 = vmatpush1.msra.mxu0 0.0
        %836 = vmatprep.subr.mxu0 0.0
        %837 = vmatpush1.msra.mxu0 0.0
        %838 = vmatprep.subr.mxu0 0.0
        %839 = vmatpush1.msra.mxu0 0.0
        %840 = vmatprep.subr.mxu0 0.0
        %841 = vmatpush1.msra.mxu0 0.0
        %842 = vmatprep.subr.mxu0 0.0
        %843 = vmatpush1.msra.mxu0 0.0
        %844 = vmatprep.subr.mxu0 0.0
        %845 = vmatpush1.msra.mxu0 0.0
        %846 = vmatprep.subr.mxu0 0.0
        %847 = vmatpush1.msra.mxu0 0.0
        %848 = vmatprep.subr.mxu0 0.0
        %849 = vmatpush1.msra.mxu0 0.0
        %850 = vmatprep.subr.mxu0 0.0
        %851 = vmatpush1.msra.mxu0 0.0
        %852 = vmatprep.subr.mxu0 0.0
        %853 = vmatpush1.msra.mxu0 0.0
        %854 = vmatprep.subr.mxu0 0.0
        %855 = vmatpush1.msra.mxu0 0.0
        %856 = vmatprep.subr.mxu0 0.0
        %857 = vmatpush1.msra.mxu0 0.0
        %858 = vmatprep.subr.mxu0 0.0
        %859 = vmatpush1.msra.mxu0 0.0
        %860 = vmatprep.subr.mxu0 0.0
        %861 = vmatpush1.msra.mxu0 0.0
        %862 = vmatprep.subr.mxu0 0.0
        %863 = vmatpush1.msra.mxu0 0.0
        %864 = vmatprep.subr.mxu0 0.0
        %865 = vmatpush1.msra.mxu0 0.0
        %866 = vmatprep.subr.mxu0 0.0
        %867 = vmatpush1.msra.mxu0 0.0
        %868 = vmatprep.subr.mxu0 0.0
        %869 = vmatpush1.msra.mxu0 0.0
        %870 = vmatprep.subr.mxu0 0.0
        %871 = vmatpush1.msra.mxu0 0.0
        %872 = vmatprep.subr.mxu0 0.0
        %873 = vmatpush1.msra.mxu0 0.0
        %874 = vmatprep.subr.mxu0 0.0
        %875 = vmatpush1.msra.mxu0 0.0
        %876 = vmatprep.subr.mxu0 0.0
        %877 = vmatpush1.msra.mxu0 0.0
        %878 = vmatprep.subr.mxu0 0.0
        %879 = vmatpush1.msra.mxu0 0.0
        %880 = vmatprep.subr.mxu0 0.0
        %881 = vmatpush1.msra.mxu0 0.0
        %882 = vmatprep.mubr.f32.mxu0 0.0
        %883 = vmatmul.mubr.f32.gmra.mrb[0].mxu0 %v325
        %v884 = vpop.f32.mrb[0].mxu0
        %v885 = vadd.f32 %v289, %v884
        %v886 = vpop.f32.mrb[0].mxu0
        %v887 = vadd.f32 %v289, %v886
        %888 = vdwg.mxu0
        %889 = vmatprep.subr.mxu0 %v358
        %890 = vmatpush1.msra.mxu0 %v356
        %891 = vmatprep.subr.mxu0 0.0
        %892 = vmatpush1.msra.mxu0 0.0
        %893 = vmatprep.subr.mxu0 0.0
        %894 = vmatpush1.msra.mxu0 0.0
        %895 = vmatprep.subr.mxu0 0.0
        %896 = vmatpush1.msra.mxu0 0.0
        %897 = vmatprep.subr.mxu0 0.0
        %898 = vmatpush1.msra.mxu0 0.0
        %899 = vmatprep.subr.mxu0 0.0
        %900 = vmatpush1.msra.mxu0 0.0
        %901 = vmatprep.subr.mxu0 0.0
        %902 = vmatpush1.msra.mxu0 0.0
        %903 = vmatprep.subr.mxu0 0.0
        %904 = vmatpush1.msra.mxu0 0.0
        %905 = vmatprep.subr.mxu0 0.0
        %906 = vmatpush1.msra.mxu0 0.0
        %907 = vmatprep.subr.mxu0 0.0
        %908 = vmatpush1.msra.mxu0 0.0
        %909 = vmatprep.subr.mxu0 0.0
        %910 = vmatpush1.msra.mxu0 0.0
        %911 = vmatprep.subr.mxu0 0.0
        %912 = vmatpush1.msra.mxu0 0.0
        %913 = vmatprep.subr.mxu0 0.0
        %914 = vmatpush1.msra.mxu0 0.0
        %915 = vmatprep.subr.mxu0 0.0
        %916 = vmatpush1.msra.mxu0 0.0
        %917 = vmatprep.subr.mxu0 0.0
        %918 = vmatpush1.msra.mxu0 0.0
        %919 = vmatprep.subr.mxu0 0.0
        %920 = vmatpush1.msra.mxu0 0.0
        %921 = vmatprep.subr.mxu0 0.0
        %922 = vmatpush1.msra.mxu0 0.0
        %923 = vmatprep.subr.mxu0 0.0
        %924 = vmatpush1.msra.mxu0 0.0
        %925 = vmatprep.subr.mxu0 0.0
        %926 = vmatpush1.msra.mxu0 0.0
        %927 = vmatprep.subr.mxu0 0.0
        %928 = vmatpush1.msra.mxu0 0.0
        %929 = vmatprep.subr.mxu0 0.0
        %930 = vmatpush1.msra.mxu0 0.0
        %931 = vmatprep.subr.mxu0 0.0
        %932 = vmatpush1.msra.mxu0 0.0
        %933 = vmatprep.subr.mxu0 0.0
        %934 = vmatpush1.msra.mxu0 0.0
        %935 = vmatprep.subr.mxu0 0.0
        %936 = vmatpush1.msra.mxu0 0.0
        %937 = vmatprep.subr.mxu0 0.0
        %938 = vmatpush1.msra.mxu0 0.0
        %939 = vmatprep.subr.mxu0 0.0
        %940 = vmatpush1.msra.mxu0 0.0
        %941 = vmatprep.subr.mxu0 0.0
        %942 = vmatpush1.msra.mxu0 0.0
        %943 = vmatprep.subr.mxu0 0.0
        %944 = vmatpush1.msra.mxu0 0.0
        %945 = vmatprep.subr.mxu0 0.0
        %946 = vmatpush1.msra.mxu0 0.0
        %947 = vmatprep.subr.mxu0 0.0
        %948 = vmatpush1.msra.mxu0 0.0
        %949 = vmatprep.subr.mxu0 0.0
        %950 = vmatpush1.msra.mxu0 0.0
        %951 = vmatprep.subr.mxu0 0.0
        %952 = vmatpush1.msra.mxu0 0.0
        %953 = vmatprep.mubr.f32.mxu0 0.0
        %954 = vmatmul.mubr.f32.gmra.mrb[0].mxu0 %v325
        %v955 = vpop.f32.mrb[0].mxu0
        %v956 = vadd.f32 %v289, %v955
        %v957 = vpop.f32.mrb[0].mxu0
        %v958 = vadd.f32 %v289, %v957
        %959 = vdwg.mxu0
        %960 = vmatprep.subr.mxu0 %v362
        %961 = vmatpush1.msra.mxu0 %v360
        %962 = vmatprep.subr.mxu0 0.0
        %963 = vmatpush1.msra.mxu0 0.0
        %964 = vmatprep.subr.mxu0 0.0
        %965 = vmatpush1.msra.mxu0 0.0
        %966 = vmatprep.subr.mxu0 0.0
        %967 = vmatpush1.msra.mxu0 0.0
        %968 = vmatprep.subr.mxu0 0.0
        %969 = vmatpush1.msra.mxu0 0.0
        %970 = vmatprep.subr.mxu0 0.0
        %971 = vmatpush1.msra.mxu0 0.0
        %972 = vmatprep.subr.mxu0 0.0
        %973 = vmatpush1.msra.mxu0 0.0
        %974 = vmatprep.subr.mxu0 0.0
        %975 = vmatpush1.msra.mxu0 0.0
        %976 = vmatprep.subr.mxu0 0.0
        %977 = vmatpush1.msra.mxu0 0.0
        %978 = vmatprep.subr.mxu0 0.0
        %979 = vmatpush1.msra.mxu0 0.0
        %980 = vmatprep.subr.mxu0 0.0
        %981 = vmatpush1.msra.mxu0 0.0
        %982 = vmatprep.subr.mxu0 0.0
        %983 = vmatpush1.msra.mxu0 0.0
        %984 = vmatprep.subr.mxu0 0.0
        %985 = vmatpush1.msra.mxu0 0.0
        %986 = vmatprep.subr.mxu0 0.0
        %987 = vmatpush1.msra.mxu0 0.0
        %988 = vmatprep.subr.mxu0 0.0
        %989 = vmatpush1.msra.mxu0 0.0
        %990 = vmatprep.subr.mxu0 0.0
        %991 = vmatpush1.msra.mxu0 0.0
        %992 = vmatprep.subr.mxu0 0.0
        %993 = vmatpush1.msra.mxu0 0.0
        %994 = vmatprep.subr.mxu0 0.0
        %995 = vmatpush1.msra.mxu0 0.0
        %996 = vmatprep.subr.mxu0 0.0
        %997 = vmatpush1.msra.mxu0 0.0
        %998 = vmatprep.subr.mxu0 0.0
        %999 = vmatpush1.msra.mxu0 0.0
        %1000 = vmatprep.subr.mxu0 0.0
        %1001 = vmatpush1.msra.mxu0 0.0
        %1002 = vmatprep.subr.mxu0 0.0
        %1003 = vmatpush1.msra.mxu0 0.0
        %1004 = vmatprep.subr.mxu0 0.0
        %1005 = vmatpush1.msra.mxu0 0.0
        %1006 = vmatprep.subr.mxu0 0.0
        %1007 = vmatpush1.msra.mxu0 0.0
        %1008 = vmatprep.subr.mxu0 0.0
        %1009 = vmatpush1.msra.mxu0 0.0
        %1010 = vmatprep.subr.mxu0 0.0
        %1011 = vmatpush1.msra.mxu0 0.0
        %1012 = vmatprep.subr.mxu0 0.0
        %1013 = vmatpush1.msra.mxu0 0.0
        %1014 = vmatprep.subr.mxu0 0.0
        %1015 = vmatpush1.msra.mxu0 0.0
        %1016 = vmatprep.subr.mxu0 0.0
        %1017 = vmatpush1.msra.mxu0 0.0
        %1018 = vmatprep.subr.mxu0 0.0
        %1019 = vmatpush1.msra.mxu0 0.0
        %1020 = vmatprep.subr.mxu0 0.0
        %1021 = vmatpush1.msra.mxu0 0.0
        %1022 = vmatprep.subr.mxu0 0.0
        %1023 = vmatpush1.msra.mxu0 0.0
        %1024 = vmatprep.mubr.f32.mxu0 0.0
        %1025 = vmatmul.mubr.f32.gmra.mrb[0].mxu0 %v325
        %v1026 = vpop.f32.mrb[0].mxu0
        %v1027 = vadd.f32 %v289, %v1026
        %v1028 = vpop.f32.mrb[0].mxu0
        %v1029 = vadd.f32 %v289, %v1028
        %1030 = vdwg.mxu0
        %1031 = vmatprep.subr.mxu0 %v366
        %1032 = vmatpush1.msra.mxu0 %v364
        %1033 = vmatprep.subr.mxu0 0.0
        %1034 = vmatpush1.msra.mxu0 0.0
        %1035 = vmatprep.subr.mxu0 0.0
        %1036 = vmatpush1.msra.mxu0 0.0
        %1037 = vmatprep.subr.mxu0 0.0
        %1038 = vmatpush1.msra.mxu0 0.0
        %1039 = vmatprep.subr.mxu0 0.0
        %1040 = vmatpush1.msra.mxu0 0.0
        %1041 = vmatprep.subr.mxu0 0.0
        %1042 = vmatpush1.msra.mxu0 0.0
        %1043 = vmatprep.subr.mxu0 0.0
        %1044 = vmatpush1.msra.mxu0 0.0
        %1045 = vmatprep.subr.mxu0 0.0
        %1046 = vmatpush1.msra.mxu0 0.0
        %1047 = vmatprep.subr.mxu0 0.0
        %1048 = vmatpush1.msra.mxu0 0.0
        %1049 = vmatprep.subr.mxu0 0.0
        %1050 = vmatpush1.msra.mxu0 0.0
        %1051 = vmatprep.subr.mxu0 0.0
        %1052 = vmatpush1.msra.mxu0 0.0
        %1053 = vmatprep.subr.mxu0 0.0
        %1054 = vmatpush1.msra.mxu0 0.0
        %1055 = vmatprep.subr.mxu0 0.0
        %1056 = vmatpush1.msra.mxu0 0.0
        %1057 = vmatprep.subr.mxu0 0.0
        %1058 = vmatpush1.msra.mxu0 0.0
        %1059 = vmatprep.subr.mxu0 0.0
        %1060 = vmatpush1.msra.mxu0 0.0
        %1061 = vmatprep.subr.mxu0 0.0
        %1062 = vmatpush1.msra.mxu0 0.0
        %1063 = vmatprep.subr.mxu0 0.0
        %1064 = vmatpush1.msra.mxu0 0.0
        %1065 = vmatprep.subr.mxu0 0.0
        %1066 = vmatpush1.msra.mxu0 0.0
        %1067 = vmatprep.subr.mxu0 0.0
        %1068 = vmatpush1.msra.mxu0 0.0
        %1069 = vmatprep.subr.mxu0 0.0
        %1070 = vmatpush1.msra.mxu0 0.0
        %1071 = vmatprep.subr.mxu0 0.0
        %1072 = vmatpush1.msra.mxu0 0.0
        %1073 = vmatprep.subr.mxu0 0.0
        %1074 = vmatpush1.msra.mxu0 0.0
        %1075 = vmatprep.subr.mxu0 0.0
        %1076 = vmatpush1.msra.mxu0 0.0
        %1077 = vmatprep.subr.mxu0 0.0
        %1078 = vmatpush1.msra.mxu0 0.0
        %1079 = vmatprep.subr.mxu0 0.0
        %1080 = vmatpush1.msra.mxu0 0.0
        %1081 = vmatprep.subr.mxu0 0.0
        %1082 = vmatpush1.msra.mxu0 0.0
        %1083 = vmatprep.subr.mxu0 0.0
        %1084 = vmatpush1.msra.mxu0 0.0
        %1085 = vmatprep.subr.mxu0 0.0
        %1086 = vmatpush1.msra.mxu0 0.0
        %1087 = vmatprep.subr.mxu0 0.0
        %1088 = vmatpush1.msra.mxu0 0.0
        %1089 = vmatprep.subr.mxu0 0.0
        %1090 = vmatpush1.msra.mxu0 0.0
        %1091 = vmatprep.subr.mxu0 0.0
        %1092 = vmatpush1.msra.mxu0 0.0
        %1093 = vmatprep.subr.mxu0 0.0
        %1094 = vmatpush1.msra.mxu0 0.0
        %1095 = vmatprep.mubr.f32.mxu0 0.0
        %1096 = vmatmul.mubr.f32.gmra.mrb[0].mxu0 %v325
        %v1097 = vpop.f32.mrb[0].mxu0
        %v1098 = vadd.f32 %v289, %v1097
        %v1099 = vpop.f32.mrb[0].mxu0
        %v1100 = vadd.f32 %v289, %v1099
        %1101 = vdwg.mxu0
        %1102 = vmatprep.subr.mxu0 %v370
        %1103 = vmatpush1.msra.mxu0 %v368
        %1104 = vmatprep.subr.mxu0 0.0
        %1105 = vmatpush1.msra.mxu0 0.0
        %1106 = vmatprep.subr.mxu0 0.0
        %1107 = vmatpush1.msra.mxu0 0.0
        %1108 = vmatprep.subr.mxu0 0.0
        %1109 = vmatpush1.msra.mxu0 0.0
        %1110 = vmatprep.subr.mxu0 0.0
        %1111 = vmatpush1.msra.mxu0 0.0
        %1112 = vmatprep.subr.mxu0 0.0
        %1113 = vmatpush1.msra.mxu0 0.0
        %1114 = vmatprep.subr.mxu0 0.0
        %1115 = vmatpush1.msra.mxu0 0.0
        %1116 = vmatprep.subr.mxu0 0.0
        %1117 = vmatpush1.msra.mxu0 0.0
        %1118 = vmatprep.subr.mxu0 0.0
        %1119 = vmatpush1.msra.mxu0 0.0
        %1120 = vmatprep.subr.mxu0 0.0
        %1121 = vmatpush1.msra.mxu0 0.0
        %1122 = vmatprep.subr.mxu0 0.0
        %1123 = vmatpush1.msra.mxu0 0.0
        %1124 = vmatprep.subr.mxu0 0.0
        %1125 = vmatpush1.msra.mxu0 0.0
        %1126 = vmatprep.subr.mxu0 0.0
        %1127 = vmatpush1.msra.mxu0 0.0
        %1128 = vmatprep.subr.mxu0 0.0
        %1129 = vmatpush1.msra.mxu0 0.0
        %1130 = vmatprep.subr.mxu0 0.0
        %1131 = vmatpush1.msra.mxu0 0.0
        %1132 = vmatprep.subr.mxu0 0.0
        %1133 = vmatpush1.msra.mxu0 0.0
        %1134 = vmatprep.subr.mxu0 0.0
        %1135 = vmatpush1.msra.mxu0 0.0
        %1136 = vmatprep.subr.mxu0 0.0
        %1137 = vmatpush1.msra.mxu0 0.0
        %1138 = vmatprep.subr.mxu0 0.0
        %1139 = vmatpush1.msra.mxu0 0.0
        %1140 = vmatprep.subr.mxu0 0.0
        %1141 = vmatpush1.msra.mxu0 0.0
        %1142 = vmatprep.subr.mxu0 0.0
        %1143 = vmatpush1.msra.mxu0 0.0
        %1144 = vmatprep.subr.mxu0 0.0
        %1145 = vmatpush1.msra.mxu0 0.0
        %1146 = vmatprep.subr.mxu0 0.0
        %1147 = vmatpush1.msra.mxu0 0.0
        %1148 = vmatprep.subr.mxu0 0.0
        %1149 = vmatpush1.msra.mxu0 0.0
        %1150 = vmatprep.subr.mxu0 0.0
        %1151 = vmatpush1.msra.mxu0 0.0
        %1152 = vmatprep.subr.mxu0 0.0
        %1153 = vmatpush1.msra.mxu0 0.0
        %1154 = vmatprep.subr.mxu0 0.0
        %1155 = vmatpush1.msra.mxu0 0.0
        %1156 = vmatprep.subr.mxu0 0.0
        %1157 = vmatpush1.msra.mxu0 0.0
        %1158 = vmatprep.subr.mxu0 0.0
        %1159 = vmatpush1.msra.mxu0 0.0
        %1160 = vmatprep.subr.mxu0 0.0
        %1161 = vmatpush1.msra.mxu0 0.0
        %1162 = vmatprep.subr.mxu0 0.0
        %1163 = vmatpush1.msra.mxu0 0.0
        %1164 = vmatprep.subr.mxu0 0.0
        %1165 = vmatpush1.msra.mxu0 0.0
        %1166 = vmatprep.mubr.f32.mxu0 0.0
        %1167 = vmatmul.mubr.f32.gmra.mrb[0].mxu0 %v325
        %v1168 = vpop.f32.mrb[0].mxu0
        %v1169 = vadd.f32 %v289, %v1168
        %v1170 = vpop.f32.mrb[0].mxu0
        %v1171 = vadd.f32 %v289, %v1170
        %1172 = vdwg.mxu0
        %1173 = vmatprep.subr.mxu0 %v374
        %1174 = vmatpush1.msra.mxu0 %v372
        %1175 = vmatprep.subr.mxu0 0.0
        %1176 = vmatpush1.msra.mxu0 0.0
        %1177 = vmatprep.subr.mxu0 0.0
        %1178 = vmatpush1.msra.mxu0 0.0
        %1179 = vmatprep.subr.mxu0 0.0
        %1180 = vmatpush1.msra.mxu0 0.0
        %1181 = vmatprep.subr.mxu0 0.0
        %1182 = vmatpush1.msra.mxu0 0.0
        %1183 = vmatprep.subr.mxu0 0.0
        %1184 = vmatpush1.msra.mxu0 0.0
        %1185 = vmatprep.subr.mxu0 0.0
        %1186 = vmatpush1.msra.mxu0 0.0
        %1187 = vmatprep.subr.mxu0 0.0
        %1188 = vmatpush1.msra.mxu0 0.0
        %1189 = vmatprep.subr.mxu0 0.0
        %1190 = vmatpush1.msra.mxu0 0.0
        %1191 = vmatprep.subr.mxu0 0.0
        %1192 = vmatpush1.msra.mxu0 0.0
        %1193 = vmatprep.subr.mxu0 0.0
        %1194 = vmatpush1.msra.mxu0 0.0
        %1195 = vmatprep.subr.mxu0 0.0
        %1196 = vmatpush1.msra.mxu0 0.0
        %1197 = vmatprep.subr.mxu0 0.0
        %1198 = vmatpush1.msra.mxu0 0.0
        %1199 = vmatprep.subr.mxu0 0.0
        %1200 = vmatpush1.msra.mxu0 0.0
        %1201 = vmatprep.subr.mxu0 0.0
        %1202 = vmatpush1.msra.mxu0 0.0
        %1203 = vmatprep.subr.mxu0 0.0
        %1204 = vmatpush1.msra.mxu0 0.0
        %1205 = vmatprep.subr.mxu0 0.0
        %1206 = vmatpush1.msra.mxu0 0.0
        %1207 = vmatprep.subr.mxu0 0.0
        %1208 = vmatpush1.msra.mxu0 0.0
        %1209 = vmatprep.subr.mxu0 0.0
        %1210 = vmatpush1.msra.mxu0 0.0
        %1211 = vmatprep.subr.mxu0 0.0
        %1212 = vmatpush1.msra.mxu0 0.0
        %1213 = vmatprep.subr.mxu0 0.0
        %1214 = vmatpush1.msra.mxu0 0.0
        %1215 = vmatprep.subr.mxu0 0.0
        %1216 = vmatpush1.msra.mxu0 0.0
        %1217 = vmatprep.subr.mxu0 0.0
        %1218 = vmatpush1.msra.mxu0 0.0
        %1219 = vmatprep.subr.mxu0 0.0
        %1220 = vmatpush1.msra.mxu0 0.0
        %1221 = vmatprep.subr.mxu0 0.0
        %1222 = vmatpush1.msra.mxu0 0.0
        %1223 = vmatprep.subr.mxu0 0.0
        %1224 = vmatpush1.msra.mxu0 0.0
        %1225 = vmatprep.subr.mxu0 0.0
        %1226 = vmatpush1.msra.mxu0 0.0
        %1227 = vmatprep.subr.mxu0 0.0
        %1228 = vmatpush1.msra.mxu0 0.0
        %1229 = vmatprep.subr.mxu0 0.0
        %1230 = vmatpush1.msra.mxu0 0.0
        %1231 = vmatprep.subr.mxu0 0.0
        %1232 = vmatpush1.msra.mxu0 0.0
        %1233 = vmatprep.subr.mxu0 0.0
        %1234 = vmatpush1.msra.mxu0 0.0
        %1235 = vmatprep.subr.mxu0 0.0
        %1236 = vmatpush1.msra.mxu0 0.0
        %1237 = vmatprep.mubr.f32.mxu0 0.0
        %1238 = vmatmul.mubr.f32.gmra.mrb[0].mxu0 %v325
        %v1239 = vpop.f32.mrb[0].mxu0
        %v1240 = vadd.f32 %v289, %v1239
        %v1241 = vpop.f32.mrb[0].mxu0
        %v1242 = vadd.f32 %v289, %v1241
        %1243 = vdwg.mxu0
        %1244 = vmatprep.subr.mxu0 %v378
        %1245 = vmatpush1.msra.mxu0 %v376
        %1246 = vmatprep.subr.mxu0 0.0
        %1247 = vmatpush1.msra.mxu0 0.0
        %1248 = vmatprep.subr.mxu0 0.0
        %1249 = vmatpush1.msra.mxu0 0.0
        %1250 = vmatprep.subr.mxu0 0.0
        %1251 = vmatpush1.msra.mxu0 0.0
        %1252 = vmatprep.subr.mxu0 0.0
        %1253 = vmatpush1.msra.mxu0 0.0
        %1254 = vmatprep.subr.mxu0 0.0
        %1255 = vmatpush1.msra.mxu0 0.0
        %1256 = vmatprep.subr.mxu0 0.0
        %1257 = vmatpush1.msra.mxu0 0.0
        %1258 = vmatprep.subr.mxu0 0.0
        %1259 = vmatpush1.msra.mxu0 0.0
        %1260 = vmatprep.subr.mxu0 0.0
        %1261 = vmatpush1.msra.mxu0 0.0
        %1262 = vmatprep.subr.mxu0 0.0
        %1263 = vmatpush1.msra.mxu0 0.0
        %1264 = vmatprep.subr.mxu0 0.0
        %1265 = vmatpush1.msra.mxu0 0.0
        %1266 = vmatprep.subr.mxu0 0.0
        %1267 = vmatpush1.msra.mxu0 0.0
        %1268 = vmatprep.subr.mxu0 0.0
        %1269 = vmatpush1.msra.mxu0 0.0
        %1270 = vmatprep.subr.mxu0 0.0
        %1271 = vmatpush1.msra.mxu0 0.0
        %1272 = vmatprep.subr.mxu0 0.0
        %1273 = vmatpush1.msra.mxu0 0.0
        %1274 = vmatprep.subr.mxu0 0.0
        %1275 = vmatpush1.msra.mxu0 0.0
        %1276 = vmatprep.subr.mxu0 0.0
        %1277 = vmatpush1.msra.mxu0 0.0
        %1278 = vmatprep.subr.mxu0 0.0
        %1279 = vmatpush1.msra.mxu0 0.0
        %1280 = vmatprep.subr.mxu0 0.0
        %1281 = vmatpush1.msra.mxu0 0.0
        %1282 = vmatprep.subr.mxu0 0.0
        %1283 = vmatpush1.msra.mxu0 0.0
        %1284 = vmatprep.subr.mxu0 0.0
        %1285 = vmatpush1.msra.mxu0 0.0
        %1286 = vmatprep.subr.mxu0 0.0
        %1287 = vmatpush1.msra.mxu0 0.0
        %1288 = vmatprep.subr.mxu0 0.0
        %1289 = vmatpush1.msra.mxu0 0.0
        %1290 = vmatprep.subr.mxu0 0.0
        %1291 = vmatpush1.msra.mxu0 0.0
        %1292 = vmatprep.subr.mxu0 0.0
        %1293 = vmatpush1.msra.mxu0 0.0
        %1294 = vmatprep.subr.mxu0 0.0
        %1295 = vmatpush1.msra.mxu0 0.0
        %1296 = vmatprep.subr.mxu0 0.0
        %1297 = vmatpush1.msra.mxu0 0.0
        %1298 = vmatprep.subr.mxu0 0.0
        %1299 = vmatpush1.msra.mxu0 0.0
        %1300 = vmatprep.subr.mxu0 0.0
        %1301 = vmatpush1.msra.mxu0 0.0
        %1302 = vmatprep.subr.mxu0 0.0
        %1303 = vmatpush1.msra.mxu0 0.0
        %1304 = vmatprep.subr.mxu0 0.0
        %1305 = vmatpush1.msra.mxu0 0.0
        %1306 = vmatprep.subr.mxu0 0.0
        %1307 = vmatpush1.msra.mxu0 0.0
        %1308 = vmatprep.mubr.f32.mxu0 0.0
        %1309 = vmatmul.mubr.f32.gmra.mrb[0].mxu0 %v325
        %v1310 = vpop.f32.mrb[0].mxu0
        %v1311 = vadd.f32 %v289, %v1310
        %v1312 = vpop.f32.mrb[0].mxu0
        %v1313 = vadd.f32 %v289, %v1312
        %1314 = vdwg.mxu0
        %1315 = vmatprep.subr.mxu0 %v382
        %1316 = vmatpush1.msra.mxu0 %v380
        %1317 = vmatprep.subr.mxu0 0.0
        %1318 = vmatpush1.msra.mxu0 0.0
        %1319 = vmatprep.subr.mxu0 0.0
        %1320 = vmatpush1.msra.mxu0 0.0
        %1321 = vmatprep.subr.mxu0 0.0
        %1322 = vmatpush1.msra.mxu0 0.0
        %1323 = vmatprep.subr.mxu0 0.0
        %1324 = vmatpush1.msra.mxu0 0.0
        %1325 = vmatprep.subr.mxu0 0.0
        %1326 = vmatpush1.msra.mxu0 0.0
        %1327 = vmatprep.subr.mxu0 0.0
        %1328 = vmatpush1.msra.mxu0 0.0
        %1329 = vmatprep.subr.mxu0 0.0
        %1330 = vmatpush1.msra.mxu0 0.0
        %1331 = vmatprep.subr.mxu0 0.0
        %1332 = vmatpush1.msra.mxu0 0.0
        %1333 = vmatprep.subr.mxu0 0.0
        %1334 = vmatpush1.msra.mxu0 0.0
        %1335 = vmatprep.subr.mxu0 0.0
        %1336 = vmatpush1.msra.mxu0 0.0
        %1337 = vmatprep.subr.mxu0 0.0
        %1338 = vmatpush1.msra.mxu0 0.0
        %1339 = vmatprep.subr.mxu0 0.0
        %1340 = vmatpush1.msra.mxu0 0.0
        %1341 = vmatprep.subr.mxu0 0.0
        %1342 = vmatpush1.msra.mxu0 0.0
        %1343 = vmatprep.subr.mxu0 0.0
        %1344 = vmatpush1.msra.mxu0 0.0
        %1345 = vmatprep.subr.mxu0 0.0
        %1346 = vmatpush1.msra.mxu0 0.0
        %1347 = vmatprep.subr.mxu0 0.0
        %1348 = vmatpush1.msra.mxu0 0.0
        %1349 = vmatprep.subr.mxu0 0.0
        %1350 = vmatpush1.msra.mxu0 0.0
        %1351 = vmatprep.subr.mxu0 0.0
        %1352 = vmatpush1.msra.mxu0 0.0
        %1353 = vmatprep.subr.mxu0 0.0
        %1354 = vmatpush1.msra.mxu0 0.0
        %1355 = vmatprep.subr.mxu0 0.0
        %1356 = vmatpush1.msra.mxu0 0.0
        %1357 = vmatprep.subr.mxu0 0.0
        %1358 = vmatpush1.msra.mxu0 0.0
        %1359 = vmatprep.subr.mxu0 0.0
        %1360 = vmatpush1.msra.mxu0 0.0
        %1361 = vmatprep.subr.mxu0 0.0
        %1362 = vmatpush1.msra.mxu0 0.0
        %1363 = vmatprep.subr.mxu0 0.0
        %1364 = vmatpush1.msra.mxu0 0.0
        %1365 = vmatprep.subr.mxu0 0.0
        %1366 = vmatpush1.msra.mxu0 0.0
        %1367 = vmatprep.subr.mxu0 0.0
        %1368 = vmatpush1.msra.mxu0 0.0
        %1369 = vmatprep.subr.mxu0 0.0
        %1370 = vmatpush1.msra.mxu0 0.0
        %1371 = vmatprep.subr.mxu0 0.0
        %1372 = vmatpush1.msra.mxu0 0.0
        %1373 = vmatprep.subr.mxu0 0.0
        %1374 = vmatpush1.msra.mxu0 0.0
        %1375 = vmatprep.subr.mxu0 0.0
        %1376 = vmatpush1.msra.mxu0 0.0
        %1377 = vmatprep.subr.mxu0 0.0
        %1378 = vmatpush1.msra.mxu0 0.0
        %1379 = vmatprep.mubr.f32.mxu0 0.0
        %1380 = vmatmul.mubr.f32.gmra.mrb[0].mxu0 %v325
        %v1381 = vpop.f32.mrb[0].mxu0
        %v1382 = vadd.f32 %v289, %v1381
        %v1383 = vpop.f32.mrb[0].mxu0
        %v1384 = vadd.f32 %v289, %v1383
        %1385 = vdwg.mxu0
        %1386 = vmatprep.subr.mxu0 %v386
        %1387 = vmatpush1.msra.mxu0 %v384
        %1388 = vmatprep.subr.mxu0 0.0
        %1389 = vmatpush1.msra.mxu0 0.0
        %1390 = vmatprep.subr.mxu0 0.0
        %1391 = vmatpush1.msra.mxu0 0.0
        %1392 = vmatprep.subr.mxu0 0.0
        %1393 = vmatpush1.msra.mxu0 0.0
        %1394 = vmatprep.subr.mxu0 0.0
        %1395 = vmatpush1.msra.mxu0 0.0
        %1396 = vmatprep.subr.mxu0 0.0
        %1397 = vmatpush1.msra.mxu0 0.0
        %1398 = vmatprep.subr.mxu0 0.0
        %1399 = vmatpush1.msra.mxu0 0.0
        %1400 = vmatprep.subr.mxu0 0.0
        %1401 = vmatpush1.msra.mxu0 0.0
        %1402 = vmatprep.subr.mxu0 0.0
        %1403 = vmatpush1.msra.mxu0 0.0
        %1404 = vmatprep.subr.mxu0 0.0
        %1405 = vmatpush1.msra.mxu0 0.0
        %1406 = vmatprep.subr.mxu0 0.0
        %1407 = vmatpush1.msra.mxu0 0.0
        %1408 = vmatprep.subr.mxu0 0.0
        %1409 = vmatpush1.msra.mxu0 0.0
        %1410 = vmatprep.subr.mxu0 0.0
        %1411 = vmatpush1.msra.mxu0 0.0
        %1412 = vmatprep.subr.mxu0 0.0
        %1413 = vmatpush1.msra.mxu0 0.0
        %1414 = vmatprep.subr.mxu0 0.0
        %1415 = vmatpush1.msra.mxu0 0.0
        %1416 = vmatprep.subr.mxu0 0.0
        %1417 = vmatpush1.msra.mxu0 0.0
        %1418 = vmatprep.subr.mxu0 0.0
        %1419 = vmatpush1.msra.mxu0 0.0
        %1420 = vmatprep.subr.mxu0 0.0
        %1421 = vmatpush1.msra.mxu0 0.0
        %1422 = vmatprep.subr.mxu0 0.0
        %1423 = vmatpush1.msra.mxu0 0.0
        %1424 = vmatprep.subr.mxu0 0.0
        %1425 = vmatpush1.msra.mxu0 0.0
        %1426 = vmatprep.subr.mxu0 0.0
        %1427 = vmatpush1.msra.mxu0 0.0
        %1428 = vmatprep.subr.mxu0 0.0
        %1429 = vmatpush1.msra.mxu0 0.0
        %1430 = vmatprep.subr.mxu0 0.0
        %1431 = vmatpush1.msra.mxu0 0.0
        %1432 = vmatprep.subr.mxu0 0.0
        %1433 = vmatpush1.msra.mxu0 0.0
        %1434 = vmatprep.subr.mxu0 0.0
        %1435 = vmatpush1.msra.mxu0 0.0
        %1436 = vmatprep.subr.mxu0 0.0
        %1437 = vmatpush1.msra.mxu0 0.0
        %1438 = vmatprep.subr.mxu0 0.0
        %1439 = vmatpush1.msra.mxu0 0.0
        %1440 = vmatprep.subr.mxu0 0.0
        %1441 = vmatpush1.msra.mxu0 0.0
        %1442 = vmatprep.subr.mxu0 0.0
        %1443 = vmatpush1.msra.mxu0 0.0
        %1444 = vmatprep.subr.mxu0 0.0
        %1445 = vmatpush1.msra.mxu0 0.0
        %1446 = vmatprep.subr.mxu0 0.0
        %1447 = vmatpush1.msra.mxu0 0.0
        %1448 = vmatprep.subr.mxu0 0.0
        %1449 = vmatpush1.msra.mxu0 0.0
        %1450 = vmatprep.mubr.f32.mxu0 0.0
        %1451 = vmatmul.mubr.f32.gmra.mrb[0].mxu0 %v325
        %v1452 = vpop.f32.mrb[0].mxu0
        %v1453 = vadd.f32 %v289, %v1452
        %v1454 = vpop.f32.mrb[0].mxu0
        %v1455 = vadd.f32 %v289, %v1454
        %1456 = vdwg.mxu0
        %1457 = vmatprep.subr.mxu0 %v390
        %1458 = vmatpush1.msra.mxu0 %v388
        %1459 = vmatprep.subr.mxu0 0.0
        %1460 = vmatpush1.msra.mxu0 0.0
        %1461 = vmatprep.subr.mxu0 0.0
        %1462 = vmatpush1.msra.mxu0 0.0
        %1463 = vmatprep.subr.mxu0 0.0
        %1464 = vmatpush1.msra.mxu0 0.0
        %1465 = vmatprep.subr.mxu0 0.0
        %1466 = vmatpush1.msra.mxu0 0.0
        %1467 = vmatprep.subr.mxu0 0.0
        %1468 = vmatpush1.msra.mxu0 0.0
        %1469 = vmatprep.subr.mxu0 0.0
        %1470 = vmatpush1.msra.mxu0 0.0
        %1471 = vmatprep.subr.mxu0 0.0
        %1472 = vmatpush1.msra.mxu0 0.0
        %1473 = vmatprep.subr.mxu0 0.0
        %1474 = vmatpush1.msra.mxu0 0.0
        %1475 = vmatprep.subr.mxu0 0.0
        %1476 = vmatpush1.msra.mxu0 0.0
        %1477 = vmatprep.subr.mxu0 0.0
        %1478 = vmatpush1.msra.mxu0 0.0
        %1479 = vmatprep.subr.mxu0 0.0
        %1480 = vmatpush1.msra.mxu0 0.0
        %1481 = vmatprep.subr.mxu0 0.0
        %1482 = vmatpush1.msra.mxu0 0.0
        %1483 = vmatprep.subr.mxu0 0.0
        %1484 = vmatpush1.msra.mxu0 0.0
        %1485 = vmatprep.subr.mxu0 0.0
        %1486 = vmatpush1.msra.mxu0 0.0
        %1487 = vmatprep.subr.mxu0 0.0
        %1488 = vmatpush1.msra.mxu0 0.0
        %1489 = vmatprep.subr.mxu0 0.0
        %1490 = vmatpush1.msra.mxu0 0.0
        %1491 = vmatprep.subr.mxu0 0.0
        %1492 = vmatpush1.msra.mxu0 0.0
        %1493 = vmatprep.subr.mxu0 0.0
        %1494 = vmatpush1.msra.mxu0 0.0
        %1495 = vmatprep.subr.mxu0 0.0
        %1496 = vmatpush1.msra.mxu0 0.0
        %1497 = vmatprep.subr.mxu0 0.0
        %1498 = vmatpush1.msra.mxu0 0.0
        %1499 = vmatprep.subr.mxu0 0.0
        %1500 = vmatpush1.msra.mxu0 0.0
        %1501 = vmatprep.subr.mxu0 0.0
        %1502 = vmatpush1.msra.mxu0 0.0
        %1503 = vmatprep.subr.mxu0 0.0
        %1504 = vmatpush1.msra.mxu0 0.0
        %1505 = vmatprep.subr.mxu0 0.0
        %1506 = vmatpush1.msra.mxu0 0.0
        %1507 = vmatprep.subr.mxu0 0.0
        %1508 = vmatpush1.msra.mxu0 0.0
        %1509 = vmatprep.subr.mxu0 0.0
        %1510 = vmatpush1.msra.mxu0 0.0
        %1511 = vmatprep.subr.mxu0 0.0
        %1512 = vmatpush1.msra.mxu0 0.0
        %1513 = vmatprep.subr.mxu0 0.0
        %1514 = vmatpush1.msra.mxu0 0.0
        %1515 = vmatprep.subr.mxu0 0.0
        %1516 = vmatpush1.msra.mxu0 0.0
        %1517 = vmatprep.subr.mxu0 0.0
        %1518 = vmatpush1.msra.mxu0 0.0
        %1519 = vmatprep.subr.mxu0 0.0
        %1520 = vmatpush1.msra.mxu0 0.0
        %1521 = vmatprep.mubr.f32.mxu0 0.0
        %1522 = vmatmul.mubr.f32.gmra.mrb[0].mxu0 %v325
        %v1523 = vpop.f32.mrb[0].mxu0
        %v1524 = vadd.f32 %v289, %v1523
        %v1525 = vpop.f32.mrb[0].mxu0
        %v1526 = vadd.f32 %v289, %v1525
        %1527 = vdwg.mxu0
        %vm1528 = vcmask 1046528
        %v1529 = vsel %vm1528, %v459, -inf
        %v1530 = vrot.slane %v1529, 4
        %v1531 = vmax.f32 %v1529, %v1530
        %v1532 = vrot.slane %v1531, 2
        %v1533 = vmax.f32 %v1531, %v1532
        %v1534 = vrot.slane %v1533, 1
        %v1535 = vmax.f32 %v1533, %v1534
        %v1536 = vsel %vm1528, %v461, -inf
        %v1537 = vrot.slane %v1536, 4
        %v1538 = vmax.f32 %v1536, %v1537
        %v1539 = vrot.slane %v1538, 2
        %v1540 = vmax.f32 %v1538, %v1539
        %v1541 = vrot.slane %v1540, 1
        %v1542 = vmax.f32 %v1540, %v1541
        %v1543 = vsel %vm1528, %v530, -inf
        %v1544 = vrot.slane %v1543, 4
        %v1545 = vmax.f32 %v1543, %v1544
        %v1546 = vrot.slane %v1545, 2
        %v1547 = vmax.f32 %v1545, %v1546
        %v1548 = vrot.slane %v1547, 1
        %v1549 = vmax.f32 %v1547, %v1548
        %v1550 = vsel %vm1528, %v532, -inf
        %v1551 = vrot.slane %v1550, 4
        %v1552 = vmax.f32 %v1550, %v1551
        %v1553 = vrot.slane %v1552, 2
        %v1554 = vmax.f32 %v1552, %v1553
        %v1555 = vrot.slane %v1554, 1
        %v1556 = vmax.f32 %v1554, %v1555
        %v1557 = vsel %vm1528, %v601, -inf
        %v1558 = vrot.slane %v1557, 4
        %v1559 = vmax.f32 %v1557, %v1558
        %v1560 = vrot.slane %v1559, 2
        %v1561 = vmax.f32 %v1559, %v1560
        %v1562 = vrot.slane %v1561, 1
        %v1563 = vmax.f32 %v1561, %v1562
        %v1564 = vsel %vm1528, %v603, -inf
        %v1565 = vrot.slane %v1564, 4
        %v1566 = vmax.f32 %v1564, %v1565
        %v1567 = vrot.slane %v1566, 2
        %v1568 = vmax.f32 %v1566, %v1567
        %v1569 = vrot.slane %v1568, 1
        %v1570 = vmax.f32 %v1568, %v1569
        %v1571 = vsel %vm1528, %v672, -inf
        %v1572 = vrot.slane %v1571, 4
        %v1573 = vmax.f32 %v1571, %v1572
        %v1574 = vrot.slane %v1573, 2
        %v1575 = vmax.f32 %v1573, %v1574
        %v1576 = vrot.slane %v1575, 1
        %v1577 = vmax.f32 %v1575, %v1576
        %v1578 = vsel %vm1528, %v674, -inf
        %v1579 = vrot.slane %v1578, 4
        %v1580 = vmax.f32 %v1578, %v1579
        %v1581 = vrot.slane %v1580, 2
        %v1582 = vmax.f32 %v1580, %v1581
        %v1583 = vrot.slane %v1582, 1
        %v1584 = vmax.f32 %v1582, %v1583
        %v1585 = vsel %vm1528, %v743, -inf
        %v1586 = vrot.slane %v1585, 4
        %v1587 = vmax.f32 %v1585, %v1586
        %v1588 = vrot.slane %v1587, 2
        %v1589 = vmax.f32 %v1587, %v1588
        %v1590 = vrot.slane %v1589, 1
        %v1591 = vmax.f32 %v1589, %v1590
        %v1592 = vsel %vm1528, %v745, -inf
        %v1593 = vrot.slane %v1592, 4
        %v1594 = vmax.f32 %v1592, %v1593
        %v1595 = vrot.slane %v1594, 2
        %v1596 = vmax.f32 %v1594, %v1595
        %v1597 = vrot.slane %v1596, 1
        %v1598 = vmax.f32 %v1596, %v1597
        %v1599 = vsel %vm1528, %v814, -inf
        %v1600 = vrot.slane %v1599, 4
        %v1601 = vmax.f32 %v1599, %v1600
        %v1602 = vrot.slane %v1601, 2
        %v1603 = vmax.f32 %v1601, %v1602
        %v1604 = vrot.slane %v1603, 1
        %v1605 = vmax.f32 %v1603, %v1604
        %v1606 = vsel %vm1528, %v816, -inf
        %v1607 = vrot.slane %v1606, 4
        %v1608 = vmax.f32 %v1606, %v1607
        %v1609 = vrot.slane %v1608, 2
        %v1610 = vmax.f32 %v1608, %v1609
        %v1611 = vrot.slane %v1610, 1
        %v1612 = vmax.f32 %v1610, %v1611
        %v1613 = vsel %vm1528, %v885, -inf
        %v1614 = vrot.slane %v1613, 4
        %v1615 = vmax.f32 %v1613, %v1614
        %v1616 = vrot.slane %v1615, 2
        %v1617 = vmax.f32 %v1615, %v1616
        %v1618 = vrot.slane %v1617, 1
        %v1619 = vmax.f32 %v1617, %v1618
        %v1620 = vsel %vm1528, %v887, -inf
        %v1621 = vrot.slane %v1620, 4
        %v1622 = vmax.f32 %v1620, %v1621
        %v1623 = vrot.slane %v1622, 2
        %v1624 = vmax.f32 %v1622, %v1623
        %v1625 = vrot.slane %v1624, 1
        %v1626 = vmax.f32 %v1624, %v1625
        %v1627 = vsel %vm1528, %v956, -inf
        %v1628 = vrot.slane %v1627, 4
        %v1629 = vmax.f32 %v1627, %v1628
        %v1630 = vrot.slane %v1629, 2
        %v1631 = vmax.f32 %v1629, %v1630
        %v1632 = vrot.slane %v1631, 1
        %v1633 = vmax.f32 %v1631, %v1632
        %v1634 = vsel %vm1528, %v958, -inf
        %v1635 = vrot.slane %v1634, 4
        %v1636 = vmax.f32 %v1634, %v1635
        %v1637 = vrot.slane %v1636, 2
        %v1638 = vmax.f32 %v1636, %v1637
        %v1639 = vrot.slane %v1638, 1
        %v1640 = vmax.f32 %v1638, %v1639
        %v1641 = vsel %vm1528, %v1027, -inf
        %v1642 = vrot.slane %v1641, 4
        %v1643 = vmax.f32 %v1641, %v1642
        %v1644 = vrot.slane %v1643, 2
        %v1645 = vmax.f32 %v1643, %v1644
        %v1646 = vrot.slane %v1645, 1
        %v1647 = vmax.f32 %v1645, %v1646
        %v1648 = vsel %vm1528, %v1029, -inf
        %v1649 = vrot.slane %v1648, 4
        %v1650 = vmax.f32 %v1648, %v1649
        %v1651 = vrot.slane %v1650, 2
        %v1652 = vmax.f32 %v1650, %v1651
        %v1653 = vrot.slane %v1652, 1
        %v1654 = vmax.f32 %v1652, %v1653
        %v1655 = vsel %vm1528, %v1098, -inf
        %v1656 = vrot.slane %v1655, 4
        %v1657 = vmax.f32 %v1655, %v1656
        %v1658 = vrot.slane %v1657, 2
        %v1659 = vmax.f32 %v1657, %v1658
        %v1660 = vrot.slane %v1659, 1
        %v1661 = vmax.f32 %v1659, %v1660
        %v1662 = vsel %vm1528, %v1100, -inf
        %v1663 = vrot.slane %v1662, 4
        %v1664 = vmax.f32 %v1662, %v1663
        %v1665 = vrot.slane %v1664, 2
        %v1666 = vmax.f32 %v1664, %v1665
        %v1667 = vrot.slane %v1666, 1
        %v1668 = vmax.f32 %v1666, %v1667
        %v1669 = vsel %vm1528, %v1169, -inf
        %v1670 = vrot.slane %v1669, 4
        %v1671 = vmax.f32 %v1669, %v1670
        %v1672 = vrot.slane %v1671, 2
        %v1673 = vmax.f32 %v1671, %v1672
        %v1674 = vrot.slane %v1673, 1
        %v1675 = vmax.f32 %v1673, %v1674
        %v1676 = vsel %vm1528, %v1171, -inf
        %v1677 = vrot.slane %v1676, 4
        %v1678 = vmax.f32 %v1676, %v1677
        %v1679 = vrot.slane %v1678, 2
        %v1680 = vmax.f32 %v1678, %v1679
        %v1681 = vrot.slane %v1680, 1
        %v1682 = vmax.f32 %v1680, %v1681
        %v1683 = vsel %vm1528, %v1240, -inf
        %v1684 = vrot.slane %v1683, 4
        %v1685 = vmax.f32 %v1683, %v1684
        %v1686 = vrot.slane %v1685, 2
        %v1687 = vmax.f32 %v1685, %v1686
        %v1688 = vrot.slane %v1687, 1
        %v1689 = vmax.f32 %v1687, %v1688
        %v1690 = vsel %vm1528, %v1242, -inf
        %v1691 = vrot.slane %v1690, 4
        %v1692 = vmax.f32 %v1690, %v1691
        %v1693 = vrot.slane %v1692, 2
        %v1694 = vmax.f32 %v1692, %v1693
        %v1695 = vrot.slane %v1694, 1
        %v1696 = vmax.f32 %v1694, %v1695
        %v1697 = vsel %vm1528, %v1311, -inf
        %v1698 = vrot.slane %v1697, 4
        %v1699 = vmax.f32 %v1697, %v1698
        %v1700 = vrot.slane %v1699, 2
        %v1701 = vmax.f32 %v1699, %v1700
        %v1702 = vrot.slane %v1701, 1
        %v1703 = vmax.f32 %v1701, %v1702
        %v1704 = vsel %vm1528, %v1313, -inf
        %v1705 = vrot.slane %v1704, 4
        %v1706 = vmax.f32 %v1704, %v1705
        %v1707 = vrot.slane %v1706, 2
        %v1708 = vmax.f32 %v1706, %v1707
        %v1709 = vrot.slane %v1708, 1
        %v1710 = vmax.f32 %v1708, %v1709
        %v1711 = vsel %vm1528, %v1382, -inf
        %v1712 = vrot.slane %v1711, 4
        %v1713 = vmax.f32 %v1711, %v1712
        %v1714 = vrot.slane %v1713, 2
        %v1715 = vmax.f32 %v1713, %v1714
        %v1716 = vrot.slane %v1715, 1
        %v1717 = vmax.f32 %v1715, %v1716
        %v1718 = vsel %vm1528, %v1384, -inf
        %v1719 = vrot.slane %v1718, 4
        %v1720 = vmax.f32 %v1718, %v1719
        %v1721 = vrot.slane %v1720, 2
        %v1722 = vmax.f32 %v1720, %v1721
        %v1723 = vrot.slane %v1722, 1
        %v1724 = vmax.f32 %v1722, %v1723
        %v1725 = vsel %vm1528, %v1453, -inf
        %v1726 = vrot.slane %v1725, 4
        %v1727 = vmax.f32 %v1725, %v1726
        %v1728 = vrot.slane %v1727, 2
        %v1729 = vmax.f32 %v1727, %v1728
        %v1730 = vrot.slane %v1729, 1
        %v1731 = vmax.f32 %v1729, %v1730
        %v1732 = vsel %vm1528, %v1455, -inf
        %v1733 = vrot.slane %v1732, 4
        %v1734 = vmax.f32 %v1732, %v1733
        %v1735 = vrot.slane %v1734, 2
        %v1736 = vmax.f32 %v1734, %v1735
        %v1737 = vrot.slane %v1736, 1
        %v1738 = vmax.f32 %v1736, %v1737
        %v1739 = vsel %vm1528, %v1524, -inf
        %v1740 = vrot.slane %v1739, 4
        %v1741 = vmax.f32 %v1739, %v1740
        %v1742 = vrot.slane %v1741, 2
        %v1743 = vmax.f32 %v1741, %v1742
        %v1744 = vrot.slane %v1743, 1
        %v1745 = vmax.f32 %v1743, %v1744
        %v1746 = vsel %vm1528, %v1526, -inf
        %v1747 = vrot.slane %v1746, 4
        %v1748 = vmax.f32 %v1746, %v1747
        %v1749 = vrot.slane %v1748, 2
        %v1750 = vmax.f32 %v1748, %v1749
        %v1751 = vrot.slane %v1750, 1
        %v1752 = vmax.f32 %v1750, %v1751
        %v1753 = vsub.f32 %v459, %v1535
        %v1754 = vsub.f32 %v461, %v1542
        %v1755 = vsub.f32 %v530, %v1549
        %v1756 = vsub.f32 %v532, %v1556
        %v1757 = vsub.f32 %v601, %v1563
        %v1758 = vsub.f32 %v603, %v1570
        %v1759 = vsub.f32 %v672, %v1577
        %v1760 = vsub.f32 %v674, %v1584
        %v1761 = vsub.f32 %v743, %v1591
        %v1762 = vsub.f32 %v745, %v1598
        %v1763 = vsub.f32 %v814, %v1605
        %v1764 = vsub.f32 %v816, %v1612
        %v1765 = vsub.f32 %v885, %v1619
        %v1766 = vsub.f32 %v887, %v1626
        %v1767 = vsub.f32 %v956, %v1633
        %v1768 = vsub.f32 %v958, %v1640
        %v1769 = vsub.f32 %v1027, %v1647
        %v1770 = vsub.f32 %v1029, %v1654
        %v1771 = vsub.f32 %v1098, %v1661
        %v1772 = vsub.f32 %v1100, %v1668
        %v1773 = vsub.f32 %v1169, %v1675
        %v1774 = vsub.f32 %v1171, %v1682
        %v1775 = vsub.f32 %v1240, %v1689
        %v1776 = vsub.f32 %v1242, %v1696
        %v1777 = vsub.f32 %v1311, %v1703
        %v1778 = vsub.f32 %v1313, %v1710
        %v1779 = vsub.f32 %v1382, %v1717
        %v1780 = vsub.f32 %v1384, %v1724
        %v1781 = vsub.f32 %v1453, %v1731
        %v1782 = vsub.f32 %v1455, %v1738
        %v1783 = vsub.f32 %v1524, %v1745
        %v1784 = vsub.f32 %v1526, %v1752
        %v1785 = vmul.f32 %v1753, 1.442695
        %v1786 = vpow.pop %v1785
        %v1787 = vmul.f32 %v1754, 1.442695
        %v1788 = vpow.pop %v1787
        %v1789 = vmul.f32 %v1755, 1.442695
        %v1790 = vpow.pop %v1789
        %v1791 = vmul.f32 %v1756, 1.442695
        %v1792 = vpow.pop %v1791
        %v1793 = vmul.f32 %v1757, 1.442695
        %v1794 = vpow.pop %v1793
        %v1795 = vmul.f32 %v1758, 1.442695
        %v1796 = vpow.pop %v1795
        %v1797 = vmul.f32 %v1759, 1.442695
        %v1798 = vpow.pop %v1797
        %v1799 = vmul.f32 %v1760, 1.442695
        %v1800 = vpow.pop %v1799
        %v1801 = vmul.f32 %v1761, 1.442695
        %v1802 = vpow.pop %v1801
        %v1803 = vmul.f32 %v1762, 1.442695
        %v1804 = vpow.pop %v1803
        %v1805 = vmul.f32 %v1763, 1.442695
        %v1806 = vpow.pop %v1805
        %v1807 = vmul.f32 %v1764, 1.442695
        %v1808 = vpow.pop %v1807
        %v1809 = vmul.f32 %v1765, 1.442695
        %v1810 = vpow.pop %v1809
        %v1811 = vmul.f32 %v1766, 1.442695
        %v1812 = vpow.pop %v1811
        %v1813 = vmul.f32 %v1767, 1.442695
        %v1814 = vpow.pop %v1813
        %v1815 = vmul.f32 %v1768, 1.442695
        %v1816 = vpow.pop %v1815
        %v1817 = vmul.f32 %v1769, 1.442695
        %v1818 = vpow.pop %v1817
        %v1819 = vmul.f32 %v1770, 1.442695
        %v1820 = vpow.pop %v1819
        %v1821 = vmul.f32 %v1771, 1.442695
        %v1822 = vpow.pop %v1821
        %v1823 = vmul.f32 %v1772, 1.442695
        %v1824 = vpow.pop %v1823
        %v1825 = vmul.f32 %v1773, 1.442695
        %v1826 = vpow.pop %v1825
        %v1827 = vmul.f32 %v1774, 1.442695
        %v1828 = vpow.pop %v1827
        %v1829 = vmul.f32 %v1775, 1.442695
        %v1830 = vpow.pop %v1829
        %v1831 = vmul.f32 %v1776, 1.442695
        %v1832 = vpow.pop %v1831
        %v1833 = vmul.f32 %v1777, 1.442695
        %v1834 = vpow.pop %v1833
        %v1835 = vmul.f32 %v1778, 1.442695
        %v1836 = vpow.pop %v1835
        %v1837 = vmul.f32 %v1779, 1.442695
        %v1838 = vpow.pop %v1837
        %v1839 = vmul.f32 %v1780, 1.442695
        %v1840 = vpow.pop %v1839
        %v1841 = vmul.f32 %v1781, 1.442695
        %v1842 = vpow.pop %v1841
        %v1843 = vmul.f32 %v1782, 1.442695
        %v1844 = vpow.pop %v1843
        %v1845 = vmul.f32 %v1783, 1.442695
        %v1846 = vpow.pop %v1845
        %v1847 = vmul.f32 %v1784, 1.442695
        %v1848 = vpow.pop %v1847
        %v1849 = vsel %vm1528, %v1786, 0.0
        %v1850 = vrot.slane %v1849, 4
        %v1851 = vadd.f32 %v1849, %v1850
        %v1852 = vrot.slane %v1851, 2
        %v1853 = vadd.f32 %v1851, %v1852
        %v1854 = vrot.slane %v1853, 1
        %v1855 = vadd.f32 %v1853, %v1854
        %v1856 = vsel %vm1528, %v1788, 0.0
        %v1857 = vrot.slane %v1856, 4
        %v1858 = vadd.f32 %v1856, %v1857
        %v1859 = vrot.slane %v1858, 2
        %v1860 = vadd.f32 %v1858, %v1859
        %v1861 = vrot.slane %v1860, 1
        %v1862 = vadd.f32 %v1860, %v1861
        %v1863 = vsel %vm1528, %v1790, 0.0
        %v1864 = vrot.slane %v1863, 4
        %v1865 = vadd.f32 %v1863, %v1864
        %v1866 = vrot.slane %v1865, 2
        %v1867 = vadd.f32 %v1865, %v1866
        %v1868 = vrot.slane %v1867, 1
        %v1869 = vadd.f32 %v1867, %v1868
        %v1870 = vsel %vm1528, %v1792, 0.0
        %v1871 = vrot.slane %v1870, 4
        %v1872 = vadd.f32 %v1870, %v1871
        %v1873 = vrot.slane %v1872, 2
        %v1874 = vadd.f32 %v1872, %v1873
        %v1875 = vrot.slane %v1874, 1
        %v1876 = vadd.f32 %v1874, %v1875
        %v1877 = vsel %vm1528, %v1794, 0.0
        %v1878 = vrot.slane %v1877, 4
        %v1879 = vadd.f32 %v1877, %v1878
        %v1880 = vrot.slane %v1879, 2
        %v1881 = vadd.f32 %v1879, %v1880
        %v1882 = vrot.slane %v1881, 1
        %v1883 = vadd.f32 %v1881, %v1882
        %v1884 = vsel %vm1528, %v1796, 0.0
        %v1885 = vrot.slane %v1884, 4
        %v1886 = vadd.f32 %v1884, %v1885
        %v1887 = vrot.slane %v1886, 2
        %v1888 = vadd.f32 %v1886, %v1887
        %v1889 = vrot.slane %v1888, 1
        %v1890 = vadd.f32 %v1888, %v1889
        %v1891 = vsel %vm1528, %v1798, 0.0
        %v1892 = vrot.slane %v1891, 4
        %v1893 = vadd.f32 %v1891, %v1892
        %v1894 = vrot.slane %v1893, 2
        %v1895 = vadd.f32 %v1893, %v1894
        %v1896 = vrot.slane %v1895, 1
        %v1897 = vadd.f32 %v1895, %v1896
        %v1898 = vsel %vm1528, %v1800, 0.0
        %v1899 = vrot.slane %v1898, 4
        %v1900 = vadd.f32 %v1898, %v1899
        %v1901 = vrot.slane %v1900, 2
        %v1902 = vadd.f32 %v1900, %v1901
        %v1903 = vrot.slane %v1902, 1
        %v1904 = vadd.f32 %v1902, %v1903
        %v1905 = vsel %vm1528, %v1802, 0.0
        %v1906 = vrot.slane %v1905, 4
        %v1907 = vadd.f32 %v1905, %v1906
        %v1908 = vrot.slane %v1907, 2
        %v1909 = vadd.f32 %v1907, %v1908
        %v1910 = vrot.slane %v1909, 1
        %v1911 = vadd.f32 %v1909, %v1910
        %v1912 = vsel %vm1528, %v1804, 0.0
        %v1913 = vrot.slane %v1912, 4
        %v1914 = vadd.f32 %v1912, %v1913
        %v1915 = vrot.slane %v1914, 2
        %v1916 = vadd.f32 %v1914, %v1915
        %v1917 = vrot.slane %v1916, 1
        %v1918 = vadd.f32 %v1916, %v1917
        %v1919 = vsel %vm1528, %v1806, 0.0
        %v1920 = vrot.slane %v1919, 4
        %v1921 = vadd.f32 %v1919, %v1920
        %v1922 = vrot.slane %v1921, 2
        %v1923 = vadd.f32 %v1921, %v1922
        %v1924 = vrot.slane %v1923, 1
        %v1925 = vadd.f32 %v1923, %v1924
        %v1926 = vsel %vm1528, %v1808, 0.0
        %v1927 = vrot.slane %v1926, 4
        %v1928 = vadd.f32 %v1926, %v1927
        %v1929 = vrot.slane %v1928, 2
        %v1930 = vadd.f32 %v1928, %v1929
        %v1931 = vrot.slane %v1930, 1
        %v1932 = vadd.f32 %v1930, %v1931
        %v1933 = vsel %vm1528, %v1810, 0.0
        %v1934 = vrot.slane %v1933, 4
        %v1935 = vadd.f32 %v1933, %v1934
        %v1936 = vrot.slane %v1935, 2
        %v1937 = vadd.f32 %v1935, %v1936
        %v1938 = vrot.slane %v1937, 1
        %v1939 = vadd.f32 %v1937, %v1938
        %v1940 = vsel %vm1528, %v1812, 0.0
        %v1941 = vrot.slane %v1940, 4
        %v1942 = vadd.f32 %v1940, %v1941
        %v1943 = vrot.slane %v1942, 2
        %v1944 = vadd.f32 %v1942, %v1943
        %v1945 = vrot.slane %v1944, 1
        %v1946 = vadd.f32 %v1944, %v1945
        %v1947 = vsel %vm1528, %v1814, 0.0
        %v1948 = vrot.slane %v1947, 4
        %v1949 = vadd.f32 %v1947, %v1948
        %v1950 = vrot.slane %v1949, 2
        %v1951 = vadd.f32 %v1949, %v1950
        %v1952 = vrot.slane %v1951, 1
        %v1953 = vadd.f32 %v1951, %v1952
        %v1954 = vsel %vm1528, %v1816, 0.0
        %v1955 = vrot.slane %v1954, 4
        %v1956 = vadd.f32 %v1954, %v1955
        %v1957 = vrot.slane %v1956, 2
        %v1958 = vadd.f32 %v1956, %v1957
        %v1959 = vrot.slane %v1958, 1
        %v1960 = vadd.f32 %v1958, %v1959
        %v1961 = vsel %vm1528, %v1818, 0.0
        %v1962 = vrot.slane %v1961, 4
        %v1963 = vadd.f32 %v1961, %v1962
        %v1964 = vrot.slane %v1963, 2
        %v1965 = vadd.f32 %v1963, %v1964
        %v1966 = vrot.slane %v1965, 1
        %v1967 = vadd.f32 %v1965, %v1966
        %v1968 = vsel %vm1528, %v1820, 0.0
        %v1969 = vrot.slane %v1968, 4
        %v1970 = vadd.f32 %v1968, %v1969
        %v1971 = vrot.slane %v1970, 2
        %v1972 = vadd.f32 %v1970, %v1971
        %v1973 = vrot.slane %v1972, 1
        %v1974 = vadd.f32 %v1972, %v1973
        %v1975 = vsel %vm1528, %v1822, 0.0
        %v1976 = vrot.slane %v1975, 4
        %v1977 = vadd.f32 %v1975, %v1976
        %v1978 = vrot.slane %v1977, 2
        %v1979 = vadd.f32 %v1977, %v1978
        %v1980 = vrot.slane %v1979, 1
        %v1981 = vadd.f32 %v1979, %v1980
        %v1982 = vsel %vm1528, %v1824, 0.0
        %v1983 = vrot.slane %v1982, 4
        %v1984 = vadd.f32 %v1982, %v1983
        %v1985 = vrot.slane %v1984, 2
        %v1986 = vadd.f32 %v1984, %v1985
        %v1987 = vrot.slane %v1986, 1
        %v1988 = vadd.f32 %v1986, %v1987
        %v1989 = vsel %vm1528, %v1826, 0.0
        %v1990 = vrot.slane %v1989, 4
        %v1991 = vadd.f32 %v1989, %v1990
        %v1992 = vrot.slane %v1991, 2
        %v1993 = vadd.f32 %v1991, %v1992
        %v1994 = vrot.slane %v1993, 1
        %v1995 = vadd.f32 %v1993, %v1994
        %v1996 = vsel %vm1528, %v1828, 0.0
        %v1997 = vrot.slane %v1996, 4
        %v1998 = vadd.f32 %v1996, %v1997
        %v1999 = vrot.slane %v1998, 2
        %v2000 = vadd.f32 %v1998, %v1999
        %v2001 = vrot.slane %v2000, 1
        %v2002 = vadd.f32 %v2000, %v2001
        %v2003 = vsel %vm1528, %v1830, 0.0
        %v2004 = vrot.slane %v2003, 4
        %v2005 = vadd.f32 %v2003, %v2004
        %v2006 = vrot.slane %v2005, 2
        %v2007 = vadd.f32 %v2005, %v2006
        %v2008 = vrot.slane %v2007, 1
        %v2009 = vadd.f32 %v2007, %v2008
        %v2010 = vsel %vm1528, %v1832, 0.0
        %v2011 = vrot.slane %v2010, 4
        %v2012 = vadd.f32 %v2010, %v2011
        %v2013 = vrot.slane %v2012, 2
        %v2014 = vadd.f32 %v2012, %v2013
        %v2015 = vrot.slane %v2014, 1
        %v2016 = vadd.f32 %v2014, %v2015
        %v2017 = vsel %vm1528, %v1834, 0.0
        %v2018 = vrot.slane %v2017, 4
        %v2019 = vadd.f32 %v2017, %v2018
        %v2020 = vrot.slane %v2019, 2
        %v2021 = vadd.f32 %v2019, %v2020
        %v2022 = vrot.slane %v2021, 1
        %v2023 = vadd.f32 %v2021, %v2022
        %v2024 = vsel %vm1528, %v1836, 0.0
        %v2025 = vrot.slane %v2024, 4
        %v2026 = vadd.f32 %v2024, %v2025
        %v2027 = vrot.slane %v2026, 2
        %v2028 = vadd.f32 %v2026, %v2027
        %v2029 = vrot.slane %v2028, 1
        %v2030 = vadd.f32 %v2028, %v2029
        %v2031 = vsel %vm1528, %v1838, 0.0
        %v2032 = vrot.slane %v2031, 4
        %v2033 = vadd.f32 %v2031, %v2032
        %v2034 = vrot.slane %v2033, 2
        %v2035 = vadd.f32 %v2033, %v2034
        %v2036 = vrot.slane %v2035, 1
        %v2037 = vadd.f32 %v2035, %v2036
        %v2038 = vsel %vm1528, %v1840, 0.0
        %v2039 = vrot.slane %v2038, 4
        %v2040 = vadd.f32 %v2038, %v2039
        %v2041 = vrot.slane %v2040, 2
        %v2042 = vadd.f32 %v2040, %v2041
        %v2043 = vrot.slane %v2042, 1
        %v2044 = vadd.f32 %v2042, %v2043
        %v2045 = vsel %vm1528, %v1842, 0.0
        %v2046 = vrot.slane %v2045, 4
        %v2047 = vadd.f32 %v2045, %v2046
        %v2048 = vrot.slane %v2047, 2
        %v2049 = vadd.f32 %v2047, %v2048
        %v2050 = vrot.slane %v2049, 1
        %v2051 = vadd.f32 %v2049, %v2050
        %v2052 = vsel %vm1528, %v1844, 0.0
        %v2053 = vrot.slane %v2052, 4
        %v2054 = vadd.f32 %v2052, %v2053
        %v2055 = vrot.slane %v2054, 2
        %v2056 = vadd.f32 %v2054, %v2055
        %v2057 = vrot.slane %v2056, 1
        %v2058 = vadd.f32 %v2056, %v2057
        %v2059 = vsel %vm1528, %v1846, 0.0
        %v2060 = vrot.slane %v2059, 4
        %v2061 = vadd.f32 %v2059, %v2060
        %v2062 = vrot.slane %v2061, 2
        %v2063 = vadd.f32 %v2061, %v2062
        %v2064 = vrot.slane %v2063, 1
        %v2065 = vadd.f32 %v2063, %v2064
        %v2066 = vsel %vm1528, %v1848, 0.0
        %v2067 = vrot.slane %v2066, 4
        %v2068 = vadd.f32 %v2066, %v2067
        %v2069 = vrot.slane %v2068, 2
        %v2070 = vadd.f32 %v2068, %v2069
        %v2071 = vrot.slane %v2070, 1
        %v2072 = vadd.f32 %v2070, %v2071
        %v2073 = vrcp.pop %v1855
        %v2074 = vmul.f32 %v1786, %v2073
        %v2075 = vrcp.pop %v1862
        %v2076 = vmul.f32 %v1788, %v2075
        %v2077 = vrcp.pop %v1869
        %v2078 = vmul.f32 %v1790, %v2077
        %v2079 = vrcp.pop %v1876
        %v2080 = vmul.f32 %v1792, %v2079
        %v2081 = vrcp.pop %v1883
        %v2082 = vmul.f32 %v1794, %v2081
        %v2083 = vrcp.pop %v1890
        %v2084 = vmul.f32 %v1796, %v2083
        %v2085 = vrcp.pop %v1897
        %v2086 = vmul.f32 %v1798, %v2085
        %v2087 = vrcp.pop %v1904
        %v2088 = vmul.f32 %v1800, %v2087
        %v2089 = vrcp.pop %v1911
        %v2090 = vmul.f32 %v1802, %v2089
        %v2091 = vrcp.pop %v1918
        %v2092 = vmul.f32 %v1804, %v2091
        %v2093 = vrcp.pop %v1925
        %v2094 = vmul.f32 %v1806, %v2093
        %v2095 = vrcp.pop %v1932
        %v2096 = vmul.f32 %v1808, %v2095
        %v2097 = vrcp.pop %v1939
        %v2098 = vmul.f32 %v1810, %v2097
        %v2099 = vrcp.pop %v1946
        %v2100 = vmul.f32 %v1812, %v2099
        %v2101 = vrcp.pop %v1953
        %v2102 = vmul.f32 %v1814, %v2101
        %v2103 = vrcp.pop %v1960
        %v2104 = vmul.f32 %v1816, %v2103
        %v2105 = vrcp.pop %v1967
        %v2106 = vmul.f32 %v1818, %v2105
        %v2107 = vrcp.pop %v1974
        %v2108 = vmul.f32 %v1820, %v2107
        %v2109 = vrcp.pop %v1981
        %v2110 = vmul.f32 %v1822, %v2109
        %v2111 = vrcp.pop %v1988
        %v2112 = vmul.f32 %v1824, %v2111
        %v2113 = vrcp.pop %v1995
        %v2114 = vmul.f32 %v1826, %v2113
        %v2115 = vrcp.pop %v2002
        %v2116 = vmul.f32 %v1828, %v2115
        %v2117 = vrcp.pop %v2009
        %v2118 = vmul.f32 %v1830, %v2117
        %v2119 = vrcp.pop %v2016
        %v2120 = vmul.f32 %v1832, %v2119
        %v2121 = vrcp.pop %v2023
        %v2122 = vmul.f32 %v1834, %v2121
        %v2123 = vrcp.pop %v2030
        %v2124 = vmul.f32 %v1836, %v2123
        %v2125 = vrcp.pop %v2037
        %v2126 = vmul.f32 %v1838, %v2125
        %v2127 = vrcp.pop %v2044
        %v2128 = vmul.f32 %v1840, %v2127
        %v2129 = vrcp.pop %v2051
        %v2130 = vmul.f32 %v1842, %v2129
        %v2131 = vrcp.pop %v2058
        %v2132 = vmul.f32 %v1844, %v2131
        %v2133 = vrcp.pop %v2065
        %v2134 = vmul.f32 %v1846, %v2133
        %v2135 = vrcp.pop %v2072
        %v2136 = vmul.f32 %v1848, %v2135
        %v2137 = vld [vmem:[%s266] sm:$0xf]
        %vm2138 = vcmask 56320
        %v2140 = vsel %vm2138, %v2137, 0
        %v2143 = vsel %vm1528, %v2074, 0
        %v2146 = vsel %vm1528, %v2076, 0
        %v2149 = vsel %vm1528, %v2078, 0
        %v2152 = vsel %vm1528, %v2080, 0
        %v2155 = vsel %vm1528, %v2082, 0
        %v2158 = vsel %vm1528, %v2084, 0
        %v2161 = vsel %vm1528, %v2086, 0
        %v2164 = vsel %vm1528, %v2088, 0
        %v2167 = vsel %vm1528, %v2090, 0
        %v2170 = vsel %vm1528, %v2092, 0
        %v2173 = vsel %vm1528, %v2094, 0
        %v2176 = vsel %vm1528, %v2096, 0
        %v2179 = vsel %vm1528, %v2098, 0
        %v2182 = vsel %vm1528, %v2100, 0
        %v2185 = vsel %vm1528, %v2102, 0
        %v2188 = vsel %vm1528, %v2104, 0
        %v2191 = vsel %vm1528, %v2106, 0
        %v2194 = vsel %vm1528, %v2108, 0
        %v2197 = vsel %vm1528, %v2110, 0
        %v2200 = vsel %vm1528, %v2112, 0
        %v2203 = vsel %vm1528, %v2114, 0
        %v2206 = vsel %vm1528, %v2116, 0
        %v2209 = vsel %vm1528, %v2118, 0
        %v2212 = vsel %vm1528, %v2120, 0
        %v2215 = vsel %vm1528, %v2122, 0
        %v2218 = vsel %vm1528, %v2124, 0
        %v2221 = vsel %vm1528, %v2126, 0
        %v2224 = vsel %vm1528, %v2128, 0
        %v2227 = vsel %vm1528, %v2130, 0
        %v2230 = vsel %vm1528, %v2132, 0
        %v2233 = vsel %vm1528, %v2134, 0
        %v2236 = vsel %vm1528, %v2136, 0
        %2238 = vmatprep.subr.mxu0 %v2146
        %2239 = vmatpush1.msra.mxu0 %v2143
        %2240 = vmatprep.subr.mxu0 0.0
        %2241 = vmatpush1.msra.mxu0 0.0
        %2242 = vmatprep.subr.mxu0 0.0
        %2243 = vmatpush1.msra.mxu0 0.0
        %2244 = vmatprep.subr.mxu0 0.0
        %2245 = vmatpush1.msra.mxu0 0.0
        %2246 = vmatprep.subr.mxu0 0.0
        %2247 = vmatpush1.msra.mxu0 0.0
        %2248 = vmatprep.subr.mxu0 0.0
        %2249 = vmatpush1.msra.mxu0 0.0
        %2250 = vmatprep.subr.mxu0 0.0
        %2251 = vmatpush1.msra.mxu0 0.0
        %2252 = vmatprep.subr.mxu0 0.0
        %2253 = vmatpush1.msra.mxu0 0.0
        %2254 = vmatprep.subr.mxu0 0.0
        %2255 = vmatpush1.msra.mxu0 0.0
        %2256 = vmatprep.subr.mxu0 0.0
        %2257 = vmatpush1.msra.mxu0 0.0
        %2258 = vmatprep.subr.mxu0 0.0
        %2259 = vmatpush1.msra.mxu0 0.0
        %2260 = vmatprep.subr.mxu0 0.0
        %2261 = vmatpush1.msra.mxu0 0.0
        %2262 = vmatprep.subr.mxu0 0.0
        %2263 = vmatpush1.msra.mxu0 0.0
        %2264 = vmatprep.subr.mxu0 0.0
        %2265 = vmatpush1.msra.mxu0 0.0
        %2266 = vmatprep.subr.mxu0 0.0
        %2267 = vmatpush1.msra.mxu0 0.0
        %2268 = vmatprep.subr.mxu0 0.0
        %2269 = vmatpush1.msra.mxu0 0.0
        %2270 = vmatprep.subr.mxu0 0.0
        %2271 = vmatpush1.msra.mxu0 0.0
        %2272 = vmatprep.subr.mxu0 0.0
        %2273 = vmatpush1.msra.mxu0 0.0
        %2274 = vmatprep.subr.mxu0 0.0
        %2275 = vmatpush1.msra.mxu0 0.0
        %2276 = vmatprep.subr.mxu0 0.0
        %2277 = vmatpush1.msra.mxu0 0.0
        %2278 = vmatprep.subr.mxu0 0.0
        %2279 = vmatpush1.msra.mxu0 0.0
        %2280 = vmatprep.subr.mxu0 0.0
        %2281 = vmatpush1.msra.mxu0 0.0
        %2282 = vmatprep.subr.mxu0 0.0
        %2283 = vmatpush1.msra.mxu0 0.0
        %2284 = vmatprep.subr.mxu0 0.0
        %2285 = vmatpush1.msra.mxu0 0.0
        %2286 = vmatprep.subr.mxu0 0.0
        %2287 = vmatpush1.msra.mxu0 0.0
        %2288 = vmatprep.subr.mxu0 0.0
        %2289 = vmatpush1.msra.mxu0 0.0
        %2290 = vmatprep.subr.mxu0 0.0
        %2291 = vmatpush1.msra.mxu0 0.0
        %2292 = vmatprep.subr.mxu0 0.0
        %2293 = vmatpush1.msra.mxu0 0.0
        %2294 = vmatprep.subr.mxu0 0.0
        %2295 = vmatpush1.msra.mxu0 0.0
        %2296 = vmatprep.subr.mxu0 0.0
        %2297 = vmatpush1.msra.mxu0 0.0
        %2298 = vmatprep.subr.mxu0 0.0
        %2299 = vmatpush1.msra.mxu0 0.0
        %2300 = vmatprep.subr.mxu0 0.0
        %2301 = vmatpush1.msra.mxu0 0.0
        %2302 = vmatprep.mubr.f32.mxu0 0.0
        %2303 = vmatmul.mubr.f32.gmra.mrb[0].mxu0 %v2140
        %v2304 = vpop.f32.mrb[0].mxu0
        %v2305 = vadd.f32 0.0, %v2304
        %v2306 = vpop.f32.mrb[0].mxu0
        %v2307 = vadd.f32 0.0, %v2306
        %2308 = vdwg.mxu0
        %2309 = vmatprep.subr.mxu0 %v2152
        %2310 = vmatpush1.msra.mxu0 %v2149
        %2311 = vmatprep.subr.mxu0 0.0
        %2312 = vmatpush1.msra.mxu0 0.0
        %2313 = vmatprep.subr.mxu0 0.0
        %2314 = vmatpush1.msra.mxu0 0.0
        %2315 = vmatprep.subr.mxu0 0.0
        %2316 = vmatpush1.msra.mxu0 0.0
        %2317 = vmatprep.subr.mxu0 0.0
        %2318 = vmatpush1.msra.mxu0 0.0
        %2319 = vmatprep.subr.mxu0 0.0
        %2320 = vmatpush1.msra.mxu0 0.0
        %2321 = vmatprep.subr.mxu0 0.0
        %2322 = vmatpush1.msra.mxu0 0.0
        %2323 = vmatprep.subr.mxu0 0.0
        %2324 = vmatpush1.msra.mxu0 0.0
        %2325 = vmatprep.subr.mxu0 0.0
        %2326 = vmatpush1.msra.mxu0 0.0
        %2327 = vmatprep.subr.mxu0 0.0
        %2328 = vmatpush1.msra.mxu0 0.0
        %2329 = vmatprep.subr.mxu0 0.0
        %2330 = vmatpush1.msra.mxu0 0.0
        %2331 = vmatprep.subr.mxu0 0.0
        %2332 = vmatpush1.msra.mxu0 0.0
        %2333 = vmatprep.subr.mxu0 0.0
        %2334 = vmatpush1.msra.mxu0 0.0
        %2335 = vmatprep.subr.mxu0 0.0
        %2336 = vmatpush1.msra.mxu0 0.0
        %2337 = vmatprep.subr.mxu0 0.0
        %2338 = vmatpush1.msra.mxu0 0.0
        %2339 = vmatprep.subr.mxu0 0.0
        %2340 = vmatpush1.msra.mxu0 0.0
        %2341 = vmatprep.subr.mxu0 0.0
        %2342 = vmatpush1.msra.mxu0 0.0
        %2343 = vmatprep.subr.mxu0 0.0
        %2344 = vmatpush1.msra.mxu0 0.0
        %2345 = vmatprep.subr.mxu0 0.0
        %2346 = vmatpush1.msra.mxu0 0.0
        %2347 = vmatprep.subr.mxu0 0.0
        %2348 = vmatpush1.msra.mxu0 0.0
        %2349 = vmatprep.subr.mxu0 0.0
        %2350 = vmatpush1.msra.mxu0 0.0
        %2351 = vmatprep.subr.mxu0 0.0
        %2352 = vmatpush1.msra.mxu0 0.0
        %2353 = vmatprep.subr.mxu0 0.0
        %2354 = vmatpush1.msra.mxu0 0.0
        %2355 = vmatprep.subr.mxu0 0.0
        %2356 = vmatpush1.msra.mxu0 0.0
        %2357 = vmatprep.subr.mxu0 0.0
        %2358 = vmatpush1.msra.mxu0 0.0
        %2359 = vmatprep.subr.mxu0 0.0
        %2360 = vmatpush1.msra.mxu0 0.0
        %2361 = vmatprep.subr.mxu0 0.0
        %2362 = vmatpush1.msra.mxu0 0.0
        %2363 = vmatprep.subr.mxu0 0.0
        %2364 = vmatpush1.msra.mxu0 0.0
        %2365 = vmatprep.subr.mxu0 0.0
        %2366 = vmatpush1.msra.mxu0 0.0
        %2367 = vmatprep.subr.mxu0 0.0
        %2368 = vmatpush1.msra.mxu0 0.0
        %2369 = vmatprep.subr.mxu0 0.0
        %2370 = vmatpush1.msra.mxu0 0.0
        %2371 = vmatprep.subr.mxu0 0.0
        %2372 = vmatpush1.msra.mxu0 0.0
        %2373 = vmatprep.mubr.f32.mxu0 0.0
        %2374 = vmatmul.mubr.f32.gmra.mrb[0].mxu0 %v2140
        %v2375 = vpop.f32.mrb[0].mxu0
        %v2376 = vadd.f32 0.0, %v2375
        %v2377 = vpop.f32.mrb[0].mxu0
        %v2378 = vadd.f32 0.0, %v2377
        %2379 = vdwg.mxu0
        %2380 = vmatprep.subr.mxu0 %v2158
        %2381 = vmatpush1.msra.mxu0 %v2155
        %2382 = vmatprep.subr.mxu0 0.0
        %2383 = vmatpush1.msra.mxu0 0.0
        %2384 = vmatprep.subr.mxu0 0.0
        %2385 = vmatpush1.msra.mxu0 0.0
        %2386 = vmatprep.subr.mxu0 0.0
        %2387 = vmatpush1.msra.mxu0 0.0
        %2388 = vmatprep.subr.mxu0 0.0
        %2389 = vmatpush1.msra.mxu0 0.0
        %2390 = vmatprep.subr.mxu0 0.0
        %2391 = vmatpush1.msra.mxu0 0.0
        %2392 = vmatprep.subr.mxu0 0.0
        %2393 = vmatpush1.msra.mxu0 0.0
        %2394 = vmatprep.subr.mxu0 0.0
        %2395 = vmatpush1.msra.mxu0 0.0
        %2396 = vmatprep.subr.mxu0 0.0
        %2397 = vmatpush1.msra.mxu0 0.0
        %2398 = vmatprep.subr.mxu0 0.0
        %2399 = vmatpush1.msra.mxu0 0.0
        %2400 = vmatprep.subr.mxu0 0.0
        %2401 = vmatpush1.msra.mxu0 0.0
        %2402 = vmatprep.subr.mxu0 0.0
        %2403 = vmatpush1.msra.mxu0 0.0
        %2404 = vmatprep.subr.mxu0 0.0
        %2405 = vmatpush1.msra.mxu0 0.0
        %2406 = vmatprep.subr.mxu0 0.0
        %2407 = vmatpush1.msra.mxu0 0.0
        %2408 = vmatprep.subr.mxu0 0.0
        %2409 = vmatpush1.msra.mxu0 0.0
        %2410 = vmatprep.subr.mxu0 0.0
        %2411 = vmatpush1.msra.mxu0 0.0
        %2412 = vmatprep.subr.mxu0 0.0
        %2413 = vmatpush1.msra.mxu0 0.0
        %2414 = vmatprep.subr.mxu0 0.0
        %2415 = vmatpush1.msra.mxu0 0.0
        %2416 = vmatprep.subr.mxu0 0.0
        %2417 = vmatpush1.msra.mxu0 0.0
        %2418 = vmatprep.subr.mxu0 0.0
        %2419 = vmatpush1.msra.mxu0 0.0
        %2420 = vmatprep.subr.mxu0 0.0
        %2421 = vmatpush1.msra.mxu0 0.0
        %2422 = vmatprep.subr.mxu0 0.0
        %2423 = vmatpush1.msra.mxu0 0.0
        %2424 = vmatprep.subr.mxu0 0.0
        %2425 = vmatpush1.msra.mxu0 0.0
        %2426 = vmatprep.subr.mxu0 0.0
        %2427 = vmatpush1.msra.mxu0 0.0
        %2428 = vmatprep.subr.mxu0 0.0
        %2429 = vmatpush1.msra.mxu0 0.0
        %2430 = vmatprep.subr.mxu0 0.0
        %2431 = vmatpush1.msra.mxu0 0.0
        %2432 = vmatprep.subr.mxu0 0.0
        %2433 = vmatpush1.msra.mxu0 0.0
        %2434 = vmatprep.subr.mxu0 0.0
        %2435 = vmatpush1.msra.mxu0 0.0
        %2436 = vmatprep.subr.mxu0 0.0
        %2437 = vmatpush1.msra.mxu0 0.0
        %2438 = vmatprep.subr.mxu0 0.0
        %2439 = vmatpush1.msra.mxu0 0.0
        %2440 = vmatprep.subr.mxu0 0.0
        %2441 = vmatpush1.msra.mxu0 0.0
        %2442 = vmatprep.subr.mxu0 0.0
        %2443 = vmatpush1.msra.mxu0 0.0
        %2444 = vmatprep.mubr.f32.mxu0 0.0
        %2445 = vmatmul.mubr.f32.gmra.mrb[0].mxu0 %v2140
        %v2446 = vpop.f32.mrb[0].mxu0
        %v2447 = vadd.f32 0.0, %v2446
        %v2448 = vpop.f32.mrb[0].mxu0
        %v2449 = vadd.f32 0.0, %v2448
        %2450 = vdwg.mxu0
        %2451 = vmatprep.subr.mxu0 %v2164
        %2452 = vmatpush1.msra.mxu0 %v2161
        %2453 = vmatprep.subr.mxu0 0.0
        %2454 = vmatpush1.msra.mxu0 0.0
        %2455 = vmatprep.subr.mxu0 0.0
        %2456 = vmatpush1.msra.mxu0 0.0
        %2457 = vmatprep.subr.mxu0 0.0
        %2458 = vmatpush1.msra.mxu0 0.0
        %2459 = vmatprep.subr.mxu0 0.0
        %2460 = vmatpush1.msra.mxu0 0.0
        %2461 = vmatprep.subr.mxu0 0.0
        %2462 = vmatpush1.msra.mxu0 0.0
        %2463 = vmatprep.subr.mxu0 0.0
        %2464 = vmatpush1.msra.mxu0 0.0
        %2465 = vmatprep.subr.mxu0 0.0
        %2466 = vmatpush1.msra.mxu0 0.0
        %2467 = vmatprep.subr.mxu0 0.0
        %2468 = vmatpush1.msra.mxu0 0.0
        %2469 = vmatprep.subr.mxu0 0.0
        %2470 = vmatpush1.msra.mxu0 0.0
        %2471 = vmatprep.subr.mxu0 0.0
        %2472 = vmatpush1.msra.mxu0 0.0
        %2473 = vmatprep.subr.mxu0 0.0
        %2474 = vmatpush1.msra.mxu0 0.0
        %2475 = vmatprep.subr.mxu0 0.0
        %2476 = vmatpush1.msra.mxu0 0.0
        %2477 = vmatprep.subr.mxu0 0.0
        %2478 = vmatpush1.msra.mxu0 0.0
        %2479 = vmatprep.subr.mxu0 0.0
        %2480 = vmatpush1.msra.mxu0 0.0
        %2481 = vmatprep.subr.mxu0 0.0
        %2482 = vmatpush1.msra.mxu0 0.0
        %2483 = vmatprep.subr.mxu0 0.0
        %2484 = vmatpush1.msra.mxu0 0.0
        %2485 = vmatprep.subr.mxu0 0.0
        %2486 = vmatpush1.msra.mxu0 0.0
        %2487 = vmatprep.subr.mxu0 0.0
        %2488 = vmatpush1.msra.mxu0 0.0
        %2489 = vmatprep.subr.mxu0 0.0
        %2490 = vmatpush1.msra.mxu0 0.0
        %2491 = vmatprep.subr.mxu0 0.0
        %2492 = vmatpush1.msra.mxu0 0.0
        %2493 = vmatprep.subr.mxu0 0.0
        %2494 = vmatpush1.msra.mxu0 0.0
        %2495 = vmatprep.subr.mxu0 0.0
        %2496 = vmatpush1.msra.mxu0 0.0
        %2497 = vmatprep.subr.mxu0 0.0
        %2498 = vmatpush1.msra.mxu0 0.0
        %2499 = vmatprep.subr.mxu0 0.0
        %2500 = vmatpush1.msra.mxu0 0.0
        %2501 = vmatprep.subr.mxu0 0.0
        %2502 = vmatpush1.msra.mxu0 0.0
        %2503 = vmatprep.subr.mxu0 0.0
        %2504 = vmatpush1.msra.mxu0 0.0
        %2505 = vmatprep.subr.mxu0 0.0
        %2506 = vmatpush1.msra.mxu0 0.0
        %2507 = vmatprep.subr.mxu0 0.0
        %2508 = vmatpush1.msra.mxu0 0.0
        %2509 = vmatprep.subr.mxu0 0.0
        %2510 = vmatpush1.msra.mxu0 0.0
        %2511 = vmatprep.subr.mxu0 0.0
        %2512 = vmatpush1.msra.mxu0 0.0
        %2513 = vmatprep.subr.mxu0 0.0
        %2514 = vmatpush1.msra.mxu0 0.0
        %2515 = vmatprep.mubr.f32.mxu0 0.0
        %2516 = vmatmul.mubr.f32.gmra.mrb[0].mxu0 %v2140
        %v2517 = vpop.f32.mrb[0].mxu0
        %v2518 = vadd.f32 0.0, %v2517
        %v2519 = vpop.f32.mrb[0].mxu0
        %v2520 = vadd.f32 0.0, %v2519
        %2521 = vdwg.mxu0
        %2522 = vmatprep.subr.mxu0 %v2170
        %2523 = vmatpush1.msra.mxu0 %v2167
        %2524 = vmatprep.subr.mxu0 0.0
        %2525 = vmatpush1.msra.mxu0 0.0
        %2526 = vmatprep.subr.mxu0 0.0
        %2527 = vmatpush1.msra.mxu0 0.0
        %2528 = vmatprep.subr.mxu0 0.0
        %2529 = vmatpush1.msra.mxu0 0.0
        %2530 = vmatprep.subr.mxu0 0.0
        %2531 = vmatpush1.msra.mxu0 0.0
        %2532 = vmatprep.subr.mxu0 0.0
        %2533 = vmatpush1.msra.mxu0 0.0
        %2534 = vmatprep.subr.mxu0 0.0
        %2535 = vmatpush1.msra.mxu0 0.0
        %2536 = vmatprep.subr.mxu0 0.0
        %2537 = vmatpush1.msra.mxu0 0.0
        %2538 = vmatprep.subr.mxu0 0.0
        %2539 = vmatpush1.msra.mxu0 0.0
        %2540 = vmatprep.subr.mxu0 0.0
        %2541 = vmatpush1.msra.mxu0 0.0
        %2542 = vmatprep.subr.mxu0 0.0
        %2543 = vmatpush1.msra.mxu0 0.0
        %2544 = vmatprep.subr.mxu0 0.0
        %2545 = vmatpush1.msra.mxu0 0.0
        %2546 = vmatprep.subr.mxu0 0.0
        %2547 = vmatpush1.msra.mxu0 0.0
        %2548 = vmatprep.subr.mxu0 0.0
        %2549 = vmatpush1.msra.mxu0 0.0
        %2550 = vmatprep.subr.mxu0 0.0
        %2551 = vmatpush1.msra.mxu0 0.0
        %2552 = vmatprep.subr.mxu0 0.0
        %2553 = vmatpush1.msra.mxu0 0.0
        %2554 = vmatprep.subr.mxu0 0.0
        %2555 = vmatpush1.msra.mxu0 0.0
        %2556 = vmatprep.subr.mxu0 0.0
        %2557 = vmatpush1.msra.mxu0 0.0
        %2558 = vmatprep.subr.mxu0 0.0
        %2559 = vmatpush1.msra.mxu0 0.0
        %2560 = vmatprep.subr.mxu0 0.0
        %2561 = vmatpush1.msra.mxu0 0.0
        %2562 = vmatprep.subr.mxu0 0.0
        %2563 = vmatpush1.msra.mxu0 0.0
        %2564 = vmatprep.subr.mxu0 0.0
        %2565 = vmatpush1.msra.mxu0 0.0
        %2566 = vmatprep.subr.mxu0 0.0
        %2567 = vmatpush1.msra.mxu0 0.0
        %2568 = vmatprep.subr.mxu0 0.0
        %2569 = vmatpush1.msra.mxu0 0.0
        %2570 = vmatprep.subr.mxu0 0.0
        %2571 = vmatpush1.msra.mxu0 0.0
        %2572 = vmatprep.subr.mxu0 0.0
        %2573 = vmatpush1.msra.mxu0 0.0
        %2574 = vmatprep.subr.mxu0 0.0
        %2575 = vmatpush1.msra.mxu0 0.0
        %2576 = vmatprep.subr.mxu0 0.0
        %2577 = vmatpush1.msra.mxu0 0.0
        %2578 = vmatprep.subr.mxu0 0.0
        %2579 = vmatpush1.msra.mxu0 0.0
        %2580 = vmatprep.subr.mxu0 0.0
        %2581 = vmatpush1.msra.mxu0 0.0
        %2582 = vmatprep.subr.mxu0 0.0
        %2583 = vmatpush1.msra.mxu0 0.0
        %2584 = vmatprep.subr.mxu0 0.0
        %2585 = vmatpush1.msra.mxu0 0.0
        %2586 = vmatprep.mubr.f32.mxu0 0.0
        %2587 = vmatmul.mubr.f32.gmra.mrb[0].mxu0 %v2140
        %v2588 = vpop.f32.mrb[0].mxu0
        %v2589 = vadd.f32 0.0, %v2588
        %v2590 = vpop.f32.mrb[0].mxu0
        %v2591 = vadd.f32 0.0, %v2590
        %2592 = vdwg.mxu0
        %2593 = vmatprep.subr.mxu0 %v2176
        %2594 = vmatpush1.msra.mxu0 %v2173
        %2595 = vmatprep.subr.mxu0 0.0
        %2596 = vmatpush1.msra.mxu0 0.0
        %2597 = vmatprep.subr.mxu0 0.0
        %2598 = vmatpush1.msra.mxu0 0.0
        %2599 = vmatprep.subr.mxu0 0.0
        %2600 = vmatpush1.msra.mxu0 0.0
        %2601 = vmatprep.subr.mxu0 0.0
        %2602 = vmatpush1.msra.mxu0 0.0
        %2603 = vmatprep.subr.mxu0 0.0
        %2604 = vmatpush1.msra.mxu0 0.0
        %2605 = vmatprep.subr.mxu0 0.0
        %2606 = vmatpush1.msra.mxu0 0.0
        %2607 = vmatprep.subr.mxu0 0.0
        %2608 = vmatpush1.msra.mxu0 0.0
        %2609 = vmatprep.subr.mxu0 0.0
        %2610 = vmatpush1.msra.mxu0 0.0
        %2611 = vmatprep.subr.mxu0 0.0
        %2612 = vmatpush1.msra.mxu0 0.0
        %2613 = vmatprep.subr.mxu0 0.0
        %2614 = vmatpush1.msra.mxu0 0.0
        %2615 = vmatprep.subr.mxu0 0.0
        %2616 = vmatpush1.msra.mxu0 0.0
        %2617 = vmatprep.subr.mxu0 0.0
        %2618 = vmatpush1.msra.mxu0 0.0
        %2619 = vmatprep.subr.mxu0 0.0
        %2620 = vmatpush1.msra.mxu0 0.0
        %2621 = vmatprep.subr.mxu0 0.0
        %2622 = vmatpush1.msra.mxu0 0.0
        %2623 = vmatprep.subr.mxu0 0.0
        %2624 = vmatpush1.msra.mxu0 0.0
        %2625 = vmatprep.subr.mxu0 0.0
        %2626 = vmatpush1.msra.mxu0 0.0
        %2627 = vmatprep.subr.mxu0 0.0
        %2628 = vmatpush1.msra.mxu0 0.0
        %2629 = vmatprep.subr.mxu0 0.0
        %2630 = vmatpush1.msra.mxu0 0.0
        %2631 = vmatprep.subr.mxu0 0.0
        %2632 = vmatpush1.msra.mxu0 0.0
        %2633 = vmatprep.subr.mxu0 0.0
        %2634 = vmatpush1.msra.mxu0 0.0
        %2635 = vmatprep.subr.mxu0 0.0
        %2636 = vmatpush1.msra.mxu0 0.0
        %2637 = vmatprep.subr.mxu0 0.0
        %2638 = vmatpush1.msra.mxu0 0.0
        %2639 = vmatprep.subr.mxu0 0.0
        %2640 = vmatpush1.msra.mxu0 0.0
        %2641 = vmatprep.subr.mxu0 0.0
        %2642 = vmatpush1.msra.mxu0 0.0
        %2643 = vmatprep.subr.mxu0 0.0
        %2644 = vmatpush1.msra.mxu0 0.0
        %2645 = vmatprep.subr.mxu0 0.0
        %2646 = vmatpush1.msra.mxu0 0.0
        %2647 = vmatprep.subr.mxu0 0.0
        %2648 = vmatpush1.msra.mxu0 0.0
        %2649 = vmatprep.subr.mxu0 0.0
        %2650 = vmatpush1.msra.mxu0 0.0
        %2651 = vmatprep.subr.mxu0 0.0
        %2652 = vmatpush1.msra.mxu0 0.0
        %2653 = vmatprep.subr.mxu0 0.0
        %2654 = vmatpush1.msra.mxu0 0.0
        %2655 = vmatprep.subr.mxu0 0.0
        %2656 = vmatpush1.msra.mxu0 0.0
        %2657 = vmatprep.mubr.f32.mxu0 0.0
        %2658 = vmatmul.mubr.f32.gmra.mrb[0].mxu0 %v2140
        %v2659 = vpop.f32.mrb[0].mxu0
        %v2660 = vadd.f32 0.0, %v2659
        %v2661 = vpop.f32.mrb[0].mxu0
        %v2662 = vadd.f32 0.0, %v2661
        %2663 = vdwg.mxu0
        %2664 = vmatprep.subr.mxu0 %v2182
        %2665 = vmatpush1.msra.mxu0 %v2179
        %2666 = vmatprep.subr.mxu0 0.0
        %2667 = vmatpush1.msra.mxu0 0.0
        %2668 = vmatprep.subr.mxu0 0.0
        %2669 = vmatpush1.msra.mxu0 0.0
        %2670 = vmatprep.subr.mxu0 0.0
        %2671 = vmatpush1.msra.mxu0 0.0
        %2672 = vmatprep.subr.mxu0 0.0
        %2673 = vmatpush1.msra.mxu0 0.0
        %2674 = vmatprep.subr.mxu0 0.0
        %2675 = vmatpush1.msra.mxu0 0.0
        %2676 = vmatprep.subr.mxu0 0.0
        %2677 = vmatpush1.msra.mxu0 0.0
        %2678 = vmatprep.subr.mxu0 0.0
        %2679 = vmatpush1.msra.mxu0 0.0
        %2680 = vmatprep.subr.mxu0 0.0
        %2681 = vmatpush1.msra.mxu0 0.0
        %2682 = vmatprep.subr.mxu0 0.0
        %2683 = vmatpush1.msra.mxu0 0.0
        %2684 = vmatprep.subr.mxu0 0.0
        %2685 = vmatpush1.msra.mxu0 0.0
        %2686 = vmatprep.subr.mxu0 0.0
        %2687 = vmatpush1.msra.mxu0 0.0
        %2688 = vmatprep.subr.mxu0 0.0
        %2689 = vmatpush1.msra.mxu0 0.0
        %2690 = vmatprep.subr.mxu0 0.0
        %2691 = vmatpush1.msra.mxu0 0.0
        %2692 = vmatprep.subr.mxu0 0.0
        %2693 = vmatpush1.msra.mxu0 0.0
        %2694 = vmatprep.subr.mxu0 0.0
        %2695 = vmatpush1.msra.mxu0 0.0
        %2696 = vmatprep.subr.mxu0 0.0
        %2697 = vmatpush1.msra.mxu0 0.0
        %2698 = vmatprep.subr.mxu0 0.0
        %2699 = vmatpush1.msra.mxu0 0.0
        %2700 = vmatprep.subr.mxu0 0.0
        %2701 = vmatpush1.msra.mxu0 0.0
        %2702 = vmatprep.subr.mxu0 0.0
        %2703 = vmatpush1.msra.mxu0 0.0
        %2704 = vmatprep.subr.mxu0 0.0
        %2705 = vmatpush1.msra.mxu0 0.0
        %2706 = vmatprep.subr.mxu0 0.0
        %2707 = vmatpush1.msra.mxu0 0.0
        %2708 = vmatprep.subr.mxu0 0.0
        %2709 = vmatpush1.msra.mxu0 0.0
        %2710 = vmatprep.subr.mxu0 0.0
        %2711 = vmatpush1.msra.mxu0 0.0
        %2712 = vmatprep.subr.mxu0 0.0
        %2713 = vmatpush1.msra.mxu0 0.0
        %2714 = vmatprep.subr.mxu0 0.0
        %2715 = vmatpush1.msra.mxu0 0.0
        %2716 = vmatprep.subr.mxu0 0.0
        %2717 = vmatpush1.msra.mxu0 0.0
        %2718 = vmatprep.subr.mxu0 0.0
        %2719 = vmatpush1.msra.mxu0 0.0
        %2720 = vmatprep.subr.mxu0 0.0
        %2721 = vmatpush1.msra.mxu0 0.0
        %2722 = vmatprep.subr.mxu0 0.0
        %2723 = vmatpush1.msra.mxu0 0.0
        %2724 = vmatprep.subr.mxu0 0.0
        %2725 = vmatpush1.msra.mxu0 0.0
        %2726 = vmatprep.subr.mxu0 0.0
        %2727 = vmatpush1.msra.mxu0 0.0
        %2728 = vmatprep.mubr.f32.mxu0 0.0
        %2729 = vmatmul.mubr.f32.gmra.mrb[0].mxu0 %v2140
        %v2730 = vpop.f32.mrb[0].mxu0
        %v2731 = vadd.f32 0.0, %v2730
        %v2732 = vpop.f32.mrb[0].mxu0
        %v2733 = vadd.f32 0.0, %v2732
        %2734 = vdwg.mxu0
        %2735 = vmatprep.subr.mxu0 %v2188
        %2736 = vmatpush1.msra.mxu0 %v2185
        %2737 = vmatprep.subr.mxu0 0.0
        %2738 = vmatpush1.msra.mxu0 0.0
        %2739 = vmatprep.subr.mxu0 0.0
        %2740 = vmatpush1.msra.mxu0 0.0
        %2741 = vmatprep.subr.mxu0 0.0
        %2742 = vmatpush1.msra.mxu0 0.0
        %2743 = vmatprep.subr.mxu0 0.0
        %2744 = vmatpush1.msra.mxu0 0.0
        %2745 = vmatprep.subr.mxu0 0.0
        %2746 = vmatpush1.msra.mxu0 0.0
        %2747 = vmatprep.subr.mxu0 0.0
        %2748 = vmatpush1.msra.mxu0 0.0
        %2749 = vmatprep.subr.mxu0 0.0
        %2750 = vmatpush1.msra.mxu0 0.0
        %2751 = vmatprep.subr.mxu0 0.0
        %2752 = vmatpush1.msra.mxu0 0.0
        %2753 = vmatprep.subr.mxu0 0.0
        %2754 = vmatpush1.msra.mxu0 0.0
        %2755 = vmatprep.subr.mxu0 0.0
        %2756 = vmatpush1.msra.mxu0 0.0
        %2757 = vmatprep.subr.mxu0 0.0
        %2758 = vmatpush1.msra.mxu0 0.0
        %2759 = vmatprep.subr.mxu0 0.0
        %2760 = vmatpush1.msra.mxu0 0.0
        %2761 = vmatprep.subr.mxu0 0.0
        %2762 = vmatpush1.msra.mxu0 0.0
        %2763 = vmatprep.subr.mxu0 0.0
        %2764 = vmatpush1.msra.mxu0 0.0
        %2765 = vmatprep.subr.mxu0 0.0
        %2766 = vmatpush1.msra.mxu0 0.0
        %2767 = vmatprep.subr.mxu0 0.0
        %2768 = vmatpush1.msra.mxu0 0.0
        %2769 = vmatprep.subr.mxu0 0.0
        %2770 = vmatpush1.msra.mxu0 0.0
        %2771 = vmatprep.subr.mxu0 0.0
        %2772 = vmatpush1.msra.mxu0 0.0
        %2773 = vmatprep.subr.mxu0 0.0
        %2774 = vmatpush1.msra.mxu0 0.0
        %2775 = vmatprep.subr.mxu0 0.0
        %2776 = vmatpush1.msra.mxu0 0.0
        %2777 = vmatprep.subr.mxu0 0.0
        %2778 = vmatpush1.msra.mxu0 0.0
        %2779 = vmatprep.subr.mxu0 0.0
        %2780 = vmatpush1.msra.mxu0 0.0
        %2781 = vmatprep.subr.mxu0 0.0
        %2782 = vmatpush1.msra.mxu0 0.0
        %2783 = vmatprep.subr.mxu0 0.0
        %2784 = vmatpush1.msra.mxu0 0.0
        %2785 = vmatprep.subr.mxu0 0.0
        %2786 = vmatpush1.msra.mxu0 0.0
        %2787 = vmatprep.subr.mxu0 0.0
        %2788 = vmatpush1.msra.mxu0 0.0
        %2789 = vmatprep.subr.mxu0 0.0
        %2790 = vmatpush1.msra.mxu0 0.0
        %2791 = vmatprep.subr.mxu0 0.0
        %2792 = vmatpush1.msra.mxu0 0.0
        %2793 = vmatprep.subr.mxu0 0.0
        %2794 = vmatpush1.msra.mxu0 0.0
        %2795 = vmatprep.subr.mxu0 0.0
        %2796 = vmatpush1.msra.mxu0 0.0
        %2797 = vmatprep.subr.mxu0 0.0
        %2798 = vmatpush1.msra.mxu0 0.0
        %2799 = vmatprep.mubr.f32.mxu0 0.0
        %2800 = vmatmul.mubr.f32.gmra.mrb[0].mxu0 %v2140
        %v2801 = vpop.f32.mrb[0].mxu0
        %v2802 = vadd.f32 0.0, %v2801
        %v2803 = vpop.f32.mrb[0].mxu0
        %v2804 = vadd.f32 0.0, %v2803
        %2805 = vdwg.mxu0
        %2806 = vmatprep.subr.mxu0 %v2194
        %2807 = vmatpush1.msra.mxu0 %v2191
        %2808 = vmatprep.subr.mxu0 0.0
        %2809 = vmatpush1.msra.mxu0 0.0
        %2810 = vmatprep.subr.mxu0 0.0
        %2811 = vmatpush1.msra.mxu0 0.0
        %2812 = vmatprep.subr.mxu0 0.0
        %2813 = vmatpush1.msra.mxu0 0.0
        %2814 = vmatprep.subr.mxu0 0.0
        %2815 = vmatpush1.msra.mxu0 0.0
        %2816 = vmatprep.subr.mxu0 0.0
        %2817 = vmatpush1.msra.mxu0 0.0
        %2818 = vmatprep.subr.mxu0 0.0
        %2819 = vmatpush1.msra.mxu0 0.0
        %2820 = vmatprep.subr.mxu0 0.0
        %2821 = vmatpush1.msra.mxu0 0.0
        %2822 = vmatprep.subr.mxu0 0.0
        %2823 = vmatpush1.msra.mxu0 0.0
        %2824 = vmatprep.subr.mxu0 0.0
        %2825 = vmatpush1.msra.mxu0 0.0
        %2826 = vmatprep.subr.mxu0 0.0
        %2827 = vmatpush1.msra.mxu0 0.0
        %2828 = vmatprep.subr.mxu0 0.0
        %2829 = vmatpush1.msra.mxu0 0.0
        %2830 = vmatprep.subr.mxu0 0.0
        %2831 = vmatpush1.msra.mxu0 0.0
        %2832 = vmatprep.subr.mxu0 0.0
        %2833 = vmatpush1.msra.mxu0 0.0
        %2834 = vmatprep.subr.mxu0 0.0
        %2835 = vmatpush1.msra.mxu0 0.0
        %2836 = vmatprep.subr.mxu0 0.0
        %2837 = vmatpush1.msra.mxu0 0.0
        %2838 = vmatprep.subr.mxu0 0.0
        %2839 = vmatpush1.msra.mxu0 0.0
        %2840 = vmatprep.subr.mxu0 0.0
        %2841 = vmatpush1.msra.mxu0 0.0
        %2842 = vmatprep.subr.mxu0 0.0
        %2843 = vmatpush1.msra.mxu0 0.0
        %2844 = vmatprep.subr.mxu0 0.0
        %2845 = vmatpush1.msra.mxu0 0.0
        %2846 = vmatprep.subr.mxu0 0.0
        %2847 = vmatpush1.msra.mxu0 0.0
        %2848 = vmatprep.subr.mxu0 0.0
        %2849 = vmatpush1.msra.mxu0 0.0
        %2850 = vmatprep.subr.mxu0 0.0
        %2851 = vmatpush1.msra.mxu0 0.0
        %2852 = vmatprep.subr.mxu0 0.0
        %2853 = vmatpush1.msra.mxu0 0.0
        %2854 = vmatprep.subr.mxu0 0.0
        %2855 = vmatpush1.msra.mxu0 0.0
        %2856 = vmatprep.subr.mxu0 0.0
        %2857 = vmatpush1.msra.mxu0 0.0
        %2858 = vmatprep.subr.mxu0 0.0
        %2859 = vmatpush1.msra.mxu0 0.0
        %2860 = vmatprep.subr.mxu0 0.0
        %2861 = vmatpush1.msra.mxu0 0.0
        %2862 = vmatprep.subr.mxu0 0.0
        %2863 = vmatpush1.msra.mxu0 0.0
        %2864 = vmatprep.subr.mxu0 0.0
        %2865 = vmatpush1.msra.mxu0 0.0
        %2866 = vmatprep.subr.mxu0 0.0
        %2867 = vmatpush1.msra.mxu0 0.0
        %2868 = vmatprep.subr.mxu0 0.0
        %2869 = vmatpush1.msra.mxu0 0.0
        %2870 = vmatprep.mubr.f32.mxu0 0.0
        %2871 = vmatmul.mubr.f32.gmra.mrb[0].mxu0 %v2140
        %v2872 = vpop.f32.mrb[0].mxu0
        %v2873 = vadd.f32 0.0, %v2872
        %v2874 = vpop.f32.mrb[0].mxu0
        %v2875 = vadd.f32 0.0, %v2874
        %2876 = vdwg.mxu0
        %2877 = vmatprep.subr.mxu0 %v2200
        %2878 = vmatpush1.msra.mxu0 %v2197
        %2879 = vmatprep.subr.mxu0 0.0
        %2880 = vmatpush1.msra.mxu0 0.0
        %2881 = vmatprep.subr.mxu0 0.0
        %2882 = vmatpush1.msra.mxu0 0.0
        %2883 = vmatprep.subr.mxu0 0.0
        %2884 = vmatpush1.msra.mxu0 0.0
        %2885 = vmatprep.subr.mxu0 0.0
        %2886 = vmatpush1.msra.mxu0 0.0
        %2887 = vmatprep.subr.mxu0 0.0
        %2888 = vmatpush1.msra.mxu0 0.0
        %2889 = vmatprep.subr.mxu0 0.0
        %2890 = vmatpush1.msra.mxu0 0.0
        %2891 = vmatprep.subr.mxu0 0.0
        %2892 = vmatpush1.msra.mxu0 0.0
        %2893 = vmatprep.subr.mxu0 0.0
        %2894 = vmatpush1.msra.mxu0 0.0
        %2895 = vmatprep.subr.mxu0 0.0
        %2896 = vmatpush1.msra.mxu0 0.0
        %2897 = vmatprep.subr.mxu0 0.0
        %2898 = vmatpush1.msra.mxu0 0.0
        %2899 = vmatprep.subr.mxu0 0.0
        %2900 = vmatpush1.msra.mxu0 0.0
        %2901 = vmatprep.subr.mxu0 0.0
        %2902 = vmatpush1.msra.mxu0 0.0
        %2903 = vmatprep.subr.mxu0 0.0
        %2904 = vmatpush1.msra.mxu0 0.0
        %2905 = vmatprep.subr.mxu0 0.0
        %2906 = vmatpush1.msra.mxu0 0.0
        %2907 = vmatprep.subr.mxu0 0.0
        %2908 = vmatpush1.msra.mxu0 0.0
        %2909 = vmatprep.subr.mxu0 0.0
        %2910 = vmatpush1.msra.mxu0 0.0
        %2911 = vmatprep.subr.mxu0 0.0
        %2912 = vmatpush1.msra.mxu0 0.0
        %2913 = vmatprep.subr.mxu0 0.0
        %2914 = vmatpush1.msra.mxu0 0.0
        %2915 = vmatprep.subr.mxu0 0.0
        %2916 = vmatpush1.msra.mxu0 0.0
        %2917 = vmatprep.subr.mxu0 0.0
        %2918 = vmatpush1.msra.mxu0 0.0
        %2919 = vmatprep.subr.mxu0 0.0
        %2920 = vmatpush1.msra.mxu0 0.0
        %2921 = vmatprep.subr.mxu0 0.0
        %2922 = vmatpush1.msra.mxu0 0.0
        %2923 = vmatprep.subr.mxu0 0.0
        %2924 = vmatpush1.msra.mxu0 0.0
        %2925 = vmatprep.subr.mxu0 0.0
        %2926 = vmatpush1.msra.mxu0 0.0
        %2927 = vmatprep.subr.mxu0 0.0
        %2928 = vmatpush1.msra.mxu0 0.0
        %2929 = vmatprep.subr.mxu0 0.0
        %2930 = vmatpush1.msra.mxu0 0.0
        %2931 = vmatprep.subr.mxu0 0.0
        %2932 = vmatpush1.msra.mxu0 0.0
        %2933 = vmatprep.subr.mxu0 0.0
        %2934 = vmatpush1.msra.mxu0 0.0
        %2935 = vmatprep.subr.mxu0 0.0
        %2936 = vmatpush1.msra.mxu0 0.0
        %2937 = vmatprep.subr.mxu0 0.0
        %2938 = vmatpush1.msra.mxu0 0.0
        %2939 = vmatprep.subr.mxu0 0.0
        %2940 = vmatpush1.msra.mxu0 0.0
        %2941 = vmatprep.mubr.f32.mxu0 0.0
        %2942 = vmatmul.mubr.f32.gmra.mrb[0].mxu0 %v2140
        %v2943 = vpop.f32.mrb[0].mxu0
        %v2944 = vadd.f32 0.0, %v2943
        %v2945 = vpop.f32.mrb[0].mxu0
        %v2946 = vadd.f32 0.0, %v2945
        %2947 = vdwg.mxu0
        %2948 = vmatprep.subr.mxu0 %v2206
        %2949 = vmatpush1.msra.mxu0 %v2203
        %2950 = vmatprep.subr.mxu0 0.0
        %2951 = vmatpush1.msra.mxu0 0.0
        %2952 = vmatprep.subr.mxu0 0.0
        %2953 = vmatpush1.msra.mxu0 0.0
        %2954 = vmatprep.subr.mxu0 0.0
        %2955 = vmatpush1.msra.mxu0 0.0
        %2956 = vmatprep.subr.mxu0 0.0
        %2957 = vmatpush1.msra.mxu0 0.0
        %2958 = vmatprep.subr.mxu0 0.0
        %2959 = vmatpush1.msra.mxu0 0.0
        %2960 = vmatprep.subr.mxu0 0.0
        %2961 = vmatpush1.msra.mxu0 0.0
        %2962 = vmatprep.subr.mxu0 0.0
        %2963 = vmatpush1.msra.mxu0 0.0
        %2964 = vmatprep.subr.mxu0 0.0
        %2965 = vmatpush1.msra.mxu0 0.0
        %2966 = vmatprep.subr.mxu0 0.0
        %2967 = vmatpush1.msra.mxu0 0.0
        %2968 = vmatprep.subr.mxu0 0.0
        %2969 = vmatpush1.msra.mxu0 0.0
        %2970 = vmatprep.subr.mxu0 0.0
        %2971 = vmatpush1.msra.mxu0 0.0
        %2972 = vmatprep.subr.mxu0 0.0
        %2973 = vmatpush1.msra.mxu0 0.0
        %2974 = vmatprep.subr.mxu0 0.0
        %2975 = vmatpush1.msra.mxu0 0.0
        %2976 = vmatprep.subr.mxu0 0.0
        %2977 = vmatpush1.msra.mxu0 0.0
        %2978 = vmatprep.subr.mxu0 0.0
        %2979 = vmatpush1.msra.mxu0 0.0
        %2980 = vmatprep.subr.mxu0 0.0
        %2981 = vmatpush1.msra.mxu0 0.0
        %2982 = vmatprep.subr.mxu0 0.0
        %2983 = vmatpush1.msra.mxu0 0.0
        %2984 = vmatprep.subr.mxu0 0.0
        %2985 = vmatpush1.msra.mxu0 0.0
        %2986 = vmatprep.subr.mxu0 0.0
        %2987 = vmatpush1.msra.mxu0 0.0
        %2988 = vmatprep.subr.mxu0 0.0
        %2989 = vmatpush1.msra.mxu0 0.0
        %2990 = vmatprep.subr.mxu0 0.0
        %2991 = vmatpush1.msra.mxu0 0.0
        %2992 = vmatprep.subr.mxu0 0.0
        %2993 = vmatpush1.msra.mxu0 0.0
        %2994 = vmatprep.subr.mxu0 0.0
        %2995 = vmatpush1.msra.mxu0 0.0
        %2996 = vmatprep.subr.mxu0 0.0
        %2997 = vmatpush1.msra.mxu0 0.0
        %2998 = vmatprep.subr.mxu0 0.0
        %2999 = vmatpush1.msra.mxu0 0.0
        %3000 = vmatprep.subr.mxu0 0.0
        %3001 = vmatpush1.msra.mxu0 0.0
        %3002 = vmatprep.subr.mxu0 0.0
        %3003 = vmatpush1.msra.mxu0 0.0
        %3004 = vmatprep.subr.mxu0 0.0
        %3005 = vmatpush1.msra.mxu0 0.0
        %3006 = vmatprep.subr.mxu0 0.0
        %3007 = vmatpush1.msra.mxu0 0.0
        %3008 = vmatprep.subr.mxu0 0.0
        %3009 = vmatpush1.msra.mxu0 0.0
        %3010 = vmatprep.subr.mxu0 0.0
        %3011 = vmatpush1.msra.mxu0 0.0
        %3012 = vmatprep.mubr.f32.mxu0 0.0
        %3013 = vmatmul.mubr.f32.gmra.mrb[0].mxu0 %v2140
        %v3014 = vpop.f32.mrb[0].mxu0
        %v3015 = vadd.f32 0.0, %v3014
        %v3016 = vpop.f32.mrb[0].mxu0
        %v3017 = vadd.f32 0.0, %v3016
        %3018 = vdwg.mxu0
        %3019 = vmatprep.subr.mxu0 %v2212
        %3020 = vmatpush1.msra.mxu0 %v2209
        %3021 = vmatprep.subr.mxu0 0.0
        %3022 = vmatpush1.msra.mxu0 0.0
        %3023 = vmatprep.subr.mxu0 0.0
        %3024 = vmatpush1.msra.mxu0 0.0
        %3025 = vmatprep.subr.mxu0 0.0
        %3026 = vmatpush1.msra.mxu0 0.0
        %3027 = vmatprep.subr.mxu0 0.0
        %3028 = vmatpush1.msra.mxu0 0.0
        %3029 = vmatprep.subr.mxu0 0.0
        %3030 = vmatpush1.msra.mxu0 0.0
        %3031 = vmatprep.subr.mxu0 0.0
        %3032 = vmatpush1.msra.mxu0 0.0
        %3033 = vmatprep.subr.mxu0 0.0
        %3034 = vmatpush1.msra.mxu0 0.0
        %3035 = vmatprep.subr.mxu0 0.0
        %3036 = vmatpush1.msra.mxu0 0.0
        %3037 = vmatprep.subr.mxu0 0.0
        %3038 = vmatpush1.msra.mxu0 0.0
        %3039 = vmatprep.subr.mxu0 0.0
        %3040 = vmatpush1.msra.mxu0 0.0
        %3041 = vmatprep.subr.mxu0 0.0
        %3042 = vmatpush1.msra.mxu0 0.0
        %3043 = vmatprep.subr.mxu0 0.0
        %3044 = vmatpush1.msra.mxu0 0.0
        %3045 = vmatprep.subr.mxu0 0.0
        %3046 = vmatpush1.msra.mxu0 0.0
        %3047 = vmatprep.subr.mxu0 0.0
        %3048 = vmatpush1.msra.mxu0 0.0
        %3049 = vmatprep.subr.mxu0 0.0
        %3050 = vmatpush1.msra.mxu0 0.0
        %3051 = vmatprep.subr.mxu0 0.0
        %3052 = vmatpush1.msra.mxu0 0.0
        %3053 = vmatprep.subr.mxu0 0.0
        %3054 = vmatpush1.msra.mxu0 0.0
        %3055 = vmatprep.subr.mxu0 0.0
        %3056 = vmatpush1.msra.mxu0 0.0
        %3057 = vmatprep.subr.mxu0 0.0
        %3058 = vmatpush1.msra.mxu0 0.0
        %3059 = vmatprep.subr.mxu0 0.0
        %3060 = vmatpush1.msra.mxu0 0.0
        %3061 = vmatprep.subr.mxu0 0.0
        %3062 = vmatpush1.msra.mxu0 0.0
        %3063 = vmatprep.subr.mxu0 0.0
        %3064 = vmatpush1.msra.mxu0 0.0
        %3065 = vmatprep.subr.mxu0 0.0
        %3066 = vmatpush1.msra.mxu0 0.0
        %3067 = vmatprep.subr.mxu0 0.0
        %3068 = vmatpush1.msra.mxu0 0.0
        %3069 = vmatprep.subr.mxu0 0.0
        %3070 = vmatpush1.msra.mxu0 0.0
        %3071 = vmatprep.subr.mxu0 0.0
        %3072 = vmatpush1.msra.mxu0 0.0
        %3073 = vmatprep.subr.mxu0 0.0
        %3074 = vmatpush1.msra.mxu0 0.0
        %3075 = vmatprep.subr.mxu0 0.0
        %3076 = vmatpush1.msra.mxu0 0.0
        %3077 = vmatprep.subr.mxu0 0.0
        %3078 = vmatpush1.msra.mxu0 0.0
        %3079 = vmatprep.subr.mxu0 0.0
        %3080 = vmatpush1.msra.mxu0 0.0
        %3081 = vmatprep.subr.mxu0 0.0
        %3082 = vmatpush1.msra.mxu0 0.0
        %3083 = vmatprep.mubr.f32.mxu0 0.0
        %3084 = vmatmul.mubr.f32.gmra.mrb[0].mxu0 %v2140
        %v3085 = vpop.f32.mrb[0].mxu0
        %v3086 = vadd.f32 0.0, %v3085
        %v3087 = vpop.f32.mrb[0].mxu0
        %v3088 = vadd.f32 0.0, %v3087
        %3089 = vdwg.mxu0
        %3090 = vmatprep.subr.mxu0 %v2218
        %3091 = vmatpush1.msra.mxu0 %v2215
        %3092 = vmatprep.subr.mxu0 0.0
        %3093 = vmatpush1.msra.mxu0 0.0
        %3094 = vmatprep.subr.mxu0 0.0
        %3095 = vmatpush1.msra.mxu0 0.0
        %3096 = vmatprep.subr.mxu0 0.0
        %3097 = vmatpush1.msra.mxu0 0.0
        %3098 = vmatprep.subr.mxu0 0.0
        %3099 = vmatpush1.msra.mxu0 0.0
        %3100 = vmatprep.subr.mxu0 0.0
        %3101 = vmatpush1.msra.mxu0 0.0
        %3102 = vmatprep.subr.mxu0 0.0
        %3103 = vmatpush1.msra.mxu0 0.0
        %3104 = vmatprep.subr.mxu0 0.0
        %3105 = vmatpush1.msra.mxu0 0.0
        %3106 = vmatprep.subr.mxu0 0.0
        %3107 = vmatpush1.msra.mxu0 0.0
        %3108 = vmatprep.subr.mxu0 0.0
        %3109 = vmatpush1.msra.mxu0 0.0
        %3110 = vmatprep.subr.mxu0 0.0
        %3111 = vmatpush1.msra.mxu0 0.0
        %3112 = vmatprep.subr.mxu0 0.0
        %3113 = vmatpush1.msra.mxu0 0.0
        %3114 = vmatprep.subr.mxu0 0.0
        %3115 = vmatpush1.msra.mxu0 0.0
        %3116 = vmatprep.subr.mxu0 0.0
        %3117 = vmatpush1.msra.mxu0 0.0
        %3118 = vmatprep.subr.mxu0 0.0
        %3119 = vmatpush1.msra.mxu0 0.0
        %3120 = vmatprep.subr.mxu0 0.0
        %3121 = vmatpush1.msra.mxu0 0.0
        %3122 = vmatprep.subr.mxu0 0.0
        %3123 = vmatpush1.msra.mxu0 0.0
        %3124 = vmatprep.subr.mxu0 0.0
        %3125 = vmatpush1.msra.mxu0 0.0
        %3126 = vmatprep.subr.mxu0 0.0
        %3127 = vmatpush1.msra.mxu0 0.0
        %3128 = vmatprep.subr.mxu0 0.0
        %3129 = vmatpush1.msra.mxu0 0.0
        %3130 = vmatprep.subr.mxu0 0.0
        %3131 = vmatpush1.msra.mxu0 0.0
        %3132 = vmatprep.subr.mxu0 0.0
        %3133 = vmatpush1.msra.mxu0 0.0
        %3134 = vmatprep.subr.mxu0 0.0
        %3135 = vmatpush1.msra.mxu0 0.0
        %3136 = vmatprep.subr.mxu0 0.0
        %3137 = vmatpush1.msra.mxu0 0.0
        %3138 = vmatprep.subr.mxu0 0.0
        %3139 = vmatpush1.msra.mxu0 0.0
        %3140 = vmatprep.subr.mxu0 0.0
        %3141 = vmatpush1.msra.mxu0 0.0
        %3142 = vmatprep.subr.mxu0 0.0
        %3143 = vmatpush1.msra.mxu0 0.0
        %3144 = vmatprep.subr.mxu0 0.0
        %3145 = vmatpush1.msra.mxu0 0.0
        %3146 = vmatprep.subr.mxu0 0.0
        %3147 = vmatpush1.msra.mxu0 0.0
        %3148 = vmatprep.subr.mxu0 0.0
        %3149 = vmatpush1.msra.mxu0 0.0
        %3150 = vmatprep.subr.mxu0 0.0
        %3151 = vmatpush1.msra.mxu0 0.0
        %3152 = vmatprep.subr.mxu0 0.0
        %3153 = vmatpush1.msra.mxu0 0.0
        %3154 = vmatprep.mubr.f32.mxu0 0.0
        %3155 = vmatmul.mubr.f32.gmra.mrb[0].mxu0 %v2140
        %v3156 = vpop.f32.mrb[0].mxu0
        %v3157 = vadd.f32 0.0, %v3156
        %v3158 = vpop.f32.mrb[0].mxu0
        %v3159 = vadd.f32 0.0, %v3158
        %3160 = vdwg.mxu0
        %3161 = vmatprep.subr.mxu0 %v2224
        %3162 = vmatpush1.msra.mxu0 %v2221
        %3163 = vmatprep.subr.mxu0 0.0
        %3164 = vmatpush1.msra.mxu0 0.0
        %3165 = vmatprep.subr.mxu0 0.0
        %3166 = vmatpush1.msra.mxu0 0.0
        %3167 = vmatprep.subr.mxu0 0.0
        %3168 = vmatpush1.msra.mxu0 0.0
        %3169 = vmatprep.subr.mxu0 0.0
        %3170 = vmatpush1.msra.mxu0 0.0
        %3171 = vmatprep.subr.mxu0 0.0
        %3172 = vmatpush1.msra.mxu0 0.0
        %3173 = vmatprep.subr.mxu0 0.0
        %3174 = vmatpush1.msra.mxu0 0.0
        %3175 = vmatprep.subr.mxu0 0.0
        %3176 = vmatpush1.msra.mxu0 0.0
        %3177 = vmatprep.subr.mxu0 0.0
        %3178 = vmatpush1.msra.mxu0 0.0
        %3179 = vmatprep.subr.mxu0 0.0
        %3180 = vmatpush1.msra.mxu0 0.0
        %3181 = vmatprep.subr.mxu0 0.0
        %3182 = vmatpush1.msra.mxu0 0.0
        %3183 = vmatprep.subr.mxu0 0.0
        %3184 = vmatpush1.msra.mxu0 0.0
        %3185 = vmatprep.subr.mxu0 0.0
        %3186 = vmatpush1.msra.mxu0 0.0
        %3187 = vmatprep.subr.mxu0 0.0
        %3188 = vmatpush1.msra.mxu0 0.0
        %3189 = vmatprep.subr.mxu0 0.0
        %3190 = vmatpush1.msra.mxu0 0.0
        %3191 = vmatprep.subr.mxu0 0.0
        %3192 = vmatpush1.msra.mxu0 0.0
        %3193 = vmatprep.subr.mxu0 0.0
        %3194 = vmatpush1.msra.mxu0 0.0
        %3195 = vmatprep.subr.mxu0 0.0
        %3196 = vmatpush1.msra.mxu0 0.0
        %3197 = vmatprep.subr.mxu0 0.0
        %3198 = vmatpush1.msra.mxu0 0.0
        %3199 = vmatprep.subr.mxu0 0.0
        %3200 = vmatpush1.msra.mxu0 0.0
        %3201 = vmatprep.subr.mxu0 0.0
        %3202 = vmatpush1.msra.mxu0 0.0
        %3203 = vmatprep.subr.mxu0 0.0
        %3204 = vmatpush1.msra.mxu0 0.0
        %3205 = vmatprep.subr.mxu0 0.0
        %3206 = vmatpush1.msra.mxu0 0.0
        %3207 = vmatprep.subr.mxu0 0.0
        %3208 = vmatpush1.msra.mxu0 0.0
        %3209 = vmatprep.subr.mxu0 0.0
        %3210 = vmatpush1.msra.mxu0 0.0
        %3211 = vmatprep.subr.mxu0 0.0
        %3212 = vmatpush1.msra.mxu0 0.0
        %3213 = vmatprep.subr.mxu0 0.0
        %3214 = vmatpush1.msra.mxu0 0.0
        %3215 = vmatprep.subr.mxu0 0.0
        %3216 = vmatpush1.msra.mxu0 0.0
        %3217 = vmatprep.subr.mxu0 0.0
        %3218 = vmatpush1.msra.mxu0 0.0
        %3219 = vmatprep.subr.mxu0 0.0
        %3220 = vmatpush1.msra.mxu0 0.0
        %3221 = vmatprep.subr.mxu0 0.0
        %3222 = vmatpush1.msra.mxu0 0.0
        %3223 = vmatprep.subr.mxu0 0.0
        %3224 = vmatpush1.msra.mxu0 0.0
        %3225 = vmatprep.mubr.f32.mxu0 0.0
        %3226 = vmatmul.mubr.f32.gmra.mrb[0].mxu0 %v2140
        %v3227 = vpop.f32.mrb[0].mxu0
        %v3228 = vadd.f32 0.0, %v3227
        %v3229 = vpop.f32.mrb[0].mxu0
        %v3230 = vadd.f32 0.0, %v3229
        %3231 = vdwg.mxu0
        %3232 = vmatprep.subr.mxu0 %v2230
        %3233 = vmatpush1.msra.mxu0 %v2227
        %3234 = vmatprep.subr.mxu0 0.0
        %3235 = vmatpush1.msra.mxu0 0.0
        %3236 = vmatprep.subr.mxu0 0.0
        %3237 = vmatpush1.msra.mxu0 0.0
        %3238 = vmatprep.subr.mxu0 0.0
        %3239 = vmatpush1.msra.mxu0 0.0
        %3240 = vmatprep.subr.mxu0 0.0
        %3241 = vmatpush1.msra.mxu0 0.0
        %3242 = vmatprep.subr.mxu0 0.0
        %3243 = vmatpush1.msra.mxu0 0.0
        %3244 = vmatprep.subr.mxu0 0.0
        %3245 = vmatpush1.msra.mxu0 0.0
        %3246 = vmatprep.subr.mxu0 0.0
        %3247 = vmatpush1.msra.mxu0 0.0
        %3248 = vmatprep.subr.mxu0 0.0
        %3249 = vmatpush1.msra.mxu0 0.0
        %3250 = vmatprep.subr.mxu0 0.0
        %3251 = vmatpush1.msra.mxu0 0.0
        %3252 = vmatprep.subr.mxu0 0.0
        %3253 = vmatpush1.msra.mxu0 0.0
        %3254 = vmatprep.subr.mxu0 0.0
        %3255 = vmatpush1.msra.mxu0 0.0
        %3256 = vmatprep.subr.mxu0 0.0
        %3257 = vmatpush1.msra.mxu0 0.0
        %3258 = vmatprep.subr.mxu0 0.0
        %3259 = vmatpush1.msra.mxu0 0.0
        %3260 = vmatprep.subr.mxu0 0.0
        %3261 = vmatpush1.msra.mxu0 0.0
        %3262 = vmatprep.subr.mxu0 0.0
        %3263 = vmatpush1.msra.mxu0 0.0
        %3264 = vmatprep.subr.mxu0 0.0
        %3265 = vmatpush1.msra.mxu0 0.0
        %3266 = vmatprep.subr.mxu0 0.0
        %3267 = vmatpush1.msra.mxu0 0.0
        %3268 = vmatprep.subr.mxu0 0.0
        %3269 = vmatpush1.msra.mxu0 0.0
        %3270 = vmatprep.subr.mxu0 0.0
        %3271 = vmatpush1.msra.mxu0 0.0
        %3272 = vmatprep.subr.mxu0 0.0
        %3273 = vmatpush1.msra.mxu0 0.0
        %3274 = vmatprep.subr.mxu0 0.0
        %3275 = vmatpush1.msra.mxu0 0.0
        %3276 = vmatprep.subr.mxu0 0.0
        %3277 = vmatpush1.msra.mxu0 0.0
        %3278 = vmatprep.subr.mxu0 0.0
        %3279 = vmatpush1.msra.mxu0 0.0
        %3280 = vmatprep.subr.mxu0 0.0
        %3281 = vmatpush1.msra.mxu0 0.0
        %3282 = vmatprep.subr.mxu0 0.0
        %3283 = vmatpush1.msra.mxu0 0.0
        %3284 = vmatprep.subr.mxu0 0.0
        %3285 = vmatpush1.msra.mxu0 0.0
        %3286 = vmatprep.subr.mxu0 0.0
        %3287 = vmatpush1.msra.mxu0 0.0
        %3288 = vmatprep.subr.mxu0 0.0
        %3289 = vmatpush1.msra.mxu0 0.0
        %3290 = vmatprep.subr.mxu0 0.0
        %3291 = vmatpush1.msra.mxu0 0.0
        %3292 = vmatprep.subr.mxu0 0.0
        %3293 = vmatpush1.msra.mxu0 0.0
        %3294 = vmatprep.subr.mxu0 0.0
        %3295 = vmatpush1.msra.mxu0 0.0
        %3296 = vmatprep.mubr.f32.mxu0 0.0
        %3297 = vmatmul.mubr.f32.gmra.mrb[0].mxu0 %v2140
        %v3298 = vpop.f32.mrb[0].mxu0
        %v3299 = vadd.f32 0.0, %v3298
        %v3300 = vpop.f32.mrb[0].mxu0
        %v3301 = vadd.f32 0.0, %v3300
        %3302 = vdwg.mxu0
        %3303 = vmatprep.subr.mxu0 %v2236
        %3304 = vmatpush1.msra.mxu0 %v2233
        %3305 = vmatprep.subr.mxu0 0.0
        %3306 = vmatpush1.msra.mxu0 0.0
        %3307 = vmatprep.subr.mxu0 0.0
        %3308 = vmatpush1.msra.mxu0 0.0
        %3309 = vmatprep.subr.mxu0 0.0
        %3310 = vmatpush1.msra.mxu0 0.0
        %3311 = vmatprep.subr.mxu0 0.0
        %3312 = vmatpush1.msra.mxu0 0.0
        %3313 = vmatprep.subr.mxu0 0.0
        %3314 = vmatpush1.msra.mxu0 0.0
        %3315 = vmatprep.subr.mxu0 0.0
        %3316 = vmatpush1.msra.mxu0 0.0
        %3317 = vmatprep.subr.mxu0 0.0
        %3318 = vmatpush1.msra.mxu0 0.0
        %3319 = vmatprep.subr.mxu0 0.0
        %3320 = vmatpush1.msra.mxu0 0.0
        %3321 = vmatprep.subr.mxu0 0.0
        %3322 = vmatpush1.msra.mxu0 0.0
        %3323 = vmatprep.subr.mxu0 0.0
        %3324 = vmatpush1.msra.mxu0 0.0
        %3325 = vmatprep.subr.mxu0 0.0
        %3326 = vmatpush1.msra.mxu0 0.0
        %3327 = vmatprep.subr.mxu0 0.0
        %3328 = vmatpush1.msra.mxu0 0.0
        %3329 = vmatprep.subr.mxu0 0.0
        %3330 = vmatpush1.msra.mxu0 0.0
        %3331 = vmatprep.subr.mxu0 0.0
        %3332 = vmatpush1.msra.mxu0 0.0
        %3333 = vmatprep.subr.mxu0 0.0
        %3334 = vmatpush1.msra.mxu0 0.0
        %3335 = vmatprep.subr.mxu0 0.0
        %3336 = vmatpush1.msra.mxu0 0.0
        %3337 = vmatprep.subr.mxu0 0.0
        %3338 = vmatpush1.msra.mxu0 0.0
        %3339 = vmatprep.subr.mxu0 0.0
        %3340 = vmatpush1.msra.mxu0 0.0
        %3341 = vmatprep.subr.mxu0 0.0
        %3342 = vmatpush1.msra.mxu0 0.0
        %3343 = vmatprep.subr.mxu0 0.0
        %3344 = vmatpush1.msra.mxu0 0.0
        %3345 = vmatprep.subr.mxu0 0.0
        %3346 = vmatpush1.msra.mxu0 0.0
        %3347 = vmatprep.subr.mxu0 0.0
        %3348 = vmatpush1.msra.mxu0 0.0
        %3349 = vmatprep.subr.mxu0 0.0
        %3350 = vmatpush1.msra.mxu0 0.0
        %3351 = vmatprep.subr.mxu0 0.0
        %3352 = vmatpush1.msra.mxu0 0.0
        %3353 = vmatprep.subr.mxu0 0.0
        %3354 = vmatpush1.msra.mxu0 0.0
        %3355 = vmatprep.subr.mxu0 0.0
        %3356 = vmatpush1.msra.mxu0 0.0
        %3357 = vmatprep.subr.mxu0 0.0
        %3358 = vmatpush1.msra.mxu0 0.0
        %3359 = vmatprep.subr.mxu0 0.0
        %3360 = vmatpush1.msra.mxu0 0.0
        %3361 = vmatprep.subr.mxu0 0.0
        %3362 = vmatpush1.msra.mxu0 0.0
        %3363 = vmatprep.subr.mxu0 0.0
        %3364 = vmatpush1.msra.mxu0 0.0
        %3365 = vmatprep.subr.mxu0 0.0
        %3366 = vmatpush1.msra.mxu0 0.0
        %3367 = vmatprep.mubr.f32.mxu0 0.0
        %3368 = vmatmul.mubr.f32.gmra.mrb[0].mxu0 %v2140
        %v3369 = vpop.f32.mrb[0].mxu0
        %v3370 = vadd.f32 0.0, %v3369
        %v3371 = vpop.f32.mrb[0].mxu0
        %v3372 = vadd.f32 0.0, %v3371
        %3373 = vdwg.mxu0
        %v3374 = vmax.f32 %v2305, 0.0
        %v3375 = vmax.f32 %v2307, 0.0
        %v3376 = vmax.f32 %v2376, 0.0
        %v3377 = vmax.f32 %v2378, 0.0
        %v3378 = vmax.f32 %v2447, 0.0
        %v3379 = vmax.f32 %v2449, 0.0
        %v3380 = vmax.f32 %v2518, 0.0
        %v3381 = vmax.f32 %v2520, 0.0
        %v3382 = vmax.f32 %v2589, 0.0
        %v3383 = vmax.f32 %v2591, 0.0
        %v3384 = vmax.f32 %v2660, 0.0
        %v3385 = vmax.f32 %v2662, 0.0
        %v3386 = vmax.f32 %v2731, 0.0
        %v3387 = vmax.f32 %v2733, 0.0
        %v3388 = vmax.f32 %v2802, 0.0
        %v3389 = vmax.f32 %v2804, 0.0
        %v3390 = vmax.f32 %v2873, 0.0
        %v3391 = vmax.f32 %v2875, 0.0
        %v3392 = vmax.f32 %v2944, 0.0
        %v3393 = vmax.f32 %v2946, 0.0
        %v3394 = vmax.f32 %v3015, 0.0
        %v3395 = vmax.f32 %v3017, 0.0
        %v3396 = vmax.f32 %v3086, 0.0
        %v3397 = vmax.f32 %v3088, 0.0
        %v3398 = vmax.f32 %v3157, 0.0
        %v3399 = vmax.f32 %v3159, 0.0
        %v3400 = vmax.f32 %v3228, 0.0
        %v3401 = vmax.f32 %v3230, 0.0
        %v3402 = vmax.f32 %v3299, 0.0
        %v3403 = vmax.f32 %v3301, 0.0
        %v3404 = vmax.f32 %v3370, 0.0
        %v3405 = vmax.f32 %v3372, 0.0
        %v3438 = vcombine.low %v3374, %v3375
        %v3439 = vcombine.low %v3376, %v3377
        %v3440 = vcombine.low %v3378, %v3379
        %v3441 = vcombine.low %v3380, %v3381
        %v3442 = vcombine.low %v3382, %v3383
        %v3443 = vcombine.low %v3384, %v3385
        %v3444 = vcombine.low %v3386, %v3387
        %v3445 = vcombine.low %v3388, %v3389
        %v3446 = vcombine.low %v3390, %v3391
        %v3447 = vcombine.low %v3392, %v3393
        %v3448 = vcombine.low %v3394, %v3395
        %v3449 = vcombine.low %v3396, %v3397
        %v3450 = vcombine.low %v3398, %v3399
        %v3451 = vcombine.low %v3400, %v3401
        %v3452 = vcombine.low %v3402, %v3403
        %v3453 = vcombine.low %v3404, %v3405
        %3470 = vst [vmem:[%s257] sm:$0xff] %v3438
        %3471 = vst [vmem:[%s257 + $0x8] sm:$0xff] %v3439
        %3472 = vst [vmem:[%s257 + $0x10] sm:$0xff] %v3440
        %3473 = vst [vmem:[%s257 + $0x18] sm:$0xff] %v3441
        %3474 = vst [vmem:[%s257 + $0x20] sm:$0xff] %v3442
        %3475 = vst [vmem:[%s257 + $0x28] sm:$0xff] %v3443
        %3476 = vst [vmem:[%s257 + $0x30] sm:$0xff] %v3444
        %3477 = vst [vmem:[%s257 + $0x38] sm:$0xff] %v3445
        %3478 = vst [vmem:[%s257 + $0x40] sm:$0xff] %v3446
        %3479 = vst [vmem:[%s257 + $0x48] sm:$0xff] %v3447
        %3480 = vst [vmem:[%s257 + $0x50] sm:$0xff] %v3448
        %3481 = vst [vmem:[%s257 + $0x58] sm:$0xff] %v3449
        %3482 = vst [vmem:[%s257 + $0x60] sm:$0xff] %v3450
        %3483 = vst [vmem:[%s257 + $0x68] sm:$0xff] %v3451
        %3484 = vst [vmem:[%s257 + $0x70] sm:$0xff] %v3452
        %3485 = vst [vmem:[%s257 + $0x78] sm:$0xff] %v3453
        %s3486 = sand.u32 %s144, 1
        %s3487 = scalar_lea.sflag [#allocation4], %s3486
        %s3488 = sand.u32 %s144, 1
        %s3489 = smul.addr %s3488, 128
        %s3490 = scalar_lea.vmem [#allocation5], %s3489
        // Predicated region
        $region41: #{tpu_custom_call.1} parent=35 // pred_check
          %p3491 = pneg %p154
        $region42: #{tpu_custom_call.1} parent=35 // pred_check_branch
          %3493 = sbr.rel (%p3491) target = $region44
        $region43: #{tpu_custom_call.1} parent=35 // pred_region
          %s3494 = smul.u32 32, %s26
          %s3496 = ssub.s32 2048, 2048
          %3497 = vsyncadd %s3487, %s3496
          %s3498 = smul.addr %s25, 32
          %s3499 = sadd.s32 %s3494, %s3498
          %s3500 = smul.addr %s3499, 64
          %s3501 = scalar_lea.hbm %s4, %s3500
          %s3503 = sshll.u32 %s3490, 4
          %s3504 = int_to_ptr.vmem [resolvable:$true] %s3503
          %3506 = dma.vmem_to_hbm [thread:$0]  %s3504, 2048, %s3501, %s3487
        $region44: #{tpu_custom_call.1} parent=35 // pred_fallthru
          _
      $region36: #{tpu_custom_call.1} parent=5 // pred_fallthru
        _
      %p3507 = scmp.le.s32.totalorder 2, %s16
      // Predicated region
      $region45: #{tpu_custom_call.1} parent=5 // pred_check
        %p3508 = pneg %p3507
      $region46: #{tpu_custom_call.1} parent=5 // pred_check_branch
        %3510 = sbr.rel (%p3508) target = $region48
      $region47: #{tpu_custom_call.1} parent=5 // pred_region
        %s3511 = ssub.s32 %s16, 2
        // Predicated region
        $region49: #{tpu_custom_call.1} parent=47 // pred_check
          %p3512 = pneg %p160
        $region50: #{tpu_custom_call.1} parent=47 // pred_check_branch
          %3514 = sbr.rel (%p3512) target = $region52
        $region51: #{tpu_custom_call.1} parent=47 // pred_region
          %s3515 = sand.u32 %s145, 1
          %s3516 = scalar_lea.sflag [#allocation4], %s3515
          %s3517 = sand.u32 %s145, 1
          %s3518 = smul.addr %s3517, 128
          %s3519 = scalar_lea.vmem [#allocation5], %s3518
          %3520 = dma.done %s3516, 2048
        $region52: #{tpu_custom_call.1} parent=47 // pred_fallthru
          _
      $region48: #{tpu_custom_call.1} parent=5 // pred_fallthru
        _
    $region6: #{tpu_custom_call.1} parent=1 // loop_footer
      %s20 = sadd.s32 1, %s16
    $region7: #{tpu_custom_call.1} parent=1 // loop_footer_branch
      %15 = sbr.rel target = $region3
    $region8: #{tpu_custom_call.1} parent=1 // loop_exit
      _
    %3521 = vsyncpa [#allocation3], 1
    %s3522 = scalar_lea.sflag [#allocation3], 1
    %3523 = vsyncpa %s3522, 1
    %3524 = vsyncpa [#allocation4], 1
    %s3525 = scalar_lea.sflag [#allocation4], 1
    %3526 = vsyncpa %s3525, 1

</llo_original>
